<compile_context>
chip_gen: v7x
topology: tpu7x:2x2x1
jax: 0.10.0
libtpu: 0.0.40
codegen_flags: <defaults>
</compile_context>

<pallas_src>
import functools

import jax
import jax.numpy as jnp
from jax.experimental import pallas as pl
from jax.experimental.pallas import tpu as pltpu


# ---------------------------------------------------------------------------
# Model dimensions (small, self-consistent with the forward pass)
# ---------------------------------------------------------------------------
B = 8              # batch (streaming chunks processed together)
T = 128            # frames per streaming chunk
HOP = 128          # samples per input frame
HOP_OUT = 128      # samples per decoded output frame
DC = 32            # content latent dim
DT = 32            # target speaker latent dim
H = 64             # decoder hidden dim
LANES = 128        # lane width for slab packing
F0_OFF = 64        # lane offset of the replicated f0 block in the encoder RHS

# Static packing asserts (a future dim bump must not silently truncate rows).
assert HOP % 16 == 0 and DC % 16 == 0 and H % 8 == 0
assert DC <= F0_OFF and F0_OFF + H <= LANES
assert H <= LANES and HOP_OUT <= LANES

# Row offsets of the sub-matrices inside the packed bf16 weight slab.
W_A_ROW = 0                 # (HOP, LANES): [w_enc | w_f0 replicated | 0]
W_E_ROW = HOP               # (HOP, LANES): ones/HOP in first H cols (energy)
W1C_ROW = 2 * HOP           # (DC, H): decoder layer-1 content weights
W2_ROW = 2 * HOP + DC       # (H, LANES): decoder layer-2 weights
W_ROWS = 2 * HOP + DC + H   # 352 rows total (multiple of 16)


# ---------------------------------------------------------------------------
# Fused Pallas kernel (one frame block per grid step, weights resident)
# ---------------------------------------------------------------------------
def _streamvc_kernel(frames_ref,   # (TM, HOP)    bf16   gridded frame block
                     wslab_ref,    # (352, 128)   bf16   resident weight slab
                     bslab_ref,    # (8, 128)     f32    resident bias slab
                     out_ref):     # (TM, HOP_OUT) f32
    x = frames_ref[...]                                     # (TM, HOP) bf16
    b = bslab_ref[...]                                      # (8, 128)  f32

    w_a = wslab_ref[W_A_ROW:W_A_ROW + HOP, :]               # (HOP, 128)
    w_e = wslab_ref[W_E_ROW:W_E_ROW + HOP, :]               # (HOP, 128)
    w1_c = wslab_ref[W1C_ROW:W1C_ROW + DC, :H]              # (DC, H)
    w2 = wslab_ref[W2_ROW:W2_ROW + H, :]                    # (H, 128)

    # ---- fused content encoder + lane-replicated f0 projection (one MXU pass)
    y = jnp.dot(x, w_a, preferred_element_type=jnp.float32) + b[0:1, :]
    content = jnp.tanh(y[:, :DC])                           # (TM, DC)
    f0b = jax.nn.sigmoid(y[:, F0_OFF:F0_OFF + H])           # (TM, H) lane-wide

    # ---- energy estimator on the MXU: mean(x^2) replicated across H lanes --
    esq = jnp.dot(x * x, w_e, preferred_element_type=jnp.float32)[:, :H]
    energyb = jnp.sqrt(esq + 1e-6)                          # (TM, H) lane-wide

    # ---- decoder layer 1: cat([content, f0, energy, target]) @ W1 ----------
    # decomposed as content@W1_c + f0*w1_f0 + energy*w1_e + b1_eff, where the
    # constant target term (target_latent @ W1_t) is folded into b1_eff.
    h = jnp.dot(content.astype(jnp.bfloat16), w1_c,
                preferred_element_type=jnp.float32)
    h = jnp.tanh(h + f0b * b[1:2, :H] + energyb * b[2:3, :H] + b[3:4, :H])

    # ---- decoder layer 2 -> waveform frame (lane-dense 128-wide store) -----
    y2 = jnp.dot(h.astype(jnp.bfloat16), w2, preferred_element_type=jnp.float32)
    out_ref[...] = jnp.tanh(y2[:, :HOP_OUT] + b[4:5, :HOP_OUT])


# ---------------------------------------------------------------------------
# Wrapper: operand packing + grid setup
# ---------------------------------------------------------------------------
def _pad_row(r, width=LANES):
    return jnp.pad(r, ((0, 0), (0, width - r.shape[1])))


def _pick_block(n):
    for tm in (512, 256, 128, 64, 32, 16, 8):
        if n % tm == 0:
            return tm
    return n


def _build_weight_slabs(params, target_latent):
    f32 = jnp.float32
    # bf16 matmul-weight slab (all sub-matrix row offsets are 16-aligned).
    w_a = jnp.zeros((HOP, LANES), f32)
    w_a = w_a.at[:, :DC].set(params["w_enc"])
    w_a = w_a.at[:, F0_OFF:F0_OFF + H].set(
        jnp.broadcast_to(params["w_f0"], (HOP, H)))
    w_e = jnp.zeros((HOP, LANES), f32).at[:, :H].set(1.0 / HOP)
    w1_c = jnp.zeros((DC, LANES), f32).at[:, :H].set(params["w1_c"])
    w2 = jnp.zeros((H, LANES), f32).at[:, :HOP_OUT].set(params["w2"])
    wslab = jnp.concatenate([w_a, w_e, w1_c, w2], axis=0).astype(jnp.bfloat16)
    assert wslab.shape == (W_ROWS, LANES)

    # f32 bias slab, padded to a full (8,128) sublane tile.
    b_a = jnp.zeros((1, LANES), f32)
    b_a = b_a.at[:, :DC].set(params["b_enc"])
    b_a = b_a.at[:, F0_OFF:F0_OFF + H].set(
        jnp.broadcast_to(params["b_f0"], (1, H)))
    b1_eff = params["b1"] + target_latent @ params["w1_t"]   # hoisted tgt term
    bslab = jnp.concatenate(
        [b_a,
         _pad_row(params["w1_f0"]),
         _pad_row(params["w1_e"]),
         _pad_row(b1_eff),
         _pad_row(params["b2"]),
         jnp.zeros((3, LANES), f32)], axis=0)                # (8, 128)
    return wslab, bslab


def streaming_streamvc_forward(source_speech_chunk, params, target_latent):
    """source_speech_chunk: (B, L) float32  ->  (B, (L//HOP)*HOP_OUT) float32."""
    bsz, length = source_speech_chunk.shape
    assert length % HOP == 0
    frames_per_item = length // HOP
    n_frames = bsz * frames_per_item
    frames = source_speech_chunk.reshape(n_frames, HOP).astype(jnp.bfloat16)

    wslab, bslab = _build_weight_slabs(params, target_latent)

    tm = _pick_block(n_frames)
    grid = (n_frames // tm,)

    out = pl.pallas_call(
        _streamvc_kernel,
        out_shape=jax.ShapeDtypeStruct((n_frames, HOP_OUT), jnp.float32),
        grid=grid,
        in_specs=[
            pl.BlockSpec((tm, HOP), lambda i: (i, 0)),
            # Constant block index -> weights DMA'd once, stay VMEM-resident.
            pl.BlockSpec((W_ROWS, LANES), lambda i: (0, 0)),
            pl.BlockSpec((8, LANES), lambda i: (0, 0)),
        ],
        out_specs=pl.BlockSpec((tm, HOP_OUT), lambda i: (i, 0)),
        compiler_params=pltpu.CompilerParams(
            dimension_semantics=("parallel",)),
    )(frames, wslab, bslab)

    return out.reshape(bsz, frames_per_item * HOP_OUT)


# ---------------------------------------------------------------------------
# Pure-JAX f32 reference (mirrors the PyTorch forward, incl. explicit concat)
# ---------------------------------------------------------------------------
def reference_forward(source_speech_chunk, params, target_latent):
    bsz = source_speech_chunk.shape[0]
    frames = source_speech_chunk.reshape(-1, HOP)
    content = jnp.tanh(frames @ params["w_enc"] + params["b_enc"])
    f0 = jax.nn.sigmoid(frames @ params["w_f0"] + params["b_f0"])
    energy = jnp.sqrt(jnp.mean(frames * frames, axis=-1, keepdims=True) + 1e-6)
    feats = jnp.concatenate([content, f0, energy], axis=-1)
    tgt = jnp.broadcast_to(target_latent, (feats.shape[0], DT))
    cond = jnp.concatenate([feats, tgt], axis=-1)
    w1 = jnp.concatenate(
        [params["w1_c"], params["w1_f0"], params["w1_e"], params["w1_t"]],
        axis=0)
    h = jnp.tanh(cond @ w1 + params["b1"])
    y = jnp.tanh(h @ params["w2"] + params["b2"])
    return y.reshape(bsz, -1)


# ---------------------------------------------------------------------------
# Deterministic parameter / input construction
# ---------------------------------------------------------------------------
def make_params(key):
    ks = jax.random.split(key, 10)
    s = lambda fan_in: 1.0 / jnp.sqrt(jnp.float32(fan_in))
    return {
        "w_enc": jax.random.normal(ks[0], (HOP, DC), jnp.float32) * s(HOP),
        "b_enc": jax.random.normal(ks[1], (1, DC), jnp.float32) * 0.01,
        "w_f0":  jax.random.normal(ks[2], (HOP, 1), jnp.float32) * s(HOP),
        "b_f0":  jax.random.normal(ks[3], (1, 1), jnp.float32) * 0.01,
        "w1_c":  jax.random.normal(ks[4], (DC, H), jnp.float32) * s(DC + 2 + DT),
        "w1_f0": jax.random.normal(ks[5], (1, H), jnp.float32) * s(DC + 2 + DT),
        "w1_e":  jax.random.normal(ks[6], (1, H), jnp.float32) * s(DC + 2 + DT),
        "w1_t":  jax.random.normal(ks[7], (DT, H), jnp.float32) * s(DC + 2 + DT),
        "b1":    jnp.zeros((1, H), jnp.float32),
        "w2":    jax.random.normal(ks[8], (H, HOP_OUT), jnp.float32) * s(H),
        "b2":    jnp.zeros((1, HOP_OUT), jnp.float32),
    }


if __name__ == "__main__":
    root = jax.random.PRNGKey(0)
    k_in, k_par, k_tgt = jax.random.split(root, 3)

    # Source streaming audio chunks: (B, L) with L = T * HOP samples.
    source_speech_chunk = jax.random.normal(k_in, (B, T * HOP), jnp.float32)

    params = make_params(k_par)

    # target_latent = speech_pooling(speech_encoder(target_speech)) computed
    # once at module construction; synthesized deterministically here.
    target_latent = jax.random.normal(k_tgt, (1, DT), jnp.float32)

    fwd = jax.jit(functools.partial(streaming_streamvc_forward, params=params,
                                    target_latent=target_latent))
    out = jax.block_until_ready(fwd(source_speech_chunk))

    ref = reference_forward(source_speech_chunk, params, target_latent)
    assert out.shape == (B, T * HOP_OUT)
    max_err = float(jnp.max(jnp.abs(out - ref)))
    # bf16 inputs with f32 accumulation: ~1e-2 abs expected after two tanh layers.
    assert max_err < 5e-2, max_err

    print("KERNEL_OK")
</pallas_src>

<mosaic_0001>
module attributes {stable_mosaic.version = 11 : i64} {
  func.func @_streamvc_kernel(%arg0: i32, %arg1: memref<512x128xbf16, #tpu.memory_space<vmem>>, %arg2: memref<352x128xbf16, #tpu.memory_space<vmem>>, %arg3: memref<8x128xf32, #tpu.memory_space<vmem>>, %arg4: memref<512x128xf32, #tpu.memory_space<vmem>>) attributes {dimension_semantics = [#tpu.dimension_semantics<parallel>], iteration_bounds = array<i64: 2>, scalar_prefetch = 0 : i64, scratch_operands = 0 : i64, tpu.core_type = #tpu.core_type<tc>, window_params = [{transform_indices = @transform_0, window_bounds = array<i64: 512, 128>}, {pipeline_mode = #tpu.pipeline_mode<synchronous>, transform_indices = @transform_1, window_bounds = array<i64: 352, 128>}, {pipeline_mode = #tpu.pipeline_mode<synchronous>, transform_indices = @transform_2, window_bounds = array<i64: 8, 128>}, {transform_indices = @transform_3, window_bounds = array<i64: 512, 128>}]} {
    %c0 = arith.constant 0 : index
    %c0_0 = arith.constant 0 : index
    %0 = vector.load %arg1[%c0, %c0_0] : memref<512x128xbf16, #tpu.memory_space<vmem>>, vector<512x128xbf16>
    %c0_1 = arith.constant 0 : index
    %c0_2 = arith.constant 0 : index
    %1 = vector.load %arg3[%c0_1, %c0_2] : memref<8x128xf32, #tpu.memory_space<vmem>>, vector<8x128xf32>
    %c0_3 = arith.constant 0 : index
    %c0_4 = arith.constant 0 : index
    %2 = vector.load %arg2[%c0_3, %c0_4] : memref<352x128xbf16, #tpu.memory_space<vmem>>, vector<128x128xbf16>
    %c128 = arith.constant 128 : index
    %c0_5 = arith.constant 0 : index
    %3 = vector.load %arg2[%c128, %c0_5] : memref<352x128xbf16, #tpu.memory_space<vmem>>, vector<128x128xbf16>
    %c256 = arith.constant 256 : index
    %c0_6 = arith.constant 0 : index
    %4 = vector.load %arg2[%c256, %c0_6] : memref<352x128xbf16, #tpu.memory_space<vmem>>, vector<32x64xbf16>
    %c288 = arith.constant 288 : index
    %c0_7 = arith.constant 0 : index
    %5 = vector.load %arg2[%c288, %c0_7] : memref<352x128xbf16, #tpu.memory_space<vmem>>, vector<64x128xbf16>
    %cst = arith.constant dense<0.000000e+00> : vector<512x128xf32>
    %6 = tpu.matmul %0, %2, %cst {dimension_numbers = #tpu.dot_dimension_numbers<[1], [0], [0], [1], [0, 0, 1, 1], [], []>} : vector<512x128xbf16>, vector<128x128xbf16>, vector<512x128xf32> -> vector<512x128xf32>
    %7 = vector.extract_strided_slice %1 {offsets = [0, 0], sizes = [1, 128], strides = [1, 1]} : vector<8x128xf32> to vector<1x128xf32>
    %8 = vector.broadcast %7 : vector<1x128xf32> to vector<512x128xf32>
    %9 = arith.addf %6, %8 : vector<512x128xf32>
    %10 = vector.extract_strided_slice %9 {offsets = [0, 0], sizes = [512, 32], strides = [1, 1]} : vector<512x128xf32> to vector<512x32xf32>
    %11 = math.tanh %10 : vector<512x32xf32>
    %12 = vector.extract_strided_slice %9 {offsets = [0, 64], sizes = [512, 64], strides = [1, 1]} : vector<512x128xf32> to vector<512x64xf32>
    %13 = arith.negf %12 : vector<512x64xf32>
    %14 = math.exp %13 : vector<512x64xf32>
    %cst_8 = arith.constant 1.000000e+00 : f32
    %15 = vector.broadcast %cst_8 : f32 to vector<512x64xf32>
    %16 = arith.addf %15, %14 : vector<512x64xf32>
    %17 = arith.divf %15, %16 : vector<512x64xf32>
    %18 = arith.mulf %0, %0 : vector<512x128xbf16>
    %cst_9 = arith.constant dense<0.000000e+00> : vector<512x128xf32>
    %19 = tpu.matmul %18, %3, %cst_9 {dimension_numbers = #tpu.dot_dimension_numbers<[1], [0], [0], [1], [0, 0, 1, 1], [], []>} : vector<512x128xbf16>, vector<128x128xbf16>, vector<512x128xf32> -> vector<512x128xf32>
    %20 = vector.extract_strided_slice %19 {offsets = [0, 0], sizes = [512, 64], strides = [1, 1]} : vector<512x128xf32> to vector<512x64xf32>
    %cst_10 = arith.constant 9.99999997E-7 : f32
    %21 = vector.broadcast %cst_10 : f32 to vector<512x64xf32>
    %22 = arith.addf %20, %21 : vector<512x64xf32>
    %23 = math.sqrt %22 : vector<512x64xf32>
    %24 = arith.truncf %11 : vector<512x32xf32> to vector<512x32xbf16>
    %cst_11 = arith.constant dense<0.000000e+00> : vector<512x64xf32>
    %25 = tpu.matmul %24, %4, %cst_11 {dimension_numbers = #tpu.dot_dimension_numbers<[1], [0], [0], [1], [0, 0, 1, 1], [], []>} : vector<512x32xbf16>, vector<32x64xbf16>, vector<512x64xf32> -> vector<512x64xf32>
    %26 = vector.extract_strided_slice %1 {offsets = [1, 0], sizes = [1, 64], strides = [1, 1]} : vector<8x128xf32> to vector<1x64xf32>
    %27 = vector.broadcast %26 : vector<1x64xf32> to vector<512x64xf32>
    %28 = arith.mulf %17, %27 : vector<512x64xf32>
    %29 = arith.addf %25, %28 : vector<512x64xf32>
    %30 = vector.extract_strided_slice %1 {offsets = [2, 0], sizes = [1, 64], strides = [1, 1]} : vector<8x128xf32> to vector<1x64xf32>
    %31 = vector.broadcast %30 : vector<1x64xf32> to vector<512x64xf32>
    %32 = arith.mulf %23, %31 : vector<512x64xf32>
    %33 = arith.addf %29, %32 : vector<512x64xf32>
    %34 = vector.extract_strided_slice %1 {offsets = [3, 0], sizes = [1, 64], strides = [1, 1]} : vector<8x128xf32> to vector<1x64xf32>
    %35 = vector.broadcast %34 : vector<1x64xf32> to vector<512x64xf32>
    %36 = arith.addf %33, %35 : vector<512x64xf32>
    %37 = math.tanh %36 : vector<512x64xf32>
    %38 = arith.truncf %37 : vector<512x64xf32> to vector<512x64xbf16>
    %cst_12 = arith.constant dense<0.000000e+00> : vector<512x128xf32>
    %39 = tpu.matmul %38, %5, %cst_12 {dimension_numbers = #tpu.dot_dimension_numbers<[1], [0], [0], [1], [0, 0, 1, 1], [], []>} : vector<512x64xbf16>, vector<64x128xbf16>, vector<512x128xf32> -> vector<512x128xf32>
    %40 = vector.extract_strided_slice %1 {offsets = [4, 0], sizes = [1, 128], strides = [1, 1]} : vector<8x128xf32> to vector<1x128xf32>
    %41 = vector.broadcast %40 : vector<1x128xf32> to vector<512x128xf32>
    %42 = arith.addf %39, %41 : vector<512x128xf32>
    %43 = math.tanh %42 : vector<512x128xf32>
    %c0_13 = arith.constant 0 : index
    %c0_14 = arith.constant 0 : index
    %44 = vector.load %arg4[%c0_13, %c0_14] : memref<512x128xf32, #tpu.memory_space<vmem>>, vector<512x128xf32>
    tpu.vector_store %arg4[%c0_13, %c0_14], %43 {strides = array<i32>} : memref<512x128xf32, #tpu.memory_space<vmem>>, vector<512x128xf32>,
    return
  }
  func.func @transform_0(%arg0: i32) -> (i32, i32) {
    %c0_i32 = arith.constant 0 : i32
    %c0_i32_0 = arith.constant 0 : i32
    return %arg0, %c0_i32 : i32, i32
  }
  func.func @transform_1(%arg0: i32) -> (i32, i32) {
    %c0_i32 = arith.constant 0 : i32
    %c0_i32_0 = arith.constant 0 : i32
    %c0_i32_1 = arith.constant 0 : i32
    return %c0_i32, %c0_i32_0 : i32, i32
  }
  func.func @transform_2(%arg0: i32) -> (i32, i32) {
    %c0_i32 = arith.constant 0 : i32
    %c0_i32_0 = arith.constant 0 : i32
    %c0_i32_1 = arith.constant 0 : i32
    return %c0_i32, %c0_i32_0 : i32, i32
  }
  func.func @transform_3(%arg0: i32) -> (i32, i32) {
    %c0_i32 = arith.constant 0 : i32
    %c0_i32_0 = arith.constant 0 : i32
    return %arg0, %c0_i32 : i32, i32
  }
}

</mosaic_0001>

<llo_original>
// kernel: streaming_streamvc_forward.1
$region0: #{streaming_streamvc_forward.1}
  #allocation0 [shape = 'u32[]', space=smem, size = 0x4, offset = 0x4, fixed_abs, tag = 'smem constant byte address 0x4 - core index']
  #allocation1 [shape = 'u32[144,128]{1,0:T(1,128)}', space=vmem, size = 0x12000, scoped, tag = 'internal scratch']
  %s0 = inlined_call_operand.vmem [shape: bf16[1024,128], index: 0, kind: input, shape index: {}]
  %s1 = inlined_call_operand.vmem [shape: bf16[352,128], index: 1, kind: input, shape index: {}]
  %s2 = inlined_call_operand.vmem [shape: f32[8,128], index: 2, kind: input, shape index: {}]
  %s3 = inlined_call_operand.vmem [shape: f32[1024,128], index: 3, kind: output, shape index: {}]
  %s4 = sld [smem:[#allocation0]]
  $region45: #{streaming_streamvc_forward.1} parent=0
    _
  %s6 = ssub.s32 1, %s4
  %s7 = scalar_select 0, %s6, %s4
  loop: start=0, step=1, limit=4
  $region2: #{streaming_streamvc_forward.1} parent=0 // loop_pre_header
    _
  $region3: #{streaming_streamvc_forward.1} parent=0 // loop_header
    %s9 = sphi 0, %s13
    %p10 = scmp.ge.s32.totalorder %s9, 4
    %s19 = sphi 0, %s21
    %s22 = sphi 0, %s19
    %s23 = sphi 0, %s22
    %s39 = sphi 0, %s23
    %s43 = sphi 0, %s43
    %s45 = sphi 0, %s43
    %s46 = sphi 0, %s45
    %s60 = sphi 0, %s46
    %s64 = sphi 0, %s64
    %s66 = sphi 0, %s64
    %s67 = sphi 0, %s66
    %s81 = sphi 0, %s67
    %s87 = sphi 0, %s89
    %s90 = sphi 0, %s87
    %s91 = sphi 0, %s90
    %s107 = sphi 0, %s91
  $region4: #{streaming_streamvc_forward.1} parent=0 // loop_header_branch
    %12 = sbr.rel (%p10) target = $region8
  $region5: #{streaming_streamvc_forward.1} parent=0 // loop_body
    %s14 = ssub.s32 %s9, 1
    %s15 = ssub.s32 %s9, 2
    %s16 = sadd.s32 %s9, 1
    %s17 = ssub.s32 %s9, %s16
    %p18 = scmp.eq.s32.totalorder %s17, 0
    %s20 = sadd.s32 %s19, 1
    %s21 = scalar_select %p18, %s19, %s20
    %p24 = pneg %p18
    %p25 = scmp.eq.s32.totalorder %s9, 1
    %p26 = por %p24, %p25
    %p27 = scmp.ne.s32.totalorder %s19, %s22
    %p28 = scmp.eq.s32.totalorder %s9, 0
    %p29 = por %p27, %p28
    %p30 = scmp.ne.s32.totalorder %s19, %s22
    %p31 = scmp.eq.s32.totalorder %s14, 1
    %p32 = por %p30, %p31
    %p33 = scmp.ne.s32.totalorder %s22, %s23
    %p34 = scmp.eq.s32.totalorder %s14, 0
    %p35 = por %p33, %p34
    %p36 = scmp.ne.s32.totalorder %s22, %s23
    %p37 = scmp.eq.s32.totalorder %s15, 1
    %p38 = por %p36, %p37
    %p40 = scmp.ne.s32.totalorder %s23, %s39
    %p41 = scmp.eq.s32.totalorder %s15, 0
    %p42 = por %p40, %p41
    %s44 = sadd.s32 %s43, 1
    %p47 = scmp.eq.s32.totalorder %s9, 1
    %p48 = scmp.ne.s32.totalorder %s43, %s45
    %p49 = scmp.eq.s32.totalorder %s9, 0
    %p50 = por %p48, %p49
    %p51 = scmp.ne.s32.totalorder %s43, %s45
    %p52 = scmp.eq.s32.totalorder %s14, 1
    %p53 = por %p51, %p52
    %p54 = scmp.ne.s32.totalorder %s45, %s46
    %p55 = scmp.eq.s32.totalorder %s14, 0
    %p56 = por %p54, %p55
    %p57 = scmp.ne.s32.totalorder %s45, %s46
    %p58 = scmp.eq.s32.totalorder %s15, 1
    %p59 = por %p57, %p58
    %p61 = scmp.ne.s32.totalorder %s46, %s60
    %p62 = scmp.eq.s32.totalorder %s15, 0
    %p63 = por %p61, %p62
    %s65 = sadd.s32 %s64, 1
    %p68 = scmp.eq.s32.totalorder %s9, 1
    %p69 = scmp.ne.s32.totalorder %s64, %s66
    %p70 = scmp.eq.s32.totalorder %s9, 0
    %p71 = por %p69, %p70
    %p72 = scmp.ne.s32.totalorder %s64, %s66
    %p73 = scmp.eq.s32.totalorder %s14, 1
    %p74 = por %p72, %p73
    %p75 = scmp.ne.s32.totalorder %s66, %s67
    %p76 = scmp.eq.s32.totalorder %s14, 0
    %p77 = por %p75, %p76
    %p78 = scmp.ne.s32.totalorder %s66, %s67
    %p79 = scmp.eq.s32.totalorder %s15, 1
    %p80 = por %p78, %p79
    %p82 = scmp.ne.s32.totalorder %s67, %s81
    %p83 = scmp.eq.s32.totalorder %s15, 0
    %p84 = por %p82, %p83
    %s85 = ssub.s32 %s9, %s16
    %p86 = scmp.eq.s32.totalorder %s85, 0
    %s88 = sadd.s32 %s87, 1
    %s89 = scalar_select %p86, %s87, %s88
    %p92 = pneg %p86
    %p93 = scmp.eq.s32.totalorder %s9, 1
    %p94 = por %p92, %p93
    %p95 = scmp.ne.s32.totalorder %s87, %s90
    %p96 = scmp.eq.s32.totalorder %s9, 0
    %p97 = por %p95, %p96
    %p98 = scmp.ne.s32.totalorder %s87, %s90
    %p99 = scmp.eq.s32.totalorder %s14, 1
    %p100 = por %p98, %p99
    %p101 = scmp.ne.s32.totalorder %s90, %s91
    %p102 = scmp.eq.s32.totalorder %s14, 0
    %p103 = por %p101, %p102
    %p104 = scmp.ne.s32.totalorder %s90, %s91
    %p105 = scmp.eq.s32.totalorder %s15, 1
    %p106 = por %p104, %p105
    %p108 = scmp.ne.s32.totalorder %s91, %s107
    %p109 = scmp.eq.s32.totalorder %s15, 0
    %p110 = por %p108, %p109
    %p111 = scmp.le.s32.totalorder 1, %s9
    %p112 = scmp.lt.s32.totalorder %s9, 3
    %p113 = pnand %p111, %p112
    %p114 = pneg %p113
    // Predicated region
    $region9: #{streaming_streamvc_forward.1} parent=5 // pred_check
      _
    $region10: #{streaming_streamvc_forward.1} parent=5 // pred_check_branch
      %116 = sbr.rel (%p113) target = $region12
    $region11: #{streaming_streamvc_forward.1} parent=5 // pred_region
      %s117 = ssub.s32 %s9, 1
      // Predicated region
      $region13: #{streaming_streamvc_forward.1} parent=11 // pred_check
        %p118 = pneg %p56
      $region14: #{streaming_streamvc_forward.1} parent=11 // pred_check_branch
        %120 = sbr.rel (%p118) target = $region16
      $region15: #{streaming_streamvc_forward.1} parent=11 // pred_region
        _
      $region16: #{streaming_streamvc_forward.1} parent=11 // pred_fallthru
        _
      // Predicated region
      $region17: #{streaming_streamvc_forward.1} parent=11 // pred_check
        %p121 = pneg %p77
      $region18: #{streaming_streamvc_forward.1} parent=11 // pred_check_branch
        %123 = sbr.rel (%p121) target = $region20
      $region19: #{streaming_streamvc_forward.1} parent=11 // pred_region
        _
      $region20: #{streaming_streamvc_forward.1} parent=11 // pred_fallthru
        _
    $region12: #{streaming_streamvc_forward.1} parent=5 // pred_fallthru
      _
    %p124 = scmp.lt.s32.totalorder %s9, 2
    // Predicated region
    $region21: #{streaming_streamvc_forward.1} parent=5 // pred_check
      %p125 = pneg %p124
    $region22: #{streaming_streamvc_forward.1} parent=5 // pred_check_branch
      %127 = sbr.rel (%p125) target = $region24
    $region23: #{streaming_streamvc_forward.1} parent=5 // pred_region
      // Predicated region
      $region25: #{streaming_streamvc_forward.1} parent=23 // pred_check
        %p128 = pneg %p29
      $region26: #{streaming_streamvc_forward.1} parent=23 // pred_check_branch
        %130 = sbr.rel (%p128) target = $region28
      $region27: #{streaming_streamvc_forward.1} parent=23 // pred_region
        %s131 = smul.u32 64, %s9
        %p132 = scmp.lt.s32.totalorder %s131, 127
        %s133 = scalar_select %p132, %s131, 127
        %s134 = smul.addr %s133, 4
        %s135 = scalar_lea.vmem %s0, %s134
        %s136 = smul.u32 64, %s9
      $region28: #{streaming_streamvc_forward.1} parent=23 // pred_fallthru
        _
    $region24: #{streaming_streamvc_forward.1} parent=5 // pred_fallthru
      _
    %p137 = scmp.le.s32.totalorder 1, %s9
    %p138 = scmp.lt.s32.totalorder %s9, 3
    %p139 = pnand %p137, %p138
    %p140 = pneg %p139
    // Predicated region
    $region29: #{streaming_streamvc_forward.1} parent=5 // pred_check
      _
    $region30: #{streaming_streamvc_forward.1} parent=5 // pred_check_branch
      %142 = sbr.rel (%p139) target = $region32
    $region31: #{streaming_streamvc_forward.1} parent=5 // pred_region
      %s143 = ssub.s32 %s9, 1
      %s144 = smul.u32 64, %s14
      %p145 = scmp.lt.s32.totalorder %s144, 127
      %s146 = scalar_select %p145, %s144, 127
      %s147 = smul.addr %s146, 4
      %s148 = scalar_lea.vmem %s0, %s147
      %p149 = pneg %p35
      %p150 = pneg %p32
      %p151 = pneg %p56
      %p152 = pneg %p53
      %p153 = pneg %p77
      %p154 = pneg %p74
      %p155 = pneg %p103
      %p156 = pneg %p100
      %s157 = smul.u32 64, %s14
      %p158 = scmp.lt.s32.totalorder %s157, 127
      %s159 = scalar_select %p158, %s157, 127
      %s160 = smul.addr %s159, 8
      %s161 = scalar_lea.vmem %s3, %s160
      %s162 = smul.u32 64, %s14
      %p163 = scmp.lt.s32.totalorder %s162, 127
      %s164 = scalar_select %p163, %s162, 127
      %s165 = smul.addr %s164, 4
      %s166 = scalar_lea.vmem %s0, %s165
      %s167 = smul.u32 64, %s14
      %s168 = smul.u32 64, %s14
      %p169 = scmp.lt.s32.totalorder %s168, 127
      %s170 = scalar_select %p169, %s168, 127
      %s171 = smul.addr %s170, 8
      %s172 = scalar_lea.vmem %s3, %s171
      %s173 = smul.u32 64, %s14
      %v175 = vld [vmem:[%s166] sm:$0xf]
      %v176 = vld [vmem:[%s166 + $0x4] sm:$0xf]
      %v177 = vld [vmem:[%s166 + $0x8] sm:$0xf]
      %v178 = vld [vmem:[%s166 + $0xc] sm:$0xf]
      %v179 = vld [vmem:[%s166 + $0x10] sm:$0xf]
      %v180 = vld [vmem:[%s166 + $0x14] sm:$0xf]
      %v181 = vld [vmem:[%s166 + $0x18] sm:$0xf]
      %v182 = vld [vmem:[%s166 + $0x1c] sm:$0xf]
      %v183 = vld [vmem:[%s166 + $0x20] sm:$0xf]
      %v184 = vld [vmem:[%s166 + $0x24] sm:$0xf]
      %v185 = vld [vmem:[%s166 + $0x28] sm:$0xf]
      %v186 = vld [vmem:[%s166 + $0x2c] sm:$0xf]
      %v187 = vld [vmem:[%s166 + $0x30] sm:$0xf]
      %v188 = vld [vmem:[%s166 + $0x34] sm:$0xf]
      %v189 = vld [vmem:[%s166 + $0x38] sm:$0xf]
      %v190 = vld [vmem:[%s166 + $0x3c] sm:$0xf]
      %v191 = vld [vmem:[%s166 + $0x40] sm:$0xf]
      %v192 = vld [vmem:[%s166 + $0x44] sm:$0xf]
      %v193 = vld [vmem:[%s166 + $0x48] sm:$0xf]
      %v194 = vld [vmem:[%s166 + $0x4c] sm:$0xf]
      %v195 = vld [vmem:[%s166 + $0x50] sm:$0xf]
      %v196 = vld [vmem:[%s166 + $0x54] sm:$0xf]
      %v197 = vld [vmem:[%s166 + $0x58] sm:$0xf]
      %v198 = vld [vmem:[%s166 + $0x5c] sm:$0xf]
      %v199 = vld [vmem:[%s166 + $0x60] sm:$0xf]
      %v200 = vld [vmem:[%s166 + $0x64] sm:$0xf]
      %v201 = vld [vmem:[%s166 + $0x68] sm:$0xf]
      %v202 = vld [vmem:[%s166 + $0x6c] sm:$0xf]
      %v203 = vld [vmem:[%s166 + $0x70] sm:$0xf]
      %v204 = vld [vmem:[%s166 + $0x74] sm:$0xf]
      %v205 = vld [vmem:[%s166 + $0x78] sm:$0xf]
      %v206 = vld [vmem:[%s166 + $0x7c] sm:$0xf]
      %v207 = vld [vmem:[%s166 + $0x80] sm:$0xf]
      %v208 = vld [vmem:[%s166 + $0x84] sm:$0xf]
      %v209 = vld [vmem:[%s166 + $0x88] sm:$0xf]
      %v210 = vld [vmem:[%s166 + $0x8c] sm:$0xf]
      %v211 = vld [vmem:[%s166 + $0x90] sm:$0xf]
      %v212 = vld [vmem:[%s166 + $0x94] sm:$0xf]
      %v213 = vld [vmem:[%s166 + $0x98] sm:$0xf]
      %v214 = vld [vmem:[%s166 + $0x9c] sm:$0xf]
      %v215 = vld [vmem:[%s166 + $0xa0] sm:$0xf]
      %v216 = vld [vmem:[%s166 + $0xa4] sm:$0xf]
      %v217 = vld [vmem:[%s166 + $0xa8] sm:$0xf]
      %v218 = vld [vmem:[%s166 + $0xac] sm:$0xf]
      %v219 = vld [vmem:[%s166 + $0xb0] sm:$0xf]
      %v220 = vld [vmem:[%s166 + $0xb4] sm:$0xf]
      %v221 = vld [vmem:[%s166 + $0xb8] sm:$0xf]
      %v222 = vld [vmem:[%s166 + $0xbc] sm:$0xf]
      %v223 = vld [vmem:[%s166 + $0xc0] sm:$0xf]
      %v224 = vld [vmem:[%s166 + $0xc4] sm:$0xf]
      %v225 = vld [vmem:[%s166 + $0xc8] sm:$0xf]
      %v226 = vld [vmem:[%s166 + $0xcc] sm:$0xf]
      %v227 = vld [vmem:[%s166 + $0xd0] sm:$0xf]
      %v228 = vld [vmem:[%s166 + $0xd4] sm:$0xf]
      %v229 = vld [vmem:[%s166 + $0xd8] sm:$0xf]
      %v230 = vld [vmem:[%s166 + $0xdc] sm:$0xf]
      %v231 = vld [vmem:[%s166 + $0xe0] sm:$0xf]
      %v232 = vld [vmem:[%s166 + $0xe4] sm:$0xf]
      %v233 = vld [vmem:[%s166 + $0xe8] sm:$0xf]
      %v234 = vld [vmem:[%s166 + $0xec] sm:$0xf]
      %v235 = vld [vmem:[%s166 + $0xf0] sm:$0xf]
      %v236 = vld [vmem:[%s166 + $0xf4] sm:$0xf]
      %v237 = vld [vmem:[%s166 + $0xf8] sm:$0xf]
      %v238 = vld [vmem:[%s166 + $0xfc] sm:$0xf]
      %v239 = vld [vmem:[%s2] sm:$0xff]
      %v240 = vld [vmem:[%s1] sm:$0xf]
      %v241 = vld [vmem:[%s1 + $0x4] sm:$0xf]
      %v242 = vld [vmem:[%s1 + $0x8] sm:$0xf]
      %v243 = vld [vmem:[%s1 + $0xc] sm:$0xf]
      %v244 = vld [vmem:[%s1 + $0x10] sm:$0xf]
      %v245 = vld [vmem:[%s1 + $0x14] sm:$0xf]
      %v246 = vld [vmem:[%s1 + $0x18] sm:$0xf]
      %v247 = vld [vmem:[%s1 + $0x1c] sm:$0xf]
      %v248 = vld [vmem:[%s1 + $0x20] sm:$0xf]
      %v249 = vld [vmem:[%s1 + $0x24] sm:$0xf]
      %v250 = vld [vmem:[%s1 + $0x28] sm:$0xf]
      %v251 = vld [vmem:[%s1 + $0x2c] sm:$0xf]
      %v252 = vld [vmem:[%s1 + $0x30] sm:$0xf]
      %v253 = vld [vmem:[%s1 + $0x34] sm:$0xf]
      %v254 = vld [vmem:[%s1 + $0x38] sm:$0xf]
      %v255 = vld [vmem:[%s1 + $0x3c] sm:$0xf]
      %v256 = vld [vmem:[%s1 + $0x40] sm:$0xf]
      %v257 = vld [vmem:[%s1 + $0x44] sm:$0xf]
      %v258 = vld [vmem:[%s1 + $0x48] sm:$0xf]
      %v259 = vld [vmem:[%s1 + $0x4c] sm:$0xf]
      %v260 = vld [vmem:[%s1 + $0x50] sm:$0xf]
      %v261 = vld [vmem:[%s1 + $0x54] sm:$0xf]
      %v262 = vld [vmem:[%s1 + $0x58] sm:$0xf]
      %v263 = vld [vmem:[%s1 + $0x5c] sm:$0xf]
      %v264 = vld [vmem:[%s1 + $0x60] sm:$0xf]
      %v265 = vld [vmem:[%s1 + $0x64] sm:$0xf]
      %v266 = vld [vmem:[%s1 + $0x68] sm:$0xf]
      %v267 = vld [vmem:[%s1 + $0x6c] sm:$0xf]
      %v268 = vld [vmem:[%s1 + $0x70] sm:$0xf]
      %v269 = vld [vmem:[%s1 + $0x74] sm:$0xf]
      %v270 = vld [vmem:[%s1 + $0x78] sm:$0xf]
      %v271 = vld [vmem:[%s1 + $0x7c] sm:$0xf]
      %v272 = vld [vmem:[%s1 + $0x80] sm:$0xf]
      %v273 = vld [vmem:[%s1 + $0x84] sm:$0xf]
      %v274 = vld [vmem:[%s1 + $0x88] sm:$0xf]
      %v275 = vld [vmem:[%s1 + $0x8c] sm:$0xf]
      %v276 = vld [vmem:[%s1 + $0x90] sm:$0xf]
      %v277 = vld [vmem:[%s1 + $0x94] sm:$0xf]
      %v278 = vld [vmem:[%s1 + $0x98] sm:$0xf]
      %v279 = vld [vmem:[%s1 + $0x9c] sm:$0xf]
      %v280 = vld [vmem:[%s1 + $0xa0] sm:$0xf]
      %v281 = vld [vmem:[%s1 + $0xa4] sm:$0xf]
      %v282 = vld [vmem:[%s1 + $0xa8] sm:$0xf]
      %v283 = vld [vmem:[%s1 + $0xac] sm:$0xf]
      %v284 = vlaneseq
      %v285 = vshrl.u32 %v284, 7
      %v286 = vsub.s32 0, %v285
      %v287 = vrot.slane %v239, %v286
      %v352 = vunpack.c.l.b16 %v175
      %v353 = vunpack.c.l.b16 %v176
      %v354 = vunpack.c.l.b16 %v177
      %v355 = vunpack.c.l.b16 %v178
      %v356 = vunpack.c.l.b16 %v179
      %v357 = vunpack.c.l.b16 %v180
      %v358 = vunpack.c.l.b16 %v181
      %v359 = vunpack.c.l.b16 %v182
      %v360 = vunpack.c.l.b16 %v183
      %v361 = vunpack.c.l.b16 %v184
      %v362 = vunpack.c.l.b16 %v185
      %v363 = vunpack.c.l.b16 %v186
      %v364 = vunpack.c.l.b16 %v187
      %v365 = vunpack.c.l.b16 %v188
      %v366 = vunpack.c.l.b16 %v189
      %v367 = vunpack.c.l.b16 %v190
      %v368 = vunpack.c.l.b16 %v191
      %v369 = vunpack.c.l.b16 %v192
      %v370 = vunpack.c.l.b16 %v193
      %v371 = vunpack.c.l.b16 %v194
      %v372 = vunpack.c.l.b16 %v195
      %v373 = vunpack.c.l.b16 %v196
      %v374 = vunpack.c.l.b16 %v197
      %v375 = vunpack.c.l.b16 %v198
      %v376 = vunpack.c.l.b16 %v199
      %v377 = vunpack.c.l.b16 %v200
      %v378 = vunpack.c.l.b16 %v201
      %v379 = vunpack.c.l.b16 %v202
      %v380 = vunpack.c.l.b16 %v203
      %v381 = vunpack.c.l.b16 %v204
      %v382 = vunpack.c.l.b16 %v205
      %v383 = vunpack.c.l.b16 %v206
      %v384 = vunpack.c.l.b16 %v207
      %v385 = vunpack.c.l.b16 %v208
      %v386 = vunpack.c.l.b16 %v209
      %v387 = vunpack.c.l.b16 %v210
      %v388 = vunpack.c.l.b16 %v211
      %v389 = vunpack.c.l.b16 %v212
      %v390 = vunpack.c.l.b16 %v213
      %v391 = vunpack.c.l.b16 %v214
      %v392 = vunpack.c.l.b16 %v215
      %v393 = vunpack.c.l.b16 %v216
      %v394 = vunpack.c.l.b16 %v217
      %v395 = vunpack.c.l.b16 %v218
      %v396 = vunpack.c.l.b16 %v219
      %v397 = vunpack.c.l.b16 %v220
      %v398 = vunpack.c.l.b16 %v221
      %v399 = vunpack.c.l.b16 %v222
      %v400 = vunpack.c.l.b16 %v223
      %v401 = vunpack.c.l.b16 %v224
      %v402 = vunpack.c.l.b16 %v225
      %v403 = vunpack.c.l.b16 %v226
      %v404 = vunpack.c.l.b16 %v227
      %v405 = vunpack.c.l.b16 %v228
      %v406 = vunpack.c.l.b16 %v229
      %v407 = vunpack.c.l.b16 %v230
      %v408 = vunpack.c.l.b16 %v231
      %v409 = vunpack.c.l.b16 %v232
      %v410 = vunpack.c.l.b16 %v233
      %v411 = vunpack.c.l.b16 %v234
      %v412 = vunpack.c.l.b16 %v235
      %v413 = vunpack.c.l.b16 %v236
      %v414 = vunpack.c.l.b16 %v237
      %v415 = vunpack.c.l.b16 %v238
      %v416 = vpack.c.b16 %v353, %v352
      %v417 = vpack.c.b16 %v355, %v354
      %v418 = vpack.c.b16 %v357, %v356
      %v419 = vpack.c.b16 %v359, %v358
      %v420 = vpack.c.b16 %v361, %v360
      %v421 = vpack.c.b16 %v363, %v362
      %v422 = vpack.c.b16 %v365, %v364
      %v423 = vpack.c.b16 %v367, %v366
      %v424 = vpack.c.b16 %v369, %v368
      %v425 = vpack.c.b16 %v371, %v370
      %v426 = vpack.c.b16 %v373, %v372
      %v427 = vpack.c.b16 %v375, %v374
      %v428 = vpack.c.b16 %v377, %v376
      %v429 = vpack.c.b16 %v379, %v378
      %v430 = vpack.c.b16 %v381, %v380
      %v431 = vpack.c.b16 %v383, %v382
      %v432 = vpack.c.b16 %v385, %v384
      %v433 = vpack.c.b16 %v387, %v386
      %v434 = vpack.c.b16 %v389, %v388
      %v435 = vpack.c.b16 %v391, %v390
      %v436 = vpack.c.b16 %v393, %v392
      %v437 = vpack.c.b16 %v395, %v394
      %v438 = vpack.c.b16 %v397, %v396
      %v439 = vpack.c.b16 %v399, %v398
      %v440 = vpack.c.b16 %v401, %v400
      %v441 = vpack.c.b16 %v403, %v402
      %v442 = vpack.c.b16 %v405, %v404
      %v443 = vpack.c.b16 %v407, %v406
      %v444 = vpack.c.b16 %v409, %v408
      %v445 = vpack.c.b16 %v411, %v410
      %v446 = vpack.c.b16 %v413, %v412
      %v447 = vpack.c.b16 %v415, %v414
      %v496 = vunpack.c.l.b16 %v240
      %v497 = vunpack.c.l.b16 %v241
      %v498 = vunpack.c.l.b16 %v242
      %v499 = vunpack.c.l.b16 %v243
      %v500 = vunpack.c.l.b16 %v244
      %v501 = vunpack.c.l.b16 %v245
      %v502 = vunpack.c.l.b16 %v246
      %v503 = vunpack.c.l.b16 %v247
      %v504 = vunpack.c.l.b16 %v248
      %v505 = vunpack.c.l.b16 %v249
      %v506 = vunpack.c.l.b16 %v250
      %v507 = vunpack.c.l.b16 %v251
      %v508 = vunpack.c.l.b16 %v252
      %v509 = vunpack.c.l.b16 %v253
      %v510 = vunpack.c.l.b16 %v254
      %v511 = vunpack.c.l.b16 %v255
      %v512 = vpack.c.b16 %v497, %v496
      %v513 = vpack.c.b16 %v499, %v498
      %v514 = vpack.c.b16 %v501, %v500
      %v515 = vpack.c.b16 %v503, %v502
      %v516 = vpack.c.b16 %v505, %v504
      %v517 = vpack.c.b16 %v507, %v506
      %v518 = vpack.c.b16 %v509, %v508
      %v519 = vpack.c.b16 %v511, %v510
      %528 = vmatprep.subr.bf16.mxu0 0
      %529 = vmatpush1.bf16.msra.mxu0 %v512
      %530 = vmatprep.subr.bf16.mxu0 0
      %531 = vmatpush1.bf16.msra.mxu0 %v513
      %532 = vmatprep.subr.bf16.mxu0 0
      %533 = vmatpush1.bf16.msra.mxu0 %v514
      %534 = vmatprep.subr.bf16.mxu0 0
      %535 = vmatpush1.bf16.msra.mxu0 %v515
      %536 = vmatprep.subr.bf16.mxu0 0
      %537 = vmatpush1.bf16.msra.mxu0 %v516
      %538 = vmatprep.subr.bf16.mxu0 0
      %539 = vmatpush1.bf16.msra.mxu0 %v517
      %540 = vmatprep.subr.bf16.mxu0 0
      %541 = vmatpush1.bf16.msra.mxu0 %v518
      %542 = vmatprep.subr.bf16.mxu0 0
      %543 = vmatpush1.bf16.msra.mxu0 %v519
      %544 = vmatprep.subr.bf16.mxu0 0
      %545 = vmatpush1.bf16.msra.mxu0 0
      %546 = vmatprep.subr.bf16.mxu0 0
      %547 = vmatpush1.bf16.msra.mxu0 0
      %548 = vmatprep.subr.bf16.mxu0 0
      %549 = vmatpush1.bf16.msra.mxu0 0
      %550 = vmatprep.subr.bf16.mxu0 0
      %551 = vmatpush1.bf16.msra.mxu0 0
      %552 = vmatprep.subr.bf16.mxu0 0
      %553 = vmatpush1.bf16.msra.mxu0 0
      %554 = vmatprep.subr.bf16.mxu0 0
      %555 = vmatpush1.bf16.msra.mxu0 0
      %556 = vmatprep.subr.bf16.mxu0 0
      %557 = vmatpush1.bf16.msra.mxu0 0
      %558 = vmatprep.subr.bf16.mxu0 0
      %559 = vmatpush1.bf16.msra.mxu0 0
      %560 = vmatprep.mubr.bf16.mxu0 0
      %561 = vmatmul.mubr.bf16.gmra.mrb[0].mxu0 %v416
      %v562 = vpop.f32.mrb[0].mxu0
      %v563 = vadd.f32 %v287, %v562
      %v564 = vpop.f32.mrb[0].mxu0
      %v565 = vpop.f32.mrb[0].mxu0
      %v566 = vadd.f32 %v287, %v565
      %v567 = vpop.f32.mrb[0].mxu0
      %568 = vmatprep.mubr.bf16.mxu0 0
      %569 = vmatmul.mubr.bf16.gmra.mrb[0].mxu0 %v417
      %v570 = vpop.f32.mrb[0].mxu0
      %v571 = vadd.f32 %v287, %v570
      %v572 = vpop.f32.mrb[0].mxu0
      %v573 = vpop.f32.mrb[0].mxu0
      %v574 = vadd.f32 %v287, %v573
      %v575 = vpop.f32.mrb[0].mxu0
      %576 = vmatprep.mubr.bf16.mxu0 0
      %577 = vmatmul.mubr.bf16.gmra.mrb[0].mxu0 %v418
      %v578 = vpop.f32.mrb[0].mxu0
      %v579 = vadd.f32 %v287, %v578
      %v580 = vpop.f32.mrb[0].mxu0
      %v581 = vpop.f32.mrb[0].mxu0
      %v582 = vadd.f32 %v287, %v581
      %v583 = vpop.f32.mrb[0].mxu0
      %584 = vmatprep.mubr.bf16.mxu0 0
      %585 = vmatmul.mubr.bf16.gmra.mrb[0].mxu0 %v419
      %v586 = vpop.f32.mrb[0].mxu0
      %v587 = vadd.f32 %v287, %v586
      %v588 = vpop.f32.mrb[0].mxu0
      %v589 = vpop.f32.mrb[0].mxu0
      %v590 = vadd.f32 %v287, %v589
      %v591 = vpop.f32.mrb[0].mxu0
      %592 = vmatprep.mubr.bf16.mxu0 0
      %593 = vmatmul.mubr.bf16.gmra.mrb[0].mxu0 %v420
      %v594 = vpop.f32.mrb[0].mxu0
      %v595 = vadd.f32 %v287, %v594
      %v596 = vpop.f32.mrb[0].mxu0
      %v597 = vpop.f32.mrb[0].mxu0
      %v598 = vadd.f32 %v287, %v597
      %v599 = vpop.f32.mrb[0].mxu0
      %600 = vmatprep.mubr.bf16.mxu0 0
      %601 = vmatmul.mubr.bf16.gmra.mrb[0].mxu0 %v421
      %v602 = vpop.f32.mrb[0].mxu0
      %v603 = vadd.f32 %v287, %v602
      %v604 = vpop.f32.mrb[0].mxu0
      %v605 = vpop.f32.mrb[0].mxu0
      %v606 = vadd.f32 %v287, %v605
      %v607 = vpop.f32.mrb[0].mxu0
      %608 = vmatprep.mubr.bf16.mxu0 0
      %609 = vmatmul.mubr.bf16.gmra.mrb[0].mxu0 %v422
      %v610 = vpop.f32.mrb[0].mxu0
      %v611 = vadd.f32 %v287, %v610
      %v612 = vpop.f32.mrb[0].mxu0
      %v613 = vpop.f32.mrb[0].mxu0
      %v614 = vadd.f32 %v287, %v613
      %v615 = vpop.f32.mrb[0].mxu0
      %616 = vmatprep.mubr.bf16.mxu0 0
      %617 = vmatmul.mubr.bf16.gmra.mrb[0].mxu0 %v423
      %v618 = vpop.f32.mrb[0].mxu0
      %v619 = vadd.f32 %v287, %v618
      %v620 = vpop.f32.mrb[0].mxu0
      %v621 = vpop.f32.mrb[0].mxu0
      %v622 = vadd.f32 %v287, %v621
      %v623 = vpop.f32.mrb[0].mxu0
      %624 = vmatprep.mubr.bf16.mxu0 0
      %625 = vmatmul.mubr.bf16.gmra.mrb[0].mxu0 %v424
      %v626 = vpop.f32.mrb[0].mxu0
      %v627 = vadd.f32 %v287, %v626
      %v628 = vpop.f32.mrb[0].mxu0
      %v629 = vpop.f32.mrb[0].mxu0
      %v630 = vadd.f32 %v287, %v629
      %v631 = vpop.f32.mrb[0].mxu0
      %632 = vmatprep.mubr.bf16.mxu0 0
      %633 = vmatmul.mubr.bf16.gmra.mrb[0].mxu0 %v425
      %v634 = vpop.f32.mrb[0].mxu0
      %v635 = vadd.f32 %v287, %v634
      %v636 = vpop.f32.mrb[0].mxu0
      %v637 = vpop.f32.mrb[0].mxu0
      %v638 = vadd.f32 %v287, %v637
      %v639 = vpop.f32.mrb[0].mxu0
      %640 = vmatprep.mubr.bf16.mxu0 0
      %641 = vmatmul.mubr.bf16.gmra.mrb[0].mxu0 %v426
      %v642 = vpop.f32.mrb[0].mxu0
      %v643 = vadd.f32 %v287, %v642
      %v644 = vpop.f32.mrb[0].mxu0
      %v645 = vpop.f32.mrb[0].mxu0
      %v646 = vadd.f32 %v287, %v645
      %v647 = vpop.f32.mrb[0].mxu0
      %648 = vmatprep.mubr.bf16.mxu0 0
      %649 = vmatmul.mubr.bf16.gmra.mrb[0].mxu0 %v427
      %v650 = vpop.f32.mrb[0].mxu0
      %v651 = vadd.f32 %v287, %v650
      %v652 = vpop.f32.mrb[0].mxu0
      %v653 = vpop.f32.mrb[0].mxu0
      %v654 = vadd.f32 %v287, %v653
      %v655 = vpop.f32.mrb[0].mxu0
      %656 = vmatprep.mubr.bf16.mxu0 0
      %657 = vmatmul.mubr.bf16.gmra.mrb[0].mxu0 %v428
      %v658 = vpop.f32.mrb[0].mxu0
      %v659 = vadd.f32 %v287, %v658
      %v660 = vpop.f32.mrb[0].mxu0
      %v661 = vpop.f32.mrb[0].mxu0
      %v662 = vadd.f32 %v287, %v661
      %v663 = vpop.f32.mrb[0].mxu0
      %664 = vmatprep.mubr.bf16.mxu0 0
      %665 = vmatmul.mubr.bf16.gmra.mrb[0].mxu0 %v429
      %v666 = vpop.f32.mrb[0].mxu0
      %v667 = vadd.f32 %v287, %v666
      %v668 = vpop.f32.mrb[0].mxu0
      %v669 = vpop.f32.mrb[0].mxu0
      %v670 = vadd.f32 %v287, %v669
      %v671 = vpop.f32.mrb[0].mxu0
      %672 = vmatprep.mubr.bf16.mxu0 0
      %673 = vmatmul.mubr.bf16.gmra.mrb[0].mxu0 %v430
      %v674 = vpop.f32.mrb[0].mxu0
      %v675 = vadd.f32 %v287, %v674
      %v676 = vpop.f32.mrb[0].mxu0
      %v677 = vpop.f32.mrb[0].mxu0
      %v678 = vadd.f32 %v287, %v677
      %v679 = vpop.f32.mrb[0].mxu0
      %680 = vmatprep.mubr.bf16.mxu0 0
      %681 = vmatmul.mubr.bf16.gmra.mrb[0].mxu0 %v431
      %v682 = vpop.f32.mrb[0].mxu0
      %v683 = vadd.f32 %v287, %v682
      %v684 = vpop.f32.mrb[0].mxu0
      %v685 = vpop.f32.mrb[0].mxu0
      %v686 = vadd.f32 %v287, %v685
      %v687 = vpop.f32.mrb[0].mxu0
      %688 = vmatprep.mubr.bf16.mxu0 0
      %689 = vmatmul.mubr.bf16.gmra.mrb[0].mxu0 %v432
      %v690 = vpop.f32.mrb[0].mxu0
      %v691 = vadd.f32 %v287, %v690
      %v692 = vpop.f32.mrb[0].mxu0
      %v693 = vpop.f32.mrb[0].mxu0
      %v694 = vadd.f32 %v287, %v693
      %v695 = vpop.f32.mrb[0].mxu0
      %696 = vmatprep.mubr.bf16.mxu0 0
      %697 = vmatmul.mubr.bf16.gmra.mrb[0].mxu0 %v433
      %v698 = vpop.f32.mrb[0].mxu0
      %v699 = vadd.f32 %v287, %v698
      %v700 = vpop.f32.mrb[0].mxu0
      %v701 = vpop.f32.mrb[0].mxu0
      %v702 = vadd.f32 %v287, %v701
      %v703 = vpop.f32.mrb[0].mxu0
      %704 = vmatprep.mubr.bf16.mxu0 0
      %705 = vmatmul.mubr.bf16.gmra.mrb[0].mxu0 %v434
      %v706 = vpop.f32.mrb[0].mxu0
      %v707 = vadd.f32 %v287, %v706
      %v708 = vpop.f32.mrb[0].mxu0
      %v709 = vpop.f32.mrb[0].mxu0
      %v710 = vadd.f32 %v287, %v709
      %v711 = vpop.f32.mrb[0].mxu0
      %712 = vmatprep.mubr.bf16.mxu0 0
      %713 = vmatmul.mubr.bf16.gmra.mrb[0].mxu0 %v435
      %v714 = vpop.f32.mrb[0].mxu0
      %v715 = vadd.f32 %v287, %v714
      %v716 = vpop.f32.mrb[0].mxu0
      %v717 = vpop.f32.mrb[0].mxu0
      %v718 = vadd.f32 %v287, %v717
      %v719 = vpop.f32.mrb[0].mxu0
      %720 = vmatprep.mubr.bf16.mxu0 0
      %721 = vmatmul.mubr.bf16.gmra.mrb[0].mxu0 %v436
      %v722 = vpop.f32.mrb[0].mxu0
      %v723 = vadd.f32 %v287, %v722
      %v724 = vpop.f32.mrb[0].mxu0
      %v725 = vpop.f32.mrb[0].mxu0
      %v726 = vadd.f32 %v287, %v725
      %v727 = vpop.f32.mrb[0].mxu0
      %728 = vmatprep.mubr.bf16.mxu0 0
      %729 = vmatmul.mubr.bf16.gmra.mrb[0].mxu0 %v437
      %v730 = vpop.f32.mrb[0].mxu0
      %v731 = vadd.f32 %v287, %v730
      %v732 = vpop.f32.mrb[0].mxu0
      %v733 = vpop.f32.mrb[0].mxu0
      %v734 = vadd.f32 %v287, %v733
      %v735 = vpop.f32.mrb[0].mxu0
      %736 = vmatprep.mubr.bf16.mxu0 0
      %737 = vmatmul.mubr.bf16.gmra.mrb[0].mxu0 %v438
      %v738 = vpop.f32.mrb[0].mxu0
      %v739 = vadd.f32 %v287, %v738
      %v740 = vpop.f32.mrb[0].mxu0
      %v741 = vpop.f32.mrb[0].mxu0
      %v742 = vadd.f32 %v287, %v741
      %v743 = vpop.f32.mrb[0].mxu0
      %744 = vmatprep.mubr.bf16.mxu0 0
      %745 = vmatmul.mubr.bf16.gmra.mrb[0].mxu0 %v439
      %v746 = vpop.f32.mrb[0].mxu0
      %v747 = vadd.f32 %v287, %v746
      %v748 = vpop.f32.mrb[0].mxu0
      %v749 = vpop.f32.mrb[0].mxu0
      %v750 = vadd.f32 %v287, %v749
      %v751 = vpop.f32.mrb[0].mxu0
      %752 = vmatprep.mubr.bf16.mxu0 0
      %753 = vmatmul.mubr.bf16.gmra.mrb[0].mxu0 %v440
      %v754 = vpop.f32.mrb[0].mxu0
      %v755 = vadd.f32 %v287, %v754
      %v756 = vpop.f32.mrb[0].mxu0
      %v757 = vpop.f32.mrb[0].mxu0
      %v758 = vadd.f32 %v287, %v757
      %v759 = vpop.f32.mrb[0].mxu0
      %760 = vmatprep.mubr.bf16.mxu0 0
      %761 = vmatmul.mubr.bf16.gmra.mrb[0].mxu0 %v441
      %v762 = vpop.f32.mrb[0].mxu0
      %v763 = vadd.f32 %v287, %v762
      %v764 = vpop.f32.mrb[0].mxu0
      %v765 = vpop.f32.mrb[0].mxu0
      %v766 = vadd.f32 %v287, %v765
      %v767 = vpop.f32.mrb[0].mxu0
      %768 = vmatprep.mubr.bf16.mxu0 0
      %769 = vmatmul.mubr.bf16.gmra.mrb[0].mxu0 %v442
      %v770 = vpop.f32.mrb[0].mxu0
      %v771 = vadd.f32 %v287, %v770
      %v772 = vpop.f32.mrb[0].mxu0
      %v773 = vpop.f32.mrb[0].mxu0
      %v774 = vadd.f32 %v287, %v773
      %v775 = vpop.f32.mrb[0].mxu0
      %776 = vmatprep.mubr.bf16.mxu0 0
      %777 = vmatmul.mubr.bf16.gmra.mrb[0].mxu0 %v443
      %v778 = vpop.f32.mrb[0].mxu0
      %v779 = vadd.f32 %v287, %v778
      %v780 = vpop.f32.mrb[0].mxu0
      %v781 = vpop.f32.mrb[0].mxu0
      %v782 = vadd.f32 %v287, %v781
      %v783 = vpop.f32.mrb[0].mxu0
      %784 = vmatprep.mubr.bf16.mxu0 0
      %785 = vmatmul.mubr.bf16.gmra.mrb[0].mxu0 %v444
      %v786 = vpop.f32.mrb[0].mxu0
      %v787 = vadd.f32 %v287, %v786
      %v788 = vpop.f32.mrb[0].mxu0
      %v789 = vpop.f32.mrb[0].mxu0
      %v790 = vadd.f32 %v287, %v789
      %v791 = vpop.f32.mrb[0].mxu0
      %792 = vmatprep.mubr.bf16.mxu0 0
      %793 = vmatmul.mubr.bf16.gmra.mrb[0].mxu0 %v445
      %v794 = vpop.f32.mrb[0].mxu0
      %v795 = vadd.f32 %v287, %v794
      %v796 = vpop.f32.mrb[0].mxu0
      %v797 = vpop.f32.mrb[0].mxu0
      %v798 = vadd.f32 %v287, %v797
      %v799 = vpop.f32.mrb[0].mxu0
      %800 = vmatprep.mubr.bf16.mxu0 0
      %801 = vmatmul.mubr.bf16.gmra.mrb[0].mxu0 %v446
      %v802 = vpop.f32.mrb[0].mxu0
      %v803 = vadd.f32 %v287, %v802
      %v804 = vpop.f32.mrb[0].mxu0
      %v805 = vpop.f32.mrb[0].mxu0
      %v806 = vadd.f32 %v287, %v805
      %v807 = vpop.f32.mrb[0].mxu0
      %808 = vmatprep.mubr.bf16.mxu0 0
      %809 = vmatmul.mubr.bf16.gmra.mrb[0].mxu0 %v447
      %v810 = vpop.f32.mrb[0].mxu0
      %v811 = vadd.f32 %v287, %v810
      %v812 = vpop.f32.mrb[0].mxu0
      %v813 = vpop.f32.mrb[0].mxu0
      %v814 = vadd.f32 %v287, %v813
      %v815 = vpop.f32.mrb[0].mxu0
      %816 = vdwg.mxu0
      %v817 = vtanh.pop %v563
      %v818 = vtanh.pop %v566
      %v819 = vtanh.pop %v571
      %v820 = vtanh.pop %v574
      %v821 = vtanh.pop %v579
      %v822 = vtanh.pop %v582
      %v823 = vtanh.pop %v587
      %v824 = vtanh.pop %v590
      %v825 = vtanh.pop %v595
      %v826 = vtanh.pop %v598
      %v827 = vtanh.pop %v603
      %v828 = vtanh.pop %v606
      %v829 = vtanh.pop %v611
      %v830 = vtanh.pop %v614
      %v831 = vtanh.pop %v619
      %v832 = vtanh.pop %v622
      %v833 = vtanh.pop %v627
      %v834 = vtanh.pop %v630
      %v835 = vtanh.pop %v635
      %v836 = vtanh.pop %v638
      %v837 = vtanh.pop %v643
      %v838 = vtanh.pop %v646
      %v839 = vtanh.pop %v651
      %v840 = vtanh.pop %v654
      %v841 = vtanh.pop %v659
      %v842 = vtanh.pop %v662
      %v843 = vtanh.pop %v667
      %v844 = vtanh.pop %v670
      %v845 = vtanh.pop %v675
      %v846 = vtanh.pop %v678
      %v847 = vtanh.pop %v683
      %v848 = vtanh.pop %v686
      %v849 = vtanh.pop %v691
      %v850 = vtanh.pop %v694
      %v851 = vtanh.pop %v699
      %v852 = vtanh.pop %v702
      %v853 = vtanh.pop %v707
      %v854 = vtanh.pop %v710
      %v855 = vtanh.pop %v715
      %v856 = vtanh.pop %v718
      %v857 = vtanh.pop %v723
      %v858 = vtanh.pop %v726
      %v859 = vtanh.pop %v731
      %v860 = vtanh.pop %v734
      %v861 = vtanh.pop %v739
      %v862 = vtanh.pop %v742
      %v863 = vtanh.pop %v747
      %v864 = vtanh.pop %v750
      %v865 = vtanh.pop %v755
      %v866 = vtanh.pop %v758
      %v867 = vtanh.pop %v763
      %v868 = vtanh.pop %v766
      %v869 = vtanh.pop %v771
      %v870 = vtanh.pop %v774
      %v871 = vtanh.pop %v779
      %v872 = vtanh.pop %v782
      %v873 = vtanh.pop %v787
      %v874 = vtanh.pop %v790
      %v875 = vtanh.pop %v795
      %v876 = vtanh.pop %v798
      %v877 = vtanh.pop %v803
      %v878 = vtanh.pop %v806
      %v879 = vtanh.pop %v811
      %v880 = vtanh.pop %v814
      %v881 = vxor.u32 %v563, 2147483648
      %v882 = vxor.u32 %v566, 2147483648
      %v883 = vxor.u32 %v571, 2147483648
      %v884 = vxor.u32 %v574, 2147483648
      %v885 = vxor.u32 %v579, 2147483648
      %v886 = vxor.u32 %v582, 2147483648
      %v887 = vxor.u32 %v587, 2147483648
      %v888 = vxor.u32 %v590, 2147483648
      %v889 = vxor.u32 %v595, 2147483648
      %v890 = vxor.u32 %v598, 2147483648
      %v891 = vxor.u32 %v603, 2147483648
      %v892 = vxor.u32 %v606, 2147483648
      %v893 = vxor.u32 %v611, 2147483648
      %v894 = vxor.u32 %v614, 2147483648
      %v895 = vxor.u32 %v619, 2147483648
      %v896 = vxor.u32 %v622, 2147483648
      %v897 = vxor.u32 %v627, 2147483648
      %v898 = vxor.u32 %v630, 2147483648
      %v899 = vxor.u32 %v635, 2147483648
      %v900 = vxor.u32 %v638, 2147483648
      %v901 = vxor.u32 %v643, 2147483648
      %v902 = vxor.u32 %v646, 2147483648
      %v903 = vxor.u32 %v651, 2147483648
      %v904 = vxor.u32 %v654, 2147483648
      %v905 = vxor.u32 %v659, 2147483648
      %v906 = vxor.u32 %v662, 2147483648
      %v907 = vxor.u32 %v667, 2147483648
      %v908 = vxor.u32 %v670, 2147483648
      %v909 = vxor.u32 %v675, 2147483648
      %v910 = vxor.u32 %v678, 2147483648
      %v911 = vxor.u32 %v683, 2147483648
      %v912 = vxor.u32 %v686, 2147483648
      %v913 = vxor.u32 %v691, 2147483648
      %v914 = vxor.u32 %v694, 2147483648
      %v915 = vxor.u32 %v699, 2147483648
      %v916 = vxor.u32 %v702, 2147483648
      %v917 = vxor.u32 %v707, 2147483648
      %v918 = vxor.u32 %v710, 2147483648
      %v919 = vxor.u32 %v715, 2147483648
      %v920 = vxor.u32 %v718, 2147483648
      %v921 = vxor.u32 %v723, 2147483648
      %v922 = vxor.u32 %v726, 2147483648
      %v923 = vxor.u32 %v731, 2147483648
      %v924 = vxor.u32 %v734, 2147483648
      %v925 = vxor.u32 %v739, 2147483648
      %v926 = vxor.u32 %v742, 2147483648
      %v927 = vxor.u32 %v747, 2147483648
      %v928 = vxor.u32 %v750, 2147483648
      %v929 = vxor.u32 %v755, 2147483648
      %v930 = vxor.u32 %v758, 2147483648
      %v931 = vxor.u32 %v763, 2147483648
      %v932 = vxor.u32 %v766, 2147483648
      %v933 = vxor.u32 %v771, 2147483648
      %v934 = vxor.u32 %v774, 2147483648
      %v935 = vxor.u32 %v779, 2147483648
      %v936 = vxor.u32 %v782, 2147483648
      %v937 = vxor.u32 %v787, 2147483648
      %v938 = vxor.u32 %v790, 2147483648
      %v939 = vxor.u32 %v795, 2147483648
      %v940 = vxor.u32 %v798, 2147483648
      %v941 = vxor.u32 %v803, 2147483648
      %v942 = vxor.u32 %v806, 2147483648
      %v943 = vxor.u32 %v811, 2147483648
      %v944 = vxor.u32 %v814, 2147483648
      %v945 = vmul.f32 %v881, 1.442695
      %v946 = vpow.pop %v945
      %v947 = vmul.f32 %v882, 1.442695
      %v948 = vpow.pop %v947
      %v949 = vmul.f32 %v883, 1.442695
      %v950 = vpow.pop %v949
      %v951 = vmul.f32 %v884, 1.442695
      %v952 = vpow.pop %v951
      %v953 = vmul.f32 %v885, 1.442695
      %v954 = vpow.pop %v953
      %v955 = vmul.f32 %v886, 1.442695
      %v956 = vpow.pop %v955
      %v957 = vmul.f32 %v887, 1.442695
      %v958 = vpow.pop %v957
      %v959 = vmul.f32 %v888, 1.442695
      %v960 = vpow.pop %v959
      %v961 = vmul.f32 %v889, 1.442695
      %v962 = vpow.pop %v961
      %v963 = vmul.f32 %v890, 1.442695
      %v964 = vpow.pop %v963
      %v965 = vmul.f32 %v891, 1.442695
      %v966 = vpow.pop %v965
      %v967 = vmul.f32 %v892, 1.442695
      %v968 = vpow.pop %v967
      %v969 = vmul.f32 %v893, 1.442695
      %v970 = vpow.pop %v969
      %v971 = vmul.f32 %v894, 1.442695
      %v972 = vpow.pop %v971
      %v973 = vmul.f32 %v895, 1.442695
      %v974 = vpow.pop %v973
      %v975 = vmul.f32 %v896, 1.442695
      %v976 = vpow.pop %v975
      %v977 = vmul.f32 %v897, 1.442695
      %v978 = vpow.pop %v977
      %v979 = vmul.f32 %v898, 1.442695
      %v980 = vpow.pop %v979
      %v981 = vmul.f32 %v899, 1.442695
      %v982 = vpow.pop %v981
      %v983 = vmul.f32 %v900, 1.442695
      %v984 = vpow.pop %v983
      %v985 = vmul.f32 %v901, 1.442695
      %v986 = vpow.pop %v985
      %v987 = vmul.f32 %v902, 1.442695
      %v988 = vpow.pop %v987
      %v989 = vmul.f32 %v903, 1.442695
      %v990 = vpow.pop %v989
      %v991 = vmul.f32 %v904, 1.442695
      %v992 = vpow.pop %v991
      %v993 = vmul.f32 %v905, 1.442695
      %v994 = vpow.pop %v993
      %v995 = vmul.f32 %v906, 1.442695
      %v996 = vpow.pop %v995
      %v997 = vmul.f32 %v907, 1.442695
      %v998 = vpow.pop %v997
      %v999 = vmul.f32 %v908, 1.442695
      %v1000 = vpow.pop %v999
      %v1001 = vmul.f32 %v909, 1.442695
      %v1002 = vpow.pop %v1001
      %v1003 = vmul.f32 %v910, 1.442695
      %v1004 = vpow.pop %v1003
      %v1005 = vmul.f32 %v911, 1.442695
      %v1006 = vpow.pop %v1005
      %v1007 = vmul.f32 %v912, 1.442695
      %v1008 = vpow.pop %v1007
      %v1009 = vmul.f32 %v913, 1.442695
      %v1010 = vpow.pop %v1009
      %v1011 = vmul.f32 %v914, 1.442695
      %v1012 = vpow.pop %v1011
      %v1013 = vmul.f32 %v915, 1.442695
      %v1014 = vpow.pop %v1013
      %v1015 = vmul.f32 %v916, 1.442695
      %v1016 = vpow.pop %v1015
      %v1017 = vmul.f32 %v917, 1.442695
      %v1018 = vpow.pop %v1017
      %v1019 = vmul.f32 %v918, 1.442695
      %v1020 = vpow.pop %v1019
      %v1021 = vmul.f32 %v919, 1.442695
      %v1022 = vpow.pop %v1021
      %v1023 = vmul.f32 %v920, 1.442695
      %v1024 = vpow.pop %v1023
      %v1025 = vmul.f32 %v921, 1.442695
      %v1026 = vpow.pop %v1025
      %v1027 = vmul.f32 %v922, 1.442695
      %v1028 = vpow.pop %v1027
      %v1029 = vmul.f32 %v923, 1.442695
      %v1030 = vpow.pop %v1029
      %v1031 = vmul.f32 %v924, 1.442695
      %v1032 = vpow.pop %v1031
      %v1033 = vmul.f32 %v925, 1.442695
      %v1034 = vpow.pop %v1033
      %v1035 = vmul.f32 %v926, 1.442695
      %v1036 = vpow.pop %v1035
      %v1037 = vmul.f32 %v927, 1.442695
      %v1038 = vpow.pop %v1037
      %v1039 = vmul.f32 %v928, 1.442695
      %v1040 = vpow.pop %v1039
      %v1041 = vmul.f32 %v929, 1.442695
      %v1042 = vpow.pop %v1041
      %v1043 = vmul.f32 %v930, 1.442695
      %v1044 = vpow.pop %v1043
      %v1045 = vmul.f32 %v931, 1.442695
      %v1046 = vpow.pop %v1045
      %v1047 = vmul.f32 %v932, 1.442695
      %v1048 = vpow.pop %v1047
      %v1049 = vmul.f32 %v933, 1.442695
      %v1050 = vpow.pop %v1049
      %v1051 = vmul.f32 %v934, 1.442695
      %v1052 = vpow.pop %v1051
      %v1053 = vmul.f32 %v935, 1.442695
      %v1054 = vpow.pop %v1053
      %v1055 = vmul.f32 %v936, 1.442695
      %v1056 = vpow.pop %v1055
      %v1057 = vmul.f32 %v937, 1.442695
      %v1058 = vpow.pop %v1057
      %v1059 = vmul.f32 %v938, 1.442695
      %v1060 = vpow.pop %v1059
      %v1061 = vmul.f32 %v939, 1.442695
      %v1062 = vpow.pop %v1061
      %v1063 = vmul.f32 %v940, 1.442695
      %v1064 = vpow.pop %v1063
      %v1065 = vmul.f32 %v941, 1.442695
      %v1066 = vpow.pop %v1065
      %v1067 = vmul.f32 %v942, 1.442695
      %v1068 = vpow.pop %v1067
      %v1069 = vmul.f32 %v943, 1.442695
      %v1070 = vpow.pop %v1069
      %v1071 = vmul.f32 %v944, 1.442695
      %v1072 = vpow.pop %v1071
      %v1073 = vadd.f32 %v946, 1.0
      %v1074 = vadd.f32 %v948, 1.0
      %v1075 = vadd.f32 %v950, 1.0
      %v1076 = vadd.f32 %v952, 1.0
      %v1077 = vadd.f32 %v954, 1.0
      %v1078 = vadd.f32 %v956, 1.0
      %v1079 = vadd.f32 %v958, 1.0
      %v1080 = vadd.f32 %v960, 1.0
      %v1081 = vadd.f32 %v962, 1.0
      %v1082 = vadd.f32 %v964, 1.0
      %v1083 = vadd.f32 %v966, 1.0
      %v1084 = vadd.f32 %v968, 1.0
      %v1085 = vadd.f32 %v970, 1.0
      %v1086 = vadd.f32 %v972, 1.0
      %v1087 = vadd.f32 %v974, 1.0
      %v1088 = vadd.f32 %v976, 1.0
      %v1089 = vadd.f32 %v978, 1.0
      %v1090 = vadd.f32 %v980, 1.0
      %v1091 = vadd.f32 %v982, 1.0
      %v1092 = vadd.f32 %v984, 1.0
      %v1093 = vadd.f32 %v986, 1.0
      %v1094 = vadd.f32 %v988, 1.0
      %v1095 = vadd.f32 %v990, 1.0
      %v1096 = vadd.f32 %v992, 1.0
      %v1097 = vadd.f32 %v994, 1.0
      %v1098 = vadd.f32 %v996, 1.0
      %v1099 = vadd.f32 %v998, 1.0
      %v1100 = vadd.f32 %v1000, 1.0
      %v1101 = vadd.f32 %v1002, 1.0
      %v1102 = vadd.f32 %v1004, 1.0
      %v1103 = vadd.f32 %v1006, 1.0
      %v1104 = vadd.f32 %v1008, 1.0
      %v1105 = vadd.f32 %v1010, 1.0
      %v1106 = vadd.f32 %v1012, 1.0
      %v1107 = vadd.f32 %v1014, 1.0
      %v1108 = vadd.f32 %v1016, 1.0
      %v1109 = vadd.f32 %v1018, 1.0
      %v1110 = vadd.f32 %v1020, 1.0
      %v1111 = vadd.f32 %v1022, 1.0
      %v1112 = vadd.f32 %v1024, 1.0
      %v1113 = vadd.f32 %v1026, 1.0
      %v1114 = vadd.f32 %v1028, 1.0
      %v1115 = vadd.f32 %v1030, 1.0
      %v1116 = vadd.f32 %v1032, 1.0
      %v1117 = vadd.f32 %v1034, 1.0
      %v1118 = vadd.f32 %v1036, 1.0
      %v1119 = vadd.f32 %v1038, 1.0
      %v1120 = vadd.f32 %v1040, 1.0
      %v1121 = vadd.f32 %v1042, 1.0
      %v1122 = vadd.f32 %v1044, 1.0
      %v1123 = vadd.f32 %v1046, 1.0
      %v1124 = vadd.f32 %v1048, 1.0
      %v1125 = vadd.f32 %v1050, 1.0
      %v1126 = vadd.f32 %v1052, 1.0
      %v1127 = vadd.f32 %v1054, 1.0
      %v1128 = vadd.f32 %v1056, 1.0
      %v1129 = vadd.f32 %v1058, 1.0
      %v1130 = vadd.f32 %v1060, 1.0
      %v1131 = vadd.f32 %v1062, 1.0
      %v1132 = vadd.f32 %v1064, 1.0
      %v1133 = vadd.f32 %v1066, 1.0
      %v1134 = vadd.f32 %v1068, 1.0
      %v1135 = vadd.f32 %v1070, 1.0
      %v1136 = vadd.f32 %v1072, 1.0
      %v1137 = vrcp.pop %v1073
      %v1138 = vmul.f32 1.0, %v1137
      %v1139 = vrcp.pop %v1074
      %v1140 = vmul.f32 1.0, %v1139
      %v1141 = vrcp.pop %v1075
      %v1142 = vmul.f32 1.0, %v1141
      %v1143 = vrcp.pop %v1076
      %v1144 = vmul.f32 1.0, %v1143
      %v1145 = vrcp.pop %v1077
      %v1146 = vmul.f32 1.0, %v1145
      %v1147 = vrcp.pop %v1078
      %v1148 = vmul.f32 1.0, %v1147
      %v1149 = vrcp.pop %v1079
      %v1150 = vmul.f32 1.0, %v1149
      %v1151 = vrcp.pop %v1080
      %v1152 = vmul.f32 1.0, %v1151
      %v1153 = vrcp.pop %v1081
      %v1154 = vmul.f32 1.0, %v1153
      %v1155 = vrcp.pop %v1082
      %v1156 = vmul.f32 1.0, %v1155
      %v1157 = vrcp.pop %v1083
      %v1158 = vmul.f32 1.0, %v1157
      %v1159 = vrcp.pop %v1084
      %v1160 = vmul.f32 1.0, %v1159
      %v1161 = vrcp.pop %v1085
      %v1162 = vmul.f32 1.0, %v1161
      %v1163 = vrcp.pop %v1086
      %v1164 = vmul.f32 1.0, %v1163
      %v1165 = vrcp.pop %v1087
      %v1166 = vmul.f32 1.0, %v1165
      %v1167 = vrcp.pop %v1088
      %v1168 = vmul.f32 1.0, %v1167
      %v1169 = vrcp.pop %v1089
      %v1170 = vmul.f32 1.0, %v1169
      %v1171 = vrcp.pop %v1090
      %v1172 = vmul.f32 1.0, %v1171
      %v1173 = vrcp.pop %v1091
      %v1174 = vmul.f32 1.0, %v1173
      %v1175 = vrcp.pop %v1092
      %v1176 = vmul.f32 1.0, %v1175
      %v1177 = vrcp.pop %v1093
      %v1178 = vmul.f32 1.0, %v1177
      %v1179 = vrcp.pop %v1094
      %v1180 = vmul.f32 1.0, %v1179
      %v1181 = vrcp.pop %v1095
      %v1182 = vmul.f32 1.0, %v1181
      %v1183 = vrcp.pop %v1096
      %v1184 = vmul.f32 1.0, %v1183
      %v1185 = vrcp.pop %v1097
      %v1186 = vmul.f32 1.0, %v1185
      %v1187 = vrcp.pop %v1098
      %v1188 = vmul.f32 1.0, %v1187
      %v1189 = vrcp.pop %v1099
      %v1190 = vmul.f32 1.0, %v1189
      %v1191 = vrcp.pop %v1100
      %v1192 = vmul.f32 1.0, %v1191
      %v1193 = vrcp.pop %v1101
      %v1194 = vmul.f32 1.0, %v1193
      %v1195 = vrcp.pop %v1102
      %v1196 = vmul.f32 1.0, %v1195
      %v1197 = vrcp.pop %v1103
      %v1198 = vmul.f32 1.0, %v1197
      %v1199 = vrcp.pop %v1104
      %v1200 = vmul.f32 1.0, %v1199
      %v1201 = vrcp.pop %v1105
      %v1202 = vmul.f32 1.0, %v1201
      %v1203 = vrcp.pop %v1106
      %v1204 = vmul.f32 1.0, %v1203
      %v1205 = vrcp.pop %v1107
      %v1206 = vmul.f32 1.0, %v1205
      %v1207 = vrcp.pop %v1108
      %v1208 = vmul.f32 1.0, %v1207
      %v1209 = vrcp.pop %v1109
      %v1210 = vmul.f32 1.0, %v1209
      %v1211 = vrcp.pop %v1110
      %v1212 = vmul.f32 1.0, %v1211
      %v1213 = vrcp.pop %v1111
      %v1214 = vmul.f32 1.0, %v1213
      %v1215 = vrcp.pop %v1112
      %v1216 = vmul.f32 1.0, %v1215
      %v1217 = vrcp.pop %v1113
      %v1218 = vmul.f32 1.0, %v1217
      %v1219 = vrcp.pop %v1114
      %v1220 = vmul.f32 1.0, %v1219
      %v1221 = vrcp.pop %v1115
      %v1222 = vmul.f32 1.0, %v1221
      %v1223 = vrcp.pop %v1116
      %v1224 = vmul.f32 1.0, %v1223
      %v1225 = vrcp.pop %v1117
      %v1226 = vmul.f32 1.0, %v1225
      %v1227 = vrcp.pop %v1118
      %v1228 = vmul.f32 1.0, %v1227
      %v1229 = vrcp.pop %v1119
      %v1230 = vmul.f32 1.0, %v1229
      %v1231 = vrcp.pop %v1120
      %v1232 = vmul.f32 1.0, %v1231
      %v1233 = vrcp.pop %v1121
      %v1234 = vmul.f32 1.0, %v1233
      %v1235 = vrcp.pop %v1122
      %v1236 = vmul.f32 1.0, %v1235
      %v1237 = vrcp.pop %v1123
      %v1238 = vmul.f32 1.0, %v1237
      %v1239 = vrcp.pop %v1124
      %v1240 = vmul.f32 1.0, %v1239
      %v1241 = vrcp.pop %v1125
      %v1242 = vmul.f32 1.0, %v1241
      %v1243 = vrcp.pop %v1126
      %v1244 = vmul.f32 1.0, %v1243
      %v1245 = vrcp.pop %v1127
      %v1246 = vmul.f32 1.0, %v1245
      %v1247 = vrcp.pop %v1128
      %v1248 = vmul.f32 1.0, %v1247
      %v1249 = vrcp.pop %v1129
      %v1250 = vmul.f32 1.0, %v1249
      %v1251 = vrcp.pop %v1130
      %v1252 = vmul.f32 1.0, %v1251
      %v1253 = vrcp.pop %v1131
      %v1254 = vmul.f32 1.0, %v1253
      %v1255 = vrcp.pop %v1132
      %v1256 = vmul.f32 1.0, %v1255
      %v1257 = vrcp.pop %v1133
      %v1258 = vmul.f32 1.0, %v1257
      %v1259 = vrcp.pop %v1134
      %v1260 = vmul.f32 1.0, %v1259
      %v1261 = vrcp.pop %v1135
      %v1262 = vmul.f32 1.0, %v1261
      %v1263 = vrcp.pop %v1136
      %v1264 = vmul.f32 1.0, %v1263
      %v1265 = vmul.bf16 %v175, %v175
      %v1266 = vmul.bf16 %v176, %v176
      %v1267 = vmul.bf16 %v177, %v177
      %v1268 = vmul.bf16 %v178, %v178
      %v1269 = vmul.bf16 %v179, %v179
      %v1270 = vmul.bf16 %v180, %v180
      %v1271 = vmul.bf16 %v181, %v181
      %v1272 = vmul.bf16 %v182, %v182
      %v1273 = vmul.bf16 %v183, %v183
      %v1274 = vmul.bf16 %v184, %v184
      %v1275 = vmul.bf16 %v185, %v185
      %v1276 = vmul.bf16 %v186, %v186
      %v1277 = vmul.bf16 %v187, %v187
      %v1278 = vmul.bf16 %v188, %v188
      %v1279 = vmul.bf16 %v189, %v189
      %v1280 = vmul.bf16 %v190, %v190
      %v1281 = vmul.bf16 %v191, %v191
      %v1282 = vmul.bf16 %v192, %v192
      %v1283 = vmul.bf16 %v193, %v193
      %v1284 = vmul.bf16 %v194, %v194
      %v1285 = vmul.bf16 %v195, %v195
      %v1286 = vmul.bf16 %v196, %v196
      %v1287 = vmul.bf16 %v197, %v197
      %v1288 = vmul.bf16 %v198, %v198
      %v1289 = vmul.bf16 %v199, %v199
      %v1290 = vmul.bf16 %v200, %v200
      %v1291 = vmul.bf16 %v201, %v201
      %v1292 = vmul.bf16 %v202, %v202
      %v1293 = vmul.bf16 %v203, %v203
      %v1294 = vmul.bf16 %v204, %v204
      %v1295 = vmul.bf16 %v205, %v205
      %v1296 = vmul.bf16 %v206, %v206
      %v1297 = vmul.bf16 %v207, %v207
      %v1298 = vmul.bf16 %v208, %v208
      %v1299 = vmul.bf16 %v209, %v209
      %v1300 = vmul.bf16 %v210, %v210
      %v1301 = vmul.bf16 %v211, %v211
      %v1302 = vmul.bf16 %v212, %v212
      %v1303 = vmul.bf16 %v213, %v213
      %v1304 = vmul.bf16 %v214, %v214
      %v1305 = vmul.bf16 %v215, %v215
      %v1306 = vmul.bf16 %v216, %v216
      %v1307 = vmul.bf16 %v217, %v217
      %v1308 = vmul.bf16 %v218, %v218
      %v1309 = vmul.bf16 %v219, %v219
      %v1310 = vmul.bf16 %v220, %v220
      %v1311 = vmul.bf16 %v221, %v221
      %v1312 = vmul.bf16 %v222, %v222
      %v1313 = vmul.bf16 %v223, %v223
      %v1314 = vmul.bf16 %v224, %v224
      %v1315 = vmul.bf16 %v225, %v225
      %v1316 = vmul.bf16 %v226, %v226
      %v1317 = vmul.bf16 %v227, %v227
      %v1318 = vmul.bf16 %v228, %v228
      %v1319 = vmul.bf16 %v229, %v229
      %v1320 = vmul.bf16 %v230, %v230
      %v1321 = vmul.bf16 %v231, %v231
      %v1322 = vmul.bf16 %v232, %v232
      %v1323 = vmul.bf16 %v233, %v233
      %v1324 = vmul.bf16 %v234, %v234
      %v1325 = vmul.bf16 %v235, %v235
      %v1326 = vmul.bf16 %v236, %v236
      %v1327 = vmul.bf16 %v237, %v237
      %v1328 = vmul.bf16 %v238, %v238
      %v1393 = vunpack.c.l.b16 %v1265
      %v1394 = vunpack.c.l.b16 %v1266
      %v1395 = vunpack.c.l.b16 %v1267
      %v1396 = vunpack.c.l.b16 %v1268
      %v1397 = vunpack.c.l.b16 %v1269
      %v1398 = vunpack.c.l.b16 %v1270
      %v1399 = vunpack.c.l.b16 %v1271
      %v1400 = vunpack.c.l.b16 %v1272
      %v1401 = vunpack.c.l.b16 %v1273
      %v1402 = vunpack.c.l.b16 %v1274
      %v1403 = vunpack.c.l.b16 %v1275
      %v1404 = vunpack.c.l.b16 %v1276
      %v1405 = vunpack.c.l.b16 %v1277
      %v1406 = vunpack.c.l.b16 %v1278
      %v1407 = vunpack.c.l.b16 %v1279
      %v1408 = vunpack.c.l.b16 %v1280
      %v1409 = vunpack.c.l.b16 %v1281
      %v1410 = vunpack.c.l.b16 %v1282
      %v1411 = vunpack.c.l.b16 %v1283
      %v1412 = vunpack.c.l.b16 %v1284
      %v1413 = vunpack.c.l.b16 %v1285
      %v1414 = vunpack.c.l.b16 %v1286
      %v1415 = vunpack.c.l.b16 %v1287
      %v1416 = vunpack.c.l.b16 %v1288
      %v1417 = vunpack.c.l.b16 %v1289
      %v1418 = vunpack.c.l.b16 %v1290
      %v1419 = vunpack.c.l.b16 %v1291
      %v1420 = vunpack.c.l.b16 %v1292
      %v1421 = vunpack.c.l.b16 %v1293
      %v1422 = vunpack.c.l.b16 %v1294
      %v1423 = vunpack.c.l.b16 %v1295
      %v1424 = vunpack.c.l.b16 %v1296
      %v1425 = vunpack.c.l.b16 %v1297
      %v1426 = vunpack.c.l.b16 %v1298
      %v1427 = vunpack.c.l.b16 %v1299
      %v1428 = vunpack.c.l.b16 %v1300
      %v1429 = vunpack.c.l.b16 %v1301
      %v1430 = vunpack.c.l.b16 %v1302
      %v1431 = vunpack.c.l.b16 %v1303
      %v1432 = vunpack.c.l.b16 %v1304
      %v1433 = vunpack.c.l.b16 %v1305
      %v1434 = vunpack.c.l.b16 %v1306
      %v1435 = vunpack.c.l.b16 %v1307
      %v1436 = vunpack.c.l.b16 %v1308
      %v1437 = vunpack.c.l.b16 %v1309
      %v1438 = vunpack.c.l.b16 %v1310
      %v1439 = vunpack.c.l.b16 %v1311
      %v1440 = vunpack.c.l.b16 %v1312
      %v1441 = vunpack.c.l.b16 %v1313
      %v1442 = vunpack.c.l.b16 %v1314
      %v1443 = vunpack.c.l.b16 %v1315
      %v1444 = vunpack.c.l.b16 %v1316
      %v1445 = vunpack.c.l.b16 %v1317
      %v1446 = vunpack.c.l.b16 %v1318
      %v1447 = vunpack.c.l.b16 %v1319
      %v1448 = vunpack.c.l.b16 %v1320
      %v1449 = vunpack.c.l.b16 %v1321
      %v1450 = vunpack.c.l.b16 %v1322
      %v1451 = vunpack.c.l.b16 %v1323
      %v1452 = vunpack.c.l.b16 %v1324
      %v1453 = vunpack.c.l.b16 %v1325
      %v1454 = vunpack.c.l.b16 %v1326
      %v1455 = vunpack.c.l.b16 %v1327
      %v1456 = vunpack.c.l.b16 %v1328
      %v1457 = vpack.c.b16 %v1394, %v1393
      %v1458 = vpack.c.b16 %v1396, %v1395
      %v1459 = vpack.c.b16 %v1398, %v1397
      %v1460 = vpack.c.b16 %v1400, %v1399
      %v1461 = vpack.c.b16 %v1402, %v1401
      %v1462 = vpack.c.b16 %v1404, %v1403
      %v1463 = vpack.c.b16 %v1406, %v1405
      %v1464 = vpack.c.b16 %v1408, %v1407
      %v1465 = vpack.c.b16 %v1410, %v1409
      %v1466 = vpack.c.b16 %v1412, %v1411
      %v1467 = vpack.c.b16 %v1414, %v1413
      %v1468 = vpack.c.b16 %v1416, %v1415
      %v1469 = vpack.c.b16 %v1418, %v1417
      %v1470 = vpack.c.b16 %v1420, %v1419
      %v1471 = vpack.c.b16 %v1422, %v1421
      %v1472 = vpack.c.b16 %v1424, %v1423
      %v1473 = vpack.c.b16 %v1426, %v1425
      %v1474 = vpack.c.b16 %v1428, %v1427
      %v1475 = vpack.c.b16 %v1430, %v1429
      %v1476 = vpack.c.b16 %v1432, %v1431
      %v1477 = vpack.c.b16 %v1434, %v1433
      %v1478 = vpack.c.b16 %v1436, %v1435
      %v1479 = vpack.c.b16 %v1438, %v1437
      %v1480 = vpack.c.b16 %v1440, %v1439
      %v1481 = vpack.c.b16 %v1442, %v1441
      %v1482 = vpack.c.b16 %v1444, %v1443
      %v1483 = vpack.c.b16 %v1446, %v1445
      %v1484 = vpack.c.b16 %v1448, %v1447
      %v1485 = vpack.c.b16 %v1450, %v1449
      %v1486 = vpack.c.b16 %v1452, %v1451
      %v1487 = vpack.c.b16 %v1454, %v1453
      %v1488 = vpack.c.b16 %v1456, %v1455
      %v1537 = vunpack.c.l.b16 %v256
      %v1538 = vunpack.c.l.b16 %v257
      %v1539 = vunpack.c.l.b16 %v258
      %v1540 = vunpack.c.l.b16 %v259
      %v1541 = vunpack.c.l.b16 %v260
      %v1542 = vunpack.c.l.b16 %v261
      %v1543 = vunpack.c.l.b16 %v262
      %v1544 = vunpack.c.l.b16 %v263
      %v1545 = vunpack.c.l.b16 %v264
      %v1546 = vunpack.c.l.b16 %v265
      %v1547 = vunpack.c.l.b16 %v266
      %v1548 = vunpack.c.l.b16 %v267
      %v1549 = vunpack.c.l.b16 %v268
      %v1550 = vunpack.c.l.b16 %v269
      %v1551 = vunpack.c.l.b16 %v270
      %v1552 = vunpack.c.l.b16 %v271
      %v1553 = vpack.c.b16 %v1538, %v1537
      %v1554 = vpack.c.b16 %v1540, %v1539
      %v1555 = vpack.c.b16 %v1542, %v1541
      %v1556 = vpack.c.b16 %v1544, %v1543
      %v1557 = vpack.c.b16 %v1546, %v1545
      %v1558 = vpack.c.b16 %v1548, %v1547
      %v1559 = vpack.c.b16 %v1550, %v1549
      %v1560 = vpack.c.b16 %v1552, %v1551
      %1569 = vmatprep.subr.bf16.mxu0 0
      %1570 = vmatpush1.bf16.msra.mxu0 %v1553
      %1571 = vmatprep.subr.bf16.mxu0 0
      %1572 = vmatpush1.bf16.msra.mxu0 %v1554
      %1573 = vmatprep.subr.bf16.mxu0 0
      %1574 = vmatpush1.bf16.msra.mxu0 %v1555
      %1575 = vmatprep.subr.bf16.mxu0 0
      %1576 = vmatpush1.bf16.msra.mxu0 %v1556
      %1577 = vmatprep.subr.bf16.mxu0 0
      %1578 = vmatpush1.bf16.msra.mxu0 %v1557
      %1579 = vmatprep.subr.bf16.mxu0 0
      %1580 = vmatpush1.bf16.msra.mxu0 %v1558
      %1581 = vmatprep.subr.bf16.mxu0 0
      %1582 = vmatpush1.bf16.msra.mxu0 %v1559
      %1583 = vmatprep.subr.bf16.mxu0 0
      %1584 = vmatpush1.bf16.msra.mxu0 %v1560
      %1585 = vmatprep.subr.bf16.mxu0 0
      %1586 = vmatpush1.bf16.msra.mxu0 0
      %1587 = vmatprep.subr.bf16.mxu0 0
      %1588 = vmatpush1.bf16.msra.mxu0 0
      %1589 = vmatprep.subr.bf16.mxu0 0
      %1590 = vmatpush1.bf16.msra.mxu0 0
      %1591 = vmatprep.subr.bf16.mxu0 0
      %1592 = vmatpush1.bf16.msra.mxu0 0
      %1593 = vmatprep.subr.bf16.mxu0 0
      %1594 = vmatpush1.bf16.msra.mxu0 0
      %1595 = vmatprep.subr.bf16.mxu0 0
      %1596 = vmatpush1.bf16.msra.mxu0 0
      %1597 = vmatprep.subr.bf16.mxu0 0
      %1598 = vmatpush1.bf16.msra.mxu0 0
      %1599 = vmatprep.subr.bf16.mxu0 0
      %1600 = vmatpush1.bf16.msra.mxu0 0
      %1601 = vmatprep.mubr.bf16.mxu0 0
      %1602 = vmatmul.mubr.bf16.gmra.mrb[0].mxu0 %v1457
      %v1603 = vpop.f32.mrb[0].mxu0
      %v1604 = vadd.f32 0.0, %v1603
      %v1605 = vpop.f32.mrb[0].mxu0
      %v1606 = vpop.f32.mrb[0].mxu0
      %v1607 = vadd.f32 0.0, %v1606
      %v1608 = vpop.f32.mrb[0].mxu0
      %1609 = vmatprep.mubr.bf16.mxu0 0
      %1610 = vmatmul.mubr.bf16.gmra.mrb[0].mxu0 %v1458
      %v1611 = vpop.f32.mrb[0].mxu0
      %v1612 = vadd.f32 0.0, %v1611
      %v1613 = vpop.f32.mrb[0].mxu0
      %v1614 = vpop.f32.mrb[0].mxu0
      %v1615 = vadd.f32 0.0, %v1614
      %v1616 = vpop.f32.mrb[0].mxu0
      %1617 = vmatprep.mubr.bf16.mxu0 0
      %1618 = vmatmul.mubr.bf16.gmra.mrb[0].mxu0 %v1459
      %v1619 = vpop.f32.mrb[0].mxu0
      %v1620 = vadd.f32 0.0, %v1619
      %v1621 = vpop.f32.mrb[0].mxu0
      %v1622 = vpop.f32.mrb[0].mxu0
      %v1623 = vadd.f32 0.0, %v1622
      %v1624 = vpop.f32.mrb[0].mxu0
      %1625 = vmatprep.mubr.bf16.mxu0 0
      %1626 = vmatmul.mubr.bf16.gmra.mrb[0].mxu0 %v1460
      %v1627 = vpop.f32.mrb[0].mxu0
      %v1628 = vadd.f32 0.0, %v1627
      %v1629 = vpop.f32.mrb[0].mxu0
      %v1630 = vpop.f32.mrb[0].mxu0
      %v1631 = vadd.f32 0.0, %v1630
      %v1632 = vpop.f32.mrb[0].mxu0
      %1633 = vmatprep.mubr.bf16.mxu0 0
      %1634 = vmatmul.mubr.bf16.gmra.mrb[0].mxu0 %v1461
      %v1635 = vpop.f32.mrb[0].mxu0
      %v1636 = vadd.f32 0.0, %v1635
      %v1637 = vpop.f32.mrb[0].mxu0
      %v1638 = vpop.f32.mrb[0].mxu0
      %v1639 = vadd.f32 0.0, %v1638
      %v1640 = vpop.f32.mrb[0].mxu0
      %1641 = vmatprep.mubr.bf16.mxu0 0
      %1642 = vmatmul.mubr.bf16.gmra.mrb[0].mxu0 %v1462
      %v1643 = vpop.f32.mrb[0].mxu0
      %v1644 = vadd.f32 0.0, %v1643
      %v1645 = vpop.f32.mrb[0].mxu0
      %v1646 = vpop.f32.mrb[0].mxu0
      %v1647 = vadd.f32 0.0, %v1646
      %v1648 = vpop.f32.mrb[0].mxu0
      %1649 = vmatprep.mubr.bf16.mxu0 0
      %1650 = vmatmul.mubr.bf16.gmra.mrb[0].mxu0 %v1463
      %v1651 = vpop.f32.mrb[0].mxu0
      %v1652 = vadd.f32 0.0, %v1651
      %v1653 = vpop.f32.mrb[0].mxu0
      %v1654 = vpop.f32.mrb[0].mxu0
      %v1655 = vadd.f32 0.0, %v1654
      %v1656 = vpop.f32.mrb[0].mxu0
      %1657 = vmatprep.mubr.bf16.mxu0 0
      %1658 = vmatmul.mubr.bf16.gmra.mrb[0].mxu0 %v1464
      %v1659 = vpop.f32.mrb[0].mxu0
      %v1660 = vadd.f32 0.0, %v1659
      %v1661 = vpop.f32.mrb[0].mxu0
      %v1662 = vpop.f32.mrb[0].mxu0
      %v1663 = vadd.f32 0.0, %v1662
      %v1664 = vpop.f32.mrb[0].mxu0
      %1665 = vmatprep.mubr.bf16.mxu0 0
      %1666 = vmatmul.mubr.bf16.gmra.mrb[0].mxu0 %v1465
      %v1667 = vpop.f32.mrb[0].mxu0
      %v1668 = vadd.f32 0.0, %v1667
      %v1669 = vpop.f32.mrb[0].mxu0
      %v1670 = vpop.f32.mrb[0].mxu0
      %v1671 = vadd.f32 0.0, %v1670
      %v1672 = vpop.f32.mrb[0].mxu0
      %1673 = vmatprep.mubr.bf16.mxu0 0
      %1674 = vmatmul.mubr.bf16.gmra.mrb[0].mxu0 %v1466
      %v1675 = vpop.f32.mrb[0].mxu0
      %v1676 = vadd.f32 0.0, %v1675
      %v1677 = vpop.f32.mrb[0].mxu0
      %v1678 = vpop.f32.mrb[0].mxu0
      %v1679 = vadd.f32 0.0, %v1678
      %v1680 = vpop.f32.mrb[0].mxu0
      %1681 = vmatprep.mubr.bf16.mxu0 0
      %1682 = vmatmul.mubr.bf16.gmra.mrb[0].mxu0 %v1467
      %v1683 = vpop.f32.mrb[0].mxu0
      %v1684 = vadd.f32 0.0, %v1683
      %v1685 = vpop.f32.mrb[0].mxu0
      %v1686 = vpop.f32.mrb[0].mxu0
      %v1687 = vadd.f32 0.0, %v1686
      %v1688 = vpop.f32.mrb[0].mxu0
      %1689 = vmatprep.mubr.bf16.mxu0 0
      %1690 = vmatmul.mubr.bf16.gmra.mrb[0].mxu0 %v1468
      %v1691 = vpop.f32.mrb[0].mxu0
      %v1692 = vadd.f32 0.0, %v1691
      %v1693 = vpop.f32.mrb[0].mxu0
      %v1694 = vpop.f32.mrb[0].mxu0
      %v1695 = vadd.f32 0.0, %v1694
      %v1696 = vpop.f32.mrb[0].mxu0
      %1697 = vmatprep.mubr.bf16.mxu0 0
      %1698 = vmatmul.mubr.bf16.gmra.mrb[0].mxu0 %v1469
      %v1699 = vpop.f32.mrb[0].mxu0
      %v1700 = vadd.f32 0.0, %v1699
      %v1701 = vpop.f32.mrb[0].mxu0
      %v1702 = vpop.f32.mrb[0].mxu0
      %v1703 = vadd.f32 0.0, %v1702
      %v1704 = vpop.f32.mrb[0].mxu0
      %1705 = vmatprep.mubr.bf16.mxu0 0
      %1706 = vmatmul.mubr.bf16.gmra.mrb[0].mxu0 %v1470
      %v1707 = vpop.f32.mrb[0].mxu0
      %v1708 = vadd.f32 0.0, %v1707
      %v1709 = vpop.f32.mrb[0].mxu0
      %v1710 = vpop.f32.mrb[0].mxu0
      %v1711 = vadd.f32 0.0, %v1710
      %v1712 = vpop.f32.mrb[0].mxu0
      %1713 = vmatprep.mubr.bf16.mxu0 0
      %1714 = vmatmul.mubr.bf16.gmra.mrb[0].mxu0 %v1471
      %v1715 = vpop.f32.mrb[0].mxu0
      %v1716 = vadd.f32 0.0, %v1715
      %v1717 = vpop.f32.mrb[0].mxu0
      %v1718 = vpop.f32.mrb[0].mxu0
      %v1719 = vadd.f32 0.0, %v1718
      %v1720 = vpop.f32.mrb[0].mxu0
      %1721 = vmatprep.mubr.bf16.mxu0 0
      %1722 = vmatmul.mubr.bf16.gmra.mrb[0].mxu0 %v1472
      %v1723 = vpop.f32.mrb[0].mxu0
      %v1724 = vadd.f32 0.0, %v1723
      %v1725 = vpop.f32.mrb[0].mxu0
      %v1726 = vpop.f32.mrb[0].mxu0
      %v1727 = vadd.f32 0.0, %v1726
      %v1728 = vpop.f32.mrb[0].mxu0
      %1729 = vmatprep.mubr.bf16.mxu0 0
      %1730 = vmatmul.mubr.bf16.gmra.mrb[0].mxu0 %v1473
      %v1731 = vpop.f32.mrb[0].mxu0
      %v1732 = vadd.f32 0.0, %v1731
      %v1733 = vpop.f32.mrb[0].mxu0
      %v1734 = vpop.f32.mrb[0].mxu0
      %v1735 = vadd.f32 0.0, %v1734
      %v1736 = vpop.f32.mrb[0].mxu0
      %1737 = vmatprep.mubr.bf16.mxu0 0
      %1738 = vmatmul.mubr.bf16.gmra.mrb[0].mxu0 %v1474
      %v1739 = vpop.f32.mrb[0].mxu0
      %v1740 = vadd.f32 0.0, %v1739
      %v1741 = vpop.f32.mrb[0].mxu0
      %v1742 = vpop.f32.mrb[0].mxu0
      %v1743 = vadd.f32 0.0, %v1742
      %v1744 = vpop.f32.mrb[0].mxu0
      %1745 = vmatprep.mubr.bf16.mxu0 0
      %1746 = vmatmul.mubr.bf16.gmra.mrb[0].mxu0 %v1475
      %v1747 = vpop.f32.mrb[0].mxu0
      %v1748 = vadd.f32 0.0, %v1747
      %v1749 = vpop.f32.mrb[0].mxu0
      %v1750 = vpop.f32.mrb[0].mxu0
      %v1751 = vadd.f32 0.0, %v1750
      %v1752 = vpop.f32.mrb[0].mxu0
      %1753 = vmatprep.mubr.bf16.mxu0 0
      %1754 = vmatmul.mubr.bf16.gmra.mrb[0].mxu0 %v1476
      %v1755 = vpop.f32.mrb[0].mxu0
      %v1756 = vadd.f32 0.0, %v1755
      %v1757 = vpop.f32.mrb[0].mxu0
      %v1758 = vpop.f32.mrb[0].mxu0
      %v1759 = vadd.f32 0.0, %v1758
      %v1760 = vpop.f32.mrb[0].mxu0
      %1761 = vmatprep.mubr.bf16.mxu0 0
      %1762 = vmatmul.mubr.bf16.gmra.mrb[0].mxu0 %v1477
      %v1763 = vpop.f32.mrb[0].mxu0
      %v1764 = vadd.f32 0.0, %v1763
      %v1765 = vpop.f32.mrb[0].mxu0
      %v1766 = vpop.f32.mrb[0].mxu0
      %v1767 = vadd.f32 0.0, %v1766
      %v1768 = vpop.f32.mrb[0].mxu0
      %1769 = vmatprep.mubr.bf16.mxu0 0
      %1770 = vmatmul.mubr.bf16.gmra.mrb[0].mxu0 %v1478
      %v1771 = vpop.f32.mrb[0].mxu0
      %v1772 = vadd.f32 0.0, %v1771
      %v1773 = vpop.f32.mrb[0].mxu0
      %v1774 = vpop.f32.mrb[0].mxu0
      %v1775 = vadd.f32 0.0, %v1774
      %v1776 = vpop.f32.mrb[0].mxu0
      %1777 = vmatprep.mubr.bf16.mxu0 0
      %1778 = vmatmul.mubr.bf16.gmra.mrb[0].mxu0 %v1479
      %v1779 = vpop.f32.mrb[0].mxu0
      %v1780 = vadd.f32 0.0, %v1779
      %v1781 = vpop.f32.mrb[0].mxu0
      %v1782 = vpop.f32.mrb[0].mxu0
      %v1783 = vadd.f32 0.0, %v1782
      %v1784 = vpop.f32.mrb[0].mxu0
      %1785 = vmatprep.mubr.bf16.mxu0 0
      %1786 = vmatmul.mubr.bf16.gmra.mrb[0].mxu0 %v1480
      %v1787 = vpop.f32.mrb[0].mxu0
      %v1788 = vadd.f32 0.0, %v1787
      %v1789 = vpop.f32.mrb[0].mxu0
      %v1790 = vpop.f32.mrb[0].mxu0
      %v1791 = vadd.f32 0.0, %v1790
      %v1792 = vpop.f32.mrb[0].mxu0
      %1793 = vmatprep.mubr.bf16.mxu0 0
      %1794 = vmatmul.mubr.bf16.gmra.mrb[0].mxu0 %v1481
      %v1795 = vpop.f32.mrb[0].mxu0
      %v1796 = vadd.f32 0.0, %v1795
      %v1797 = vpop.f32.mrb[0].mxu0
      %v1798 = vpop.f32.mrb[0].mxu0
      %v1799 = vadd.f32 0.0, %v1798
      %v1800 = vpop.f32.mrb[0].mxu0
      %1801 = vmatprep.mubr.bf16.mxu0 0
      %1802 = vmatmul.mubr.bf16.gmra.mrb[0].mxu0 %v1482
      %v1803 = vpop.f32.mrb[0].mxu0
      %v1804 = vadd.f32 0.0, %v1803
      %v1805 = vpop.f32.mrb[0].mxu0
      %v1806 = vpop.f32.mrb[0].mxu0
      %v1807 = vadd.f32 0.0, %v1806
      %v1808 = vpop.f32.mrb[0].mxu0
      %1809 = vmatprep.mubr.bf16.mxu0 0
      %1810 = vmatmul.mubr.bf16.gmra.mrb[0].mxu0 %v1483
      %v1811 = vpop.f32.mrb[0].mxu0
      %v1812 = vadd.f32 0.0, %v1811
      %v1813 = vpop.f32.mrb[0].mxu0
      %v1814 = vpop.f32.mrb[0].mxu0
      %v1815 = vadd.f32 0.0, %v1814
      %v1816 = vpop.f32.mrb[0].mxu0
      %1817 = vmatprep.mubr.bf16.mxu0 0
      %1818 = vmatmul.mubr.bf16.gmra.mrb[0].mxu0 %v1484
      %v1819 = vpop.f32.mrb[0].mxu0
      %v1820 = vadd.f32 0.0, %v1819
      %v1821 = vpop.f32.mrb[0].mxu0
      %v1822 = vpop.f32.mrb[0].mxu0
      %v1823 = vadd.f32 0.0, %v1822
      %v1824 = vpop.f32.mrb[0].mxu0
      %1825 = vmatprep.mubr.bf16.mxu0 0
      %1826 = vmatmul.mubr.bf16.gmra.mrb[0].mxu0 %v1485
      %v1827 = vpop.f32.mrb[0].mxu0
      %v1828 = vadd.f32 0.0, %v1827
      %v1829 = vpop.f32.mrb[0].mxu0
      %v1830 = vpop.f32.mrb[0].mxu0
      %v1831 = vadd.f32 0.0, %v1830
      %v1832 = vpop.f32.mrb[0].mxu0
      %1833 = vmatprep.mubr.bf16.mxu0 0
      %1834 = vmatmul.mubr.bf16.gmra.mrb[0].mxu0 %v1486
      %v1835 = vpop.f32.mrb[0].mxu0
      %v1836 = vadd.f32 0.0, %v1835
      %v1837 = vpop.f32.mrb[0].mxu0
      %v1838 = vpop.f32.mrb[0].mxu0
      %v1839 = vadd.f32 0.0, %v1838
      %v1840 = vpop.f32.mrb[0].mxu0
      %1841 = vmatprep.mubr.bf16.mxu0 0
      %1842 = vmatmul.mubr.bf16.gmra.mrb[0].mxu0 %v1487
      %v1843 = vpop.f32.mrb[0].mxu0
      %v1844 = vadd.f32 0.0, %v1843
      %v1845 = vpop.f32.mrb[0].mxu0
      %v1846 = vpop.f32.mrb[0].mxu0
      %v1847 = vadd.f32 0.0, %v1846
      %v1848 = vpop.f32.mrb[0].mxu0
      %1849 = vmatprep.mubr.bf16.mxu0 0
      %1850 = vmatmul.mubr.bf16.gmra.mrb[0].mxu0 %v1488
      %v1851 = vpop.f32.mrb[0].mxu0
      %v1852 = vadd.f32 0.0, %v1851
      %v1853 = vpop.f32.mrb[0].mxu0
      %v1854 = vpop.f32.mrb[0].mxu0
      %v1855 = vadd.f32 0.0, %v1854
      %v1856 = vpop.f32.mrb[0].mxu0
      %1857 = vdwg.mxu0
      %v1858 = vadd.f32 %v1604, 1e-06
      %v1859 = vadd.f32 %v1607, 1e-06
      %v1860 = vadd.f32 %v1612, 1e-06
      %v1861 = vadd.f32 %v1615, 1e-06
      %v1862 = vadd.f32 %v1620, 1e-06
      %v1863 = vadd.f32 %v1623, 1e-06
      %v1864 = vadd.f32 %v1628, 1e-06
      %v1865 = vadd.f32 %v1631, 1e-06
      %v1866 = vadd.f32 %v1636, 1e-06
      %v1867 = vadd.f32 %v1639, 1e-06
      %v1868 = vadd.f32 %v1644, 1e-06
      %v1869 = vadd.f32 %v1647, 1e-06
      %v1870 = vadd.f32 %v1652, 1e-06
      %v1871 = vadd.f32 %v1655, 1e-06
      %v1872 = vadd.f32 %v1660, 1e-06
      %v1873 = vadd.f32 %v1663, 1e-06
      %v1874 = vadd.f32 %v1668, 1e-06
      %v1875 = vadd.f32 %v1671, 1e-06
      %v1876 = vadd.f32 %v1676, 1e-06
      %v1877 = vadd.f32 %v1679, 1e-06
      %v1878 = vadd.f32 %v1684, 1e-06
      %v1879 = vadd.f32 %v1687, 1e-06
      %v1880 = vadd.f32 %v1692, 1e-06
      %v1881 = vadd.f32 %v1695, 1e-06
      %v1882 = vadd.f32 %v1700, 1e-06
      %v1883 = vadd.f32 %v1703, 1e-06
      %v1884 = vadd.f32 %v1708, 1e-06
      %v1885 = vadd.f32 %v1711, 1e-06
      %v1886 = vadd.f32 %v1716, 1e-06
      %v1887 = vadd.f32 %v1719, 1e-06
      %v1888 = vadd.f32 %v1724, 1e-06
      %v1889 = vadd.f32 %v1727, 1e-06
      %v1890 = vadd.f32 %v1732, 1e-06
      %v1891 = vadd.f32 %v1735, 1e-06
      %v1892 = vadd.f32 %v1740, 1e-06
      %v1893 = vadd.f32 %v1743, 1e-06
      %v1894 = vadd.f32 %v1748, 1e-06
      %v1895 = vadd.f32 %v1751, 1e-06
      %v1896 = vadd.f32 %v1756, 1e-06
      %v1897 = vadd.f32 %v1759, 1e-06
      %v1898 = vadd.f32 %v1764, 1e-06
      %v1899 = vadd.f32 %v1767, 1e-06
      %v1900 = vadd.f32 %v1772, 1e-06
      %v1901 = vadd.f32 %v1775, 1e-06
      %v1902 = vadd.f32 %v1780, 1e-06
      %v1903 = vadd.f32 %v1783, 1e-06
      %v1904 = vadd.f32 %v1788, 1e-06
      %v1905 = vadd.f32 %v1791, 1e-06
      %v1906 = vadd.f32 %v1796, 1e-06
      %v1907 = vadd.f32 %v1799, 1e-06
      %v1908 = vadd.f32 %v1804, 1e-06
      %v1909 = vadd.f32 %v1807, 1e-06
      %v1910 = vadd.f32 %v1812, 1e-06
      %v1911 = vadd.f32 %v1815, 1e-06
      %v1912 = vadd.f32 %v1820, 1e-06
      %v1913 = vadd.f32 %v1823, 1e-06
      %v1914 = vadd.f32 %v1828, 1e-06
      %v1915 = vadd.f32 %v1831, 1e-06
      %v1916 = vadd.f32 %v1836, 1e-06
      %v1917 = vadd.f32 %v1839, 1e-06
      %v1918 = vadd.f32 %v1844, 1e-06
      %v1919 = vadd.f32 %v1847, 1e-06
      %v1920 = vadd.f32 %v1852, 1e-06
      %v1921 = vadd.f32 %v1855, 1e-06
      %v1922 = vrsqrt.pop %v1858
      %v1923 = vmul.f32 %v1858, %v1922
      %vm1924 = vcmp.eq.f32.partialorder %v1858, inf
      %v1925 = vsel %vm1924, %v1858, %v1923
      %vm1926 = vcmp.eq.f32.partialorder %v1858, 0.0
      %v1927 = vand.u32 %v1858, 2147483648
      %v1928 = vsel %vm1926, %v1927, %v1925
      %v1929 = vrsqrt.pop %v1859
      %v1930 = vmul.f32 %v1859, %v1929
      %vm1931 = vcmp.eq.f32.partialorder %v1859, inf
      %v1932 = vsel %vm1931, %v1859, %v1930
      %vm1933 = vcmp.eq.f32.partialorder %v1859, 0.0
      %v1934 = vand.u32 %v1859, 2147483648
      %v1935 = vsel %vm1933, %v1934, %v1932
      %v1936 = vrsqrt.pop %v1860
      %v1937 = vmul.f32 %v1860, %v1936
      %vm1938 = vcmp.eq.f32.partialorder %v1860, inf
      %v1939 = vsel %vm1938, %v1860, %v1937
      %vm1940 = vcmp.eq.f32.partialorder %v1860, 0.0
      %v1941 = vand.u32 %v1860, 2147483648
      %v1942 = vsel %vm1940, %v1941, %v1939
      %v1943 = vrsqrt.pop %v1861
      %v1944 = vmul.f32 %v1861, %v1943
      %vm1945 = vcmp.eq.f32.partialorder %v1861, inf
      %v1946 = vsel %vm1945, %v1861, %v1944
      %vm1947 = vcmp.eq.f32.partialorder %v1861, 0.0
      %v1948 = vand.u32 %v1861, 2147483648
      %v1949 = vsel %vm1947, %v1948, %v1946
      %v1950 = vrsqrt.pop %v1862
      %v1951 = vmul.f32 %v1862, %v1950
      %vm1952 = vcmp.eq.f32.partialorder %v1862, inf
      %v1953 = vsel %vm1952, %v1862, %v1951
      %vm1954 = vcmp.eq.f32.partialorder %v1862, 0.0
      %v1955 = vand.u32 %v1862, 2147483648
      %v1956 = vsel %vm1954, %v1955, %v1953
      %v1957 = vrsqrt.pop %v1863
      %v1958 = vmul.f32 %v1863, %v1957
      %vm1959 = vcmp.eq.f32.partialorder %v1863, inf
      %v1960 = vsel %vm1959, %v1863, %v1958
      %vm1961 = vcmp.eq.f32.partialorder %v1863, 0.0
      %v1962 = vand.u32 %v1863, 2147483648
      %v1963 = vsel %vm1961, %v1962, %v1960
      %v1964 = vrsqrt.pop %v1864
      %v1965 = vmul.f32 %v1864, %v1964
      %vm1966 = vcmp.eq.f32.partialorder %v1864, inf
      %v1967 = vsel %vm1966, %v1864, %v1965
      %vm1968 = vcmp.eq.f32.partialorder %v1864, 0.0
      %v1969 = vand.u32 %v1864, 2147483648
      %v1970 = vsel %vm1968, %v1969, %v1967
      %v1971 = vrsqrt.pop %v1865
      %v1972 = vmul.f32 %v1865, %v1971
      %vm1973 = vcmp.eq.f32.partialorder %v1865, inf
      %v1974 = vsel %vm1973, %v1865, %v1972
      %vm1975 = vcmp.eq.f32.partialorder %v1865, 0.0
      %v1976 = vand.u32 %v1865, 2147483648
      %v1977 = vsel %vm1975, %v1976, %v1974
      %v1978 = vrsqrt.pop %v1866
      %v1979 = vmul.f32 %v1866, %v1978
      %vm1980 = vcmp.eq.f32.partialorder %v1866, inf
      %v1981 = vsel %vm1980, %v1866, %v1979
      %vm1982 = vcmp.eq.f32.partialorder %v1866, 0.0
      %v1983 = vand.u32 %v1866, 2147483648
      %v1984 = vsel %vm1982, %v1983, %v1981
      %v1985 = vrsqrt.pop %v1867
      %v1986 = vmul.f32 %v1867, %v1985
      %vm1987 = vcmp.eq.f32.partialorder %v1867, inf
      %v1988 = vsel %vm1987, %v1867, %v1986
      %vm1989 = vcmp.eq.f32.partialorder %v1867, 0.0
      %v1990 = vand.u32 %v1867, 2147483648
      %v1991 = vsel %vm1989, %v1990, %v1988
      %v1992 = vrsqrt.pop %v1868
      %v1993 = vmul.f32 %v1868, %v1992
      %vm1994 = vcmp.eq.f32.partialorder %v1868, inf
      %v1995 = vsel %vm1994, %v1868, %v1993
      %vm1996 = vcmp.eq.f32.partialorder %v1868, 0.0
      %v1997 = vand.u32 %v1868, 2147483648
      %v1998 = vsel %vm1996, %v1997, %v1995
      %v1999 = vrsqrt.pop %v1869
      %v2000 = vmul.f32 %v1869, %v1999
      %vm2001 = vcmp.eq.f32.partialorder %v1869, inf
      %v2002 = vsel %vm2001, %v1869, %v2000
      %vm2003 = vcmp.eq.f32.partialorder %v1869, 0.0
      %v2004 = vand.u32 %v1869, 2147483648
      %v2005 = vsel %vm2003, %v2004, %v2002
      %v2006 = vrsqrt.pop %v1870
      %v2007 = vmul.f32 %v1870, %v2006
      %vm2008 = vcmp.eq.f32.partialorder %v1870, inf
      %v2009 = vsel %vm2008, %v1870, %v2007
      %vm2010 = vcmp.eq.f32.partialorder %v1870, 0.0
      %v2011 = vand.u32 %v1870, 2147483648
      %v2012 = vsel %vm2010, %v2011, %v2009
      %v2013 = vrsqrt.pop %v1871
      %v2014 = vmul.f32 %v1871, %v2013
      %vm2015 = vcmp.eq.f32.partialorder %v1871, inf
      %v2016 = vsel %vm2015, %v1871, %v2014
      %vm2017 = vcmp.eq.f32.partialorder %v1871, 0.0
      %v2018 = vand.u32 %v1871, 2147483648
      %v2019 = vsel %vm2017, %v2018, %v2016
      %v2020 = vrsqrt.pop %v1872
      %v2021 = vmul.f32 %v1872, %v2020
      %vm2022 = vcmp.eq.f32.partialorder %v1872, inf
      %v2023 = vsel %vm2022, %v1872, %v2021
      %vm2024 = vcmp.eq.f32.partialorder %v1872, 0.0
      %v2025 = vand.u32 %v1872, 2147483648
      %v2026 = vsel %vm2024, %v2025, %v2023
      %v2027 = vrsqrt.pop %v1873
      %v2028 = vmul.f32 %v1873, %v2027
      %vm2029 = vcmp.eq.f32.partialorder %v1873, inf
      %v2030 = vsel %vm2029, %v1873, %v2028
      %vm2031 = vcmp.eq.f32.partialorder %v1873, 0.0
      %v2032 = vand.u32 %v1873, 2147483648
      %v2033 = vsel %vm2031, %v2032, %v2030
      %v2034 = vrsqrt.pop %v1874
      %v2035 = vmul.f32 %v1874, %v2034
      %vm2036 = vcmp.eq.f32.partialorder %v1874, inf
      %v2037 = vsel %vm2036, %v1874, %v2035
      %vm2038 = vcmp.eq.f32.partialorder %v1874, 0.0
      %v2039 = vand.u32 %v1874, 2147483648
      %v2040 = vsel %vm2038, %v2039, %v2037
      %v2041 = vrsqrt.pop %v1875
      %v2042 = vmul.f32 %v1875, %v2041
      %vm2043 = vcmp.eq.f32.partialorder %v1875, inf
      %v2044 = vsel %vm2043, %v1875, %v2042
      %vm2045 = vcmp.eq.f32.partialorder %v1875, 0.0
      %v2046 = vand.u32 %v1875, 2147483648
      %v2047 = vsel %vm2045, %v2046, %v2044
      %v2048 = vrsqrt.pop %v1876
      %v2049 = vmul.f32 %v1876, %v2048
      %vm2050 = vcmp.eq.f32.partialorder %v1876, inf
      %v2051 = vsel %vm2050, %v1876, %v2049
      %vm2052 = vcmp.eq.f32.partialorder %v1876, 0.0
      %v2053 = vand.u32 %v1876, 2147483648
      %v2054 = vsel %vm2052, %v2053, %v2051
      %v2055 = vrsqrt.pop %v1877
      %v2056 = vmul.f32 %v1877, %v2055
      %vm2057 = vcmp.eq.f32.partialorder %v1877, inf
      %v2058 = vsel %vm2057, %v1877, %v2056
      %vm2059 = vcmp.eq.f32.partialorder %v1877, 0.0
      %v2060 = vand.u32 %v1877, 2147483648
      %v2061 = vsel %vm2059, %v2060, %v2058
      %v2062 = vrsqrt.pop %v1878
      %v2063 = vmul.f32 %v1878, %v2062
      %vm2064 = vcmp.eq.f32.partialorder %v1878, inf
      %v2065 = vsel %vm2064, %v1878, %v2063
      %vm2066 = vcmp.eq.f32.partialorder %v1878, 0.0
      %v2067 = vand.u32 %v1878, 2147483648
      %v2068 = vsel %vm2066, %v2067, %v2065
      %v2069 = vrsqrt.pop %v1879
      %v2070 = vmul.f32 %v1879, %v2069
      %vm2071 = vcmp.eq.f32.partialorder %v1879, inf
      %v2072 = vsel %vm2071, %v1879, %v2070
      %vm2073 = vcmp.eq.f32.partialorder %v1879, 0.0
      %v2074 = vand.u32 %v1879, 2147483648
      %v2075 = vsel %vm2073, %v2074, %v2072
      %v2076 = vrsqrt.pop %v1880
      %v2077 = vmul.f32 %v1880, %v2076
      %vm2078 = vcmp.eq.f32.partialorder %v1880, inf
      %v2079 = vsel %vm2078, %v1880, %v2077
      %vm2080 = vcmp.eq.f32.partialorder %v1880, 0.0
      %v2081 = vand.u32 %v1880, 2147483648
      %v2082 = vsel %vm2080, %v2081, %v2079
      %v2083 = vrsqrt.pop %v1881
      %v2084 = vmul.f32 %v1881, %v2083
      %vm2085 = vcmp.eq.f32.partialorder %v1881, inf
      %v2086 = vsel %vm2085, %v1881, %v2084
      %vm2087 = vcmp.eq.f32.partialorder %v1881, 0.0
      %v2088 = vand.u32 %v1881, 2147483648
      %v2089 = vsel %vm2087, %v2088, %v2086
      %v2090 = vrsqrt.pop %v1882
      %v2091 = vmul.f32 %v1882, %v2090
      %vm2092 = vcmp.eq.f32.partialorder %v1882, inf
      %v2093 = vsel %vm2092, %v1882, %v2091
      %vm2094 = vcmp.eq.f32.partialorder %v1882, 0.0
      %v2095 = vand.u32 %v1882, 2147483648
      %v2096 = vsel %vm2094, %v2095, %v2093
      %v2097 = vrsqrt.pop %v1883
      %v2098 = vmul.f32 %v1883, %v2097
      %vm2099 = vcmp.eq.f32.partialorder %v1883, inf
      %v2100 = vsel %vm2099, %v1883, %v2098
      %vm2101 = vcmp.eq.f32.partialorder %v1883, 0.0
      %v2102 = vand.u32 %v1883, 2147483648
      %v2103 = vsel %vm2101, %v2102, %v2100
      %v2104 = vrsqrt.pop %v1884
      %v2105 = vmul.f32 %v1884, %v2104
      %vm2106 = vcmp.eq.f32.partialorder %v1884, inf
      %v2107 = vsel %vm2106, %v1884, %v2105
      %vm2108 = vcmp.eq.f32.partialorder %v1884, 0.0
      %v2109 = vand.u32 %v1884, 2147483648
      %v2110 = vsel %vm2108, %v2109, %v2107
      %v2111 = vrsqrt.pop %v1885
      %v2112 = vmul.f32 %v1885, %v2111
      %vm2113 = vcmp.eq.f32.partialorder %v1885, inf
      %v2114 = vsel %vm2113, %v1885, %v2112
      %vm2115 = vcmp.eq.f32.partialorder %v1885, 0.0
      %v2116 = vand.u32 %v1885, 2147483648
      %v2117 = vsel %vm2115, %v2116, %v2114
      %v2118 = vrsqrt.pop %v1886
      %v2119 = vmul.f32 %v1886, %v2118
      %vm2120 = vcmp.eq.f32.partialorder %v1886, inf
      %v2121 = vsel %vm2120, %v1886, %v2119
      %vm2122 = vcmp.eq.f32.partialorder %v1886, 0.0
      %v2123 = vand.u32 %v1886, 2147483648
      %v2124 = vsel %vm2122, %v2123, %v2121
      %v2125 = vrsqrt.pop %v1887
      %v2126 = vmul.f32 %v1887, %v2125
      %vm2127 = vcmp.eq.f32.partialorder %v1887, inf
      %v2128 = vsel %vm2127, %v1887, %v2126
      %vm2129 = vcmp.eq.f32.partialorder %v1887, 0.0
      %v2130 = vand.u32 %v1887, 2147483648
      %v2131 = vsel %vm2129, %v2130, %v2128
      %v2132 = vrsqrt.pop %v1888
      %v2133 = vmul.f32 %v1888, %v2132
      %vm2134 = vcmp.eq.f32.partialorder %v1888, inf
      %v2135 = vsel %vm2134, %v1888, %v2133
      %vm2136 = vcmp.eq.f32.partialorder %v1888, 0.0
      %v2137 = vand.u32 %v1888, 2147483648
      %v2138 = vsel %vm2136, %v2137, %v2135
      %v2139 = vrsqrt.pop %v1889
      %v2140 = vmul.f32 %v1889, %v2139
      %vm2141 = vcmp.eq.f32.partialorder %v1889, inf
      %v2142 = vsel %vm2141, %v1889, %v2140
      %vm2143 = vcmp.eq.f32.partialorder %v1889, 0.0
      %v2144 = vand.u32 %v1889, 2147483648
      %v2145 = vsel %vm2143, %v2144, %v2142
      %v2146 = vrsqrt.pop %v1890
      %v2147 = vmul.f32 %v1890, %v2146
      %vm2148 = vcmp.eq.f32.partialorder %v1890, inf
      %v2149 = vsel %vm2148, %v1890, %v2147
      %vm2150 = vcmp.eq.f32.partialorder %v1890, 0.0
      %v2151 = vand.u32 %v1890, 2147483648
      %v2152 = vsel %vm2150, %v2151, %v2149
      %v2153 = vrsqrt.pop %v1891
      %v2154 = vmul.f32 %v1891, %v2153
      %vm2155 = vcmp.eq.f32.partialorder %v1891, inf
      %v2156 = vsel %vm2155, %v1891, %v2154
      %vm2157 = vcmp.eq.f32.partialorder %v1891, 0.0
      %v2158 = vand.u32 %v1891, 2147483648
      %v2159 = vsel %vm2157, %v2158, %v2156
      %v2160 = vrsqrt.pop %v1892
      %v2161 = vmul.f32 %v1892, %v2160
      %vm2162 = vcmp.eq.f32.partialorder %v1892, inf
      %v2163 = vsel %vm2162, %v1892, %v2161
      %vm2164 = vcmp.eq.f32.partialorder %v1892, 0.0
      %v2165 = vand.u32 %v1892, 2147483648
      %v2166 = vsel %vm2164, %v2165, %v2163
      %v2167 = vrsqrt.pop %v1893
      %v2168 = vmul.f32 %v1893, %v2167
      %vm2169 = vcmp.eq.f32.partialorder %v1893, inf
      %v2170 = vsel %vm2169, %v1893, %v2168
      %vm2171 = vcmp.eq.f32.partialorder %v1893, 0.0
      %v2172 = vand.u32 %v1893, 2147483648
      %v2173 = vsel %vm2171, %v2172, %v2170
      %v2174 = vrsqrt.pop %v1894
      %v2175 = vmul.f32 %v1894, %v2174
      %vm2176 = vcmp.eq.f32.partialorder %v1894, inf
      %v2177 = vsel %vm2176, %v1894, %v2175
      %vm2178 = vcmp.eq.f32.partialorder %v1894, 0.0
      %v2179 = vand.u32 %v1894, 2147483648
      %v2180 = vsel %vm2178, %v2179, %v2177
      %v2181 = vrsqrt.pop %v1895
      %v2182 = vmul.f32 %v1895, %v2181
      %vm2183 = vcmp.eq.f32.partialorder %v1895, inf
      %v2184 = vsel %vm2183, %v1895, %v2182
      %vm2185 = vcmp.eq.f32.partialorder %v1895, 0.0
      %v2186 = vand.u32 %v1895, 2147483648
      %v2187 = vsel %vm2185, %v2186, %v2184
      %v2188 = vrsqrt.pop %v1896
      %v2189 = vmul.f32 %v1896, %v2188
      %vm2190 = vcmp.eq.f32.partialorder %v1896, inf
      %v2191 = vsel %vm2190, %v1896, %v2189
      %vm2192 = vcmp.eq.f32.partialorder %v1896, 0.0
      %v2193 = vand.u32 %v1896, 2147483648
      %v2194 = vsel %vm2192, %v2193, %v2191
      %v2195 = vrsqrt.pop %v1897
      %v2196 = vmul.f32 %v1897, %v2195
      %vm2197 = vcmp.eq.f32.partialorder %v1897, inf
      %v2198 = vsel %vm2197, %v1897, %v2196
      %vm2199 = vcmp.eq.f32.partialorder %v1897, 0.0
      %v2200 = vand.u32 %v1897, 2147483648
      %v2201 = vsel %vm2199, %v2200, %v2198
      %v2202 = vrsqrt.pop %v1898
      %v2203 = vmul.f32 %v1898, %v2202
      %vm2204 = vcmp.eq.f32.partialorder %v1898, inf
      %v2205 = vsel %vm2204, %v1898, %v2203
      %vm2206 = vcmp.eq.f32.partialorder %v1898, 0.0
      %v2207 = vand.u32 %v1898, 2147483648
      %v2208 = vsel %vm2206, %v2207, %v2205
      %v2209 = vrsqrt.pop %v1899
      %v2210 = vmul.f32 %v1899, %v2209
      %vm2211 = vcmp.eq.f32.partialorder %v1899, inf
      %v2212 = vsel %vm2211, %v1899, %v2210
      %vm2213 = vcmp.eq.f32.partialorder %v1899, 0.0
      %v2214 = vand.u32 %v1899, 2147483648
      %v2215 = vsel %vm2213, %v2214, %v2212
      %v2216 = vrsqrt.pop %v1900
      %v2217 = vmul.f32 %v1900, %v2216
      %vm2218 = vcmp.eq.f32.partialorder %v1900, inf
      %v2219 = vsel %vm2218, %v1900, %v2217
      %vm2220 = vcmp.eq.f32.partialorder %v1900, 0.0
      %v2221 = vand.u32 %v1900, 2147483648
      %v2222 = vsel %vm2220, %v2221, %v2219
      %v2223 = vrsqrt.pop %v1901
      %v2224 = vmul.f32 %v1901, %v2223
      %vm2225 = vcmp.eq.f32.partialorder %v1901, inf
      %v2226 = vsel %vm2225, %v1901, %v2224
      %vm2227 = vcmp.eq.f32.partialorder %v1901, 0.0
      %v2228 = vand.u32 %v1901, 2147483648
      %v2229 = vsel %vm2227, %v2228, %v2226
      %v2230 = vrsqrt.pop %v1902
      %v2231 = vmul.f32 %v1902, %v2230
      %vm2232 = vcmp.eq.f32.partialorder %v1902, inf
      %v2233 = vsel %vm2232, %v1902, %v2231
      %vm2234 = vcmp.eq.f32.partialorder %v1902, 0.0
      %v2235 = vand.u32 %v1902, 2147483648
      %v2236 = vsel %vm2234, %v2235, %v2233
      %v2237 = vrsqrt.pop %v1903
      %v2238 = vmul.f32 %v1903, %v2237
      %vm2239 = vcmp.eq.f32.partialorder %v1903, inf
      %v2240 = vsel %vm2239, %v1903, %v2238
      %vm2241 = vcmp.eq.f32.partialorder %v1903, 0.0
      %v2242 = vand.u32 %v1903, 2147483648
      %v2243 = vsel %vm2241, %v2242, %v2240
      %v2244 = vrsqrt.pop %v1904
      %v2245 = vmul.f32 %v1904, %v2244
      %vm2246 = vcmp.eq.f32.partialorder %v1904, inf
      %v2247 = vsel %vm2246, %v1904, %v2245
      %vm2248 = vcmp.eq.f32.partialorder %v1904, 0.0
      %v2249 = vand.u32 %v1904, 2147483648
      %v2250 = vsel %vm2248, %v2249, %v2247
      %v2251 = vrsqrt.pop %v1905
      %v2252 = vmul.f32 %v1905, %v2251
      %vm2253 = vcmp.eq.f32.partialorder %v1905, inf
      %v2254 = vsel %vm2253, %v1905, %v2252
      %vm2255 = vcmp.eq.f32.partialorder %v1905, 0.0
      %v2256 = vand.u32 %v1905, 2147483648
      %v2257 = vsel %vm2255, %v2256, %v2254
      %v2258 = vrsqrt.pop %v1906
      %v2259 = vmul.f32 %v1906, %v2258
      %vm2260 = vcmp.eq.f32.partialorder %v1906, inf
      %v2261 = vsel %vm2260, %v1906, %v2259
      %vm2262 = vcmp.eq.f32.partialorder %v1906, 0.0
      %v2263 = vand.u32 %v1906, 2147483648
      %v2264 = vsel %vm2262, %v2263, %v2261
      %v2265 = vrsqrt.pop %v1907
      %v2266 = vmul.f32 %v1907, %v2265
      %vm2267 = vcmp.eq.f32.partialorder %v1907, inf
      %v2268 = vsel %vm2267, %v1907, %v2266
      %vm2269 = vcmp.eq.f32.partialorder %v1907, 0.0
      %v2270 = vand.u32 %v1907, 2147483648
      %v2271 = vsel %vm2269, %v2270, %v2268
      %v2272 = vrsqrt.pop %v1908
      %v2273 = vmul.f32 %v1908, %v2272
      %vm2274 = vcmp.eq.f32.partialorder %v1908, inf
      %v2275 = vsel %vm2274, %v1908, %v2273
      %vm2276 = vcmp.eq.f32.partialorder %v1908, 0.0
      %v2277 = vand.u32 %v1908, 2147483648
      %v2278 = vsel %vm2276, %v2277, %v2275
      %v2279 = vrsqrt.pop %v1909
      %v2280 = vmul.f32 %v1909, %v2279
      %vm2281 = vcmp.eq.f32.partialorder %v1909, inf
      %v2282 = vsel %vm2281, %v1909, %v2280
      %vm2283 = vcmp.eq.f32.partialorder %v1909, 0.0
      %v2284 = vand.u32 %v1909, 2147483648
      %v2285 = vsel %vm2283, %v2284, %v2282
      %v2286 = vrsqrt.pop %v1910
      %v2287 = vmul.f32 %v1910, %v2286
      %vm2288 = vcmp.eq.f32.partialorder %v1910, inf
      %v2289 = vsel %vm2288, %v1910, %v2287
      %vm2290 = vcmp.eq.f32.partialorder %v1910, 0.0
      %v2291 = vand.u32 %v1910, 2147483648
      %v2292 = vsel %vm2290, %v2291, %v2289
      %v2293 = vrsqrt.pop %v1911
      %v2294 = vmul.f32 %v1911, %v2293
      %vm2295 = vcmp.eq.f32.partialorder %v1911, inf
      %v2296 = vsel %vm2295, %v1911, %v2294
      %vm2297 = vcmp.eq.f32.partialorder %v1911, 0.0
      %v2298 = vand.u32 %v1911, 2147483648
      %v2299 = vsel %vm2297, %v2298, %v2296
      %v2300 = vrsqrt.pop %v1912
      %v2301 = vmul.f32 %v1912, %v2300
      %vm2302 = vcmp.eq.f32.partialorder %v1912, inf
      %v2303 = vsel %vm2302, %v1912, %v2301
      %vm2304 = vcmp.eq.f32.partialorder %v1912, 0.0
      %v2305 = vand.u32 %v1912, 2147483648
      %v2306 = vsel %vm2304, %v2305, %v2303
      %v2307 = vrsqrt.pop %v1913
      %v2308 = vmul.f32 %v1913, %v2307
      %vm2309 = vcmp.eq.f32.partialorder %v1913, inf
      %v2310 = vsel %vm2309, %v1913, %v2308
      %vm2311 = vcmp.eq.f32.partialorder %v1913, 0.0
      %v2312 = vand.u32 %v1913, 2147483648
      %v2313 = vsel %vm2311, %v2312, %v2310
      %v2314 = vrsqrt.pop %v1914
      %v2315 = vmul.f32 %v1914, %v2314
      %vm2316 = vcmp.eq.f32.partialorder %v1914, inf
      %v2317 = vsel %vm2316, %v1914, %v2315
      %vm2318 = vcmp.eq.f32.partialorder %v1914, 0.0
      %v2319 = vand.u32 %v1914, 2147483648
      %v2320 = vsel %vm2318, %v2319, %v2317
      %v2321 = vrsqrt.pop %v1915
      %v2322 = vmul.f32 %v1915, %v2321
      %vm2323 = vcmp.eq.f32.partialorder %v1915, inf
      %v2324 = vsel %vm2323, %v1915, %v2322
      %vm2325 = vcmp.eq.f32.partialorder %v1915, 0.0
      %v2326 = vand.u32 %v1915, 2147483648
      %v2327 = vsel %vm2325, %v2326, %v2324
      %v2328 = vrsqrt.pop %v1916
      %v2329 = vmul.f32 %v1916, %v2328
      %vm2330 = vcmp.eq.f32.partialorder %v1916, inf
      %v2331 = vsel %vm2330, %v1916, %v2329
      %vm2332 = vcmp.eq.f32.partialorder %v1916, 0.0
      %v2333 = vand.u32 %v1916, 2147483648
      %v2334 = vsel %vm2332, %v2333, %v2331
      %v2335 = vrsqrt.pop %v1917
      %v2336 = vmul.f32 %v1917, %v2335
      %vm2337 = vcmp.eq.f32.partialorder %v1917, inf
      %v2338 = vsel %vm2337, %v1917, %v2336
      %vm2339 = vcmp.eq.f32.partialorder %v1917, 0.0
      %v2340 = vand.u32 %v1917, 2147483648
      %v2341 = vsel %vm2339, %v2340, %v2338
      %v2342 = vrsqrt.pop %v1918
      %v2343 = vmul.f32 %v1918, %v2342
      %vm2344 = vcmp.eq.f32.partialorder %v1918, inf
      %v2345 = vsel %vm2344, %v1918, %v2343
      %vm2346 = vcmp.eq.f32.partialorder %v1918, 0.0
      %v2347 = vand.u32 %v1918, 2147483648
      %v2348 = vsel %vm2346, %v2347, %v2345
      %v2349 = vrsqrt.pop %v1919
      %v2350 = vmul.f32 %v1919, %v2349
      %vm2351 = vcmp.eq.f32.partialorder %v1919, inf
      %v2352 = vsel %vm2351, %v1919, %v2350
      %vm2353 = vcmp.eq.f32.partialorder %v1919, 0.0
      %v2354 = vand.u32 %v1919, 2147483648
      %v2355 = vsel %vm2353, %v2354, %v2352
      %v2356 = vrsqrt.pop %v1920
      %v2357 = vmul.f32 %v1920, %v2356
      %vm2358 = vcmp.eq.f32.partialorder %v1920, inf
      %v2359 = vsel %vm2358, %v1920, %v2357
      %vm2360 = vcmp.eq.f32.partialorder %v1920, 0.0
      %v2361 = vand.u32 %v1920, 2147483648
      %v2362 = vsel %vm2360, %v2361, %v2359
      %v2363 = vrsqrt.pop %v1921
      %v2364 = vmul.f32 %v1921, %v2363
      %vm2365 = vcmp.eq.f32.partialorder %v1921, inf
      %v2366 = vsel %vm2365, %v1921, %v2364
      %vm2367 = vcmp.eq.f32.partialorder %v1921, 0.0
      %v2368 = vand.u32 %v1921, 2147483648
      %v2369 = vsel %vm2367, %v2368, %v2366
      %v2370 = vpack.c.bf16 %v818, %v817
      %v2371 = vpack.c.bf16 %v820, %v819
      %v2372 = vpack.c.bf16 %v822, %v821
      %v2373 = vpack.c.bf16 %v824, %v823
      %v2374 = vpack.c.bf16 %v826, %v825
      %v2375 = vpack.c.bf16 %v828, %v827
      %v2376 = vpack.c.bf16 %v830, %v829
      %v2377 = vpack.c.bf16 %v832, %v831
      %v2378 = vpack.c.bf16 %v834, %v833
      %v2379 = vpack.c.bf16 %v836, %v835
      %v2380 = vpack.c.bf16 %v838, %v837
      %v2381 = vpack.c.bf16 %v840, %v839
      %v2382 = vpack.c.bf16 %v842, %v841
      %v2383 = vpack.c.bf16 %v844, %v843
      %v2384 = vpack.c.bf16 %v846, %v845
      %v2385 = vpack.c.bf16 %v848, %v847
      %v2386 = vpack.c.bf16 %v850, %v849
      %v2387 = vpack.c.bf16 %v852, %v851
      %v2388 = vpack.c.bf16 %v854, %v853
      %v2389 = vpack.c.bf16 %v856, %v855
      %v2390 = vpack.c.bf16 %v858, %v857
      %v2391 = vpack.c.bf16 %v860, %v859
      %v2392 = vpack.c.bf16 %v862, %v861
      %v2393 = vpack.c.bf16 %v864, %v863
      %v2394 = vpack.c.bf16 %v866, %v865
      %v2395 = vpack.c.bf16 %v868, %v867
      %v2396 = vpack.c.bf16 %v870, %v869
      %v2397 = vpack.c.bf16 %v872, %v871
      %v2398 = vpack.c.bf16 %v874, %v873
      %v2399 = vpack.c.bf16 %v876, %v875
      %v2400 = vpack.c.bf16 %v878, %v877
      %v2401 = vpack.c.bf16 %v880, %v879
      %v2402 = vlaneseq
      %v2403 = vshrl.u32 %v2402, 7
      %v2404 = vsub.s32 1, %v2403
      %v2405 = vrot.slane %v239, %v2404
      %2407 = vrot.lane.b32.xlu0 %v2405, 64
      %v2408 = vpop.permute.xlu0 %2407
      %v2410 = vmul.f32 %v1138, %v2408
      %v2411 = vmul.f32 %v1140, %v2408
      %v2412 = vmul.f32 %v1142, %v2408
      %v2413 = vmul.f32 %v1144, %v2408
      %v2414 = vmul.f32 %v1146, %v2408
      %v2415 = vmul.f32 %v1148, %v2408
      %v2416 = vmul.f32 %v1150, %v2408
      %v2417 = vmul.f32 %v1152, %v2408
      %v2418 = vmul.f32 %v1154, %v2408
      %v2419 = vmul.f32 %v1156, %v2408
      %v2420 = vmul.f32 %v1158, %v2408
      %v2421 = vmul.f32 %v1160, %v2408
      %v2422 = vmul.f32 %v1162, %v2408
      %v2423 = vmul.f32 %v1164, %v2408
      %v2424 = vmul.f32 %v1166, %v2408
      %v2425 = vmul.f32 %v1168, %v2408
      %v2426 = vmul.f32 %v1170, %v2408
      %v2427 = vmul.f32 %v1172, %v2408
      %v2428 = vmul.f32 %v1174, %v2408
      %v2429 = vmul.f32 %v1176, %v2408
      %v2430 = vmul.f32 %v1178, %v2408
      %v2431 = vmul.f32 %v1180, %v2408
      %v2432 = vmul.f32 %v1182, %v2408
      %v2433 = vmul.f32 %v1184, %v2408
      %v2434 = vmul.f32 %v1186, %v2408
      %v2435 = vmul.f32 %v1188, %v2408
      %v2436 = vmul.f32 %v1190, %v2408
      %v2437 = vmul.f32 %v1192, %v2408
      %v2438 = vmul.f32 %v1194, %v2408
      %v2439 = vmul.f32 %v1196, %v2408
      %v2440 = vmul.f32 %v1198, %v2408
      %v2441 = vmul.f32 %v1200, %v2408
      %v2442 = vmul.f32 %v1202, %v2408
      %v2443 = vmul.f32 %v1204, %v2408
      %v2444 = vmul.f32 %v1206, %v2408
      %v2445 = vmul.f32 %v1208, %v2408
      %v2446 = vmul.f32 %v1210, %v2408
      %v2447 = vmul.f32 %v1212, %v2408
      %v2448 = vmul.f32 %v1214, %v2408
      %v2449 = vmul.f32 %v1216, %v2408
      %v2450 = vmul.f32 %v1218, %v2408
      %v2451 = vmul.f32 %v1220, %v2408
      %v2452 = vmul.f32 %v1222, %v2408
      %v2453 = vmul.f32 %v1224, %v2408
      %v2454 = vmul.f32 %v1226, %v2408
      %v2455 = vmul.f32 %v1228, %v2408
      %v2456 = vmul.f32 %v1230, %v2408
      %v2457 = vmul.f32 %v1232, %v2408
      %v2458 = vmul.f32 %v1234, %v2408
      %v2459 = vmul.f32 %v1236, %v2408
      %v2460 = vmul.f32 %v1238, %v2408
      %v2461 = vmul.f32 %v1240, %v2408
      %v2462 = vmul.f32 %v1242, %v2408
      %v2463 = vmul.f32 %v1244, %v2408
      %v2464 = vmul.f32 %v1246, %v2408
      %v2465 = vmul.f32 %v1248, %v2408
      %v2466 = vmul.f32 %v1250, %v2408
      %v2467 = vmul.f32 %v1252, %v2408
      %v2468 = vmul.f32 %v1254, %v2408
      %v2469 = vmul.f32 %v1256, %v2408
      %v2470 = vmul.f32 %v1258, %v2408
      %v2471 = vmul.f32 %v1260, %v2408
      %v2472 = vmul.f32 %v1262, %v2408
      %v2473 = vmul.f32 %v1264, %v2408
      %v2478 = vunpack.c.l.b16 %v272
      %v2479 = vunpack.c.l.b16 %v273
      %v2480 = vunpack.c.l.b16 %v274
      %v2481 = vunpack.c.l.b16 %v275
      %v2482 = vpack.c.b16 %v2479, %v2478
      %v2483 = vpack.c.b16 %v2481, %v2480
      %2550 = vrot.lane.b32.xlu0 %v2410, 64
      %v2551 = vpop.permute.xlu0 %2550
      %2552 = vrot.lane.b32.xlu0 %v2411, 64
      %v2553 = vpop.permute.xlu0 %2552
      %2554 = vrot.lane.b32.xlu0 %v2412, 64
      %v2555 = vpop.permute.xlu0 %2554
      %2556 = vrot.lane.b32.xlu0 %v2413, 64
      %v2557 = vpop.permute.xlu0 %2556
      %2558 = vrot.lane.b32.xlu0 %v2414, 64
      %v2559 = vpop.permute.xlu0 %2558
      %2560 = vrot.lane.b32.xlu0 %v2415, 64
      %v2561 = vpop.permute.xlu0 %2560
      %2562 = vrot.lane.b32.xlu0 %v2416, 64
      %v2563 = vpop.permute.xlu0 %2562
      %2564 = vrot.lane.b32.xlu0 %v2417, 64
      %v2565 = vpop.permute.xlu0 %2564
      %2566 = vrot.lane.b32.xlu0 %v2418, 64
      %v2567 = vpop.permute.xlu0 %2566
      %2568 = vrot.lane.b32.xlu0 %v2419, 64
      %v2569 = vpop.permute.xlu0 %2568
      %2570 = vrot.lane.b32.xlu0 %v2420, 64
      %v2571 = vpop.permute.xlu0 %2570
      %2572 = vrot.lane.b32.xlu0 %v2421, 64
      %v2573 = vpop.permute.xlu0 %2572
      %2574 = vrot.lane.b32.xlu0 %v2422, 64
      %v2575 = vpop.permute.xlu0 %2574
      %2576 = vrot.lane.b32.xlu0 %v2423, 64
      %v2577 = vpop.permute.xlu0 %2576
      %2578 = vrot.lane.b32.xlu0 %v2424, 64
      %v2579 = vpop.permute.xlu0 %2578
      %2580 = vrot.lane.b32.xlu0 %v2425, 64
      %v2581 = vpop.permute.xlu0 %2580
      %2582 = vrot.lane.b32.xlu0 %v2426, 64
      %v2583 = vpop.permute.xlu0 %2582
      %2584 = vrot.lane.b32.xlu0 %v2427, 64
      %v2585 = vpop.permute.xlu0 %2584
      %2586 = vrot.lane.b32.xlu0 %v2428, 64
      %v2587 = vpop.permute.xlu0 %2586
      %2588 = vrot.lane.b32.xlu0 %v2429, 64
      %v2589 = vpop.permute.xlu0 %2588
      %2590 = vrot.lane.b32.xlu0 %v2430, 64
      %v2591 = vpop.permute.xlu0 %2590
      %2592 = vrot.lane.b32.xlu0 %v2431, 64
      %v2593 = vpop.permute.xlu0 %2592
      %2594 = vrot.lane.b32.xlu0 %v2432, 64
      %v2595 = vpop.permute.xlu0 %2594
      %2596 = vrot.lane.b32.xlu0 %v2433, 64
      %v2597 = vpop.permute.xlu0 %2596
      %2598 = vrot.lane.b32.xlu0 %v2434, 64
      %v2599 = vpop.permute.xlu0 %2598
      %2600 = vrot.lane.b32.xlu0 %v2435, 64
      %v2601 = vpop.permute.xlu0 %2600
      %2602 = vrot.lane.b32.xlu0 %v2436, 64
      %v2603 = vpop.permute.xlu0 %2602
      %2604 = vrot.lane.b32.xlu0 %v2437, 64
      %v2605 = vpop.permute.xlu0 %2604
      %2606 = vrot.lane.b32.xlu0 %v2438, 64
      %v2607 = vpop.permute.xlu0 %2606
      %2608 = vrot.lane.b32.xlu0 %v2439, 64
      %v2609 = vpop.permute.xlu0 %2608
      %2610 = vrot.lane.b32.xlu0 %v2440, 64
      %v2611 = vpop.permute.xlu0 %2610
      %2612 = vrot.lane.b32.xlu0 %v2441, 64
      %v2613 = vpop.permute.xlu0 %2612
      %2614 = vrot.lane.b32.xlu0 %v2442, 64
      %v2615 = vpop.permute.xlu0 %2614
      %2616 = vrot.lane.b32.xlu0 %v2443, 64
      %v2617 = vpop.permute.xlu0 %2616
      %2618 = vrot.lane.b32.xlu0 %v2444, 64
      %v2619 = vpop.permute.xlu0 %2618
      %2620 = vrot.lane.b32.xlu0 %v2445, 64
      %v2621 = vpop.permute.xlu0 %2620
      %2622 = vrot.lane.b32.xlu0 %v2446, 64
      %v2623 = vpop.permute.xlu0 %2622
      %2624 = vrot.lane.b32.xlu0 %v2447, 64
      %v2625 = vpop.permute.xlu0 %2624
      %2626 = vrot.lane.b32.xlu0 %v2448, 64
      %v2627 = vpop.permute.xlu0 %2626
      %2628 = vrot.lane.b32.xlu0 %v2449, 64
      %v2629 = vpop.permute.xlu0 %2628
      %2630 = vrot.lane.b32.xlu0 %v2450, 64
      %v2631 = vpop.permute.xlu0 %2630
      %2632 = vrot.lane.b32.xlu0 %v2451, 64
      %v2633 = vpop.permute.xlu0 %2632
      %2634 = vrot.lane.b32.xlu0 %v2452, 64
      %v2635 = vpop.permute.xlu0 %2634
      %2636 = vrot.lane.b32.xlu0 %v2453, 64
      %v2637 = vpop.permute.xlu0 %2636
      %2638 = vrot.lane.b32.xlu0 %v2454, 64
      %v2639 = vpop.permute.xlu0 %2638
      %2640 = vrot.lane.b32.xlu0 %v2455, 64
      %v2641 = vpop.permute.xlu0 %2640
      %2642 = vrot.lane.b32.xlu0 %v2456, 64
      %v2643 = vpop.permute.xlu0 %2642
      %2644 = vrot.lane.b32.xlu0 %v2457, 64
      %v2645 = vpop.permute.xlu0 %2644
      %2646 = vrot.lane.b32.xlu0 %v2458, 64
      %v2647 = vpop.permute.xlu0 %2646
      %2648 = vrot.lane.b32.xlu0 %v2459, 64
      %v2649 = vpop.permute.xlu0 %2648
      %2650 = vrot.lane.b32.xlu0 %v2460, 64
      %v2651 = vpop.permute.xlu0 %2650
      %2652 = vrot.lane.b32.xlu0 %v2461, 64
      %v2653 = vpop.permute.xlu0 %2652
      %2654 = vrot.lane.b32.xlu0 %v2462, 64
      %v2655 = vpop.permute.xlu0 %2654
      %2656 = vrot.lane.b32.xlu0 %v2463, 64
      %v2657 = vpop.permute.xlu0 %2656
      %2658 = vrot.lane.b32.xlu0 %v2464, 64
      %v2659 = vpop.permute.xlu0 %2658
      %2660 = vrot.lane.b32.xlu0 %v2465, 64
      %v2661 = vpop.permute.xlu0 %2660
      %2662 = vrot.lane.b32.xlu0 %v2466, 64
      %v2663 = vpop.permute.xlu0 %2662
      %2664 = vrot.lane.b32.xlu0 %v2467, 64
      %v2665 = vpop.permute.xlu0 %2664
      %2666 = vrot.lane.b32.xlu0 %v2468, 64
      %v2667 = vpop.permute.xlu0 %2666
      %2668 = vrot.lane.b32.xlu0 %v2469, 64
      %v2669 = vpop.permute.xlu0 %2668
      %2670 = vrot.lane.b32.xlu0 %v2470, 64
      %v2671 = vpop.permute.xlu0 %2670
      %2672 = vrot.lane.b32.xlu0 %v2471, 64
      %v2673 = vpop.permute.xlu0 %2672
      %2674 = vrot.lane.b32.xlu0 %v2472, 64
      %v2675 = vpop.permute.xlu0 %2674
      %2676 = vrot.lane.b32.xlu0 %v2473, 64
      %v2677 = vpop.permute.xlu0 %2676
      %vm2742 = vcmask 261120
      %v2744 = vsel %vm2742, %v2370, 0
      %v2747 = vsel %vm2742, %v2371, 0
      %v2750 = vsel %vm2742, %v2372, 0
      %v2753 = vsel %vm2742, %v2373, 0
      %v2756 = vsel %vm2742, %v2374, 0
      %v2759 = vsel %vm2742, %v2375, 0
      %v2762 = vsel %vm2742, %v2376, 0
      %v2765 = vsel %vm2742, %v2377, 0
      %v2768 = vsel %vm2742, %v2378, 0
      %v2771 = vsel %vm2742, %v2379, 0
      %v2774 = vsel %vm2742, %v2380, 0
      %v2777 = vsel %vm2742, %v2381, 0
      %v2780 = vsel %vm2742, %v2382, 0
      %v2783 = vsel %vm2742, %v2383, 0
      %v2786 = vsel %vm2742, %v2384, 0
      %v2789 = vsel %vm2742, %v2385, 0
      %v2792 = vsel %vm2742, %v2386, 0
      %v2795 = vsel %vm2742, %v2387, 0
      %v2798 = vsel %vm2742, %v2388, 0
      %v2801 = vsel %vm2742, %v2389, 0
      %v2804 = vsel %vm2742, %v2390, 0
      %v2807 = vsel %vm2742, %v2391, 0
      %v2810 = vsel %vm2742, %v2392, 0
      %v2813 = vsel %vm2742, %v2393, 0
      %v2816 = vsel %vm2742, %v2394, 0
      %v2819 = vsel %vm2742, %v2395, 0
      %v2822 = vsel %vm2742, %v2396, 0
      %v2825 = vsel %vm2742, %v2397, 0
      %v2828 = vsel %vm2742, %v2398, 0
      %v2831 = vsel %vm2742, %v2399, 0
      %v2834 = vsel %vm2742, %v2400, 0
      %v2837 = vsel %vm2742, %v2401, 0
      %2839 = vmatprep.subr.bf16.mxu0 0
      %2840 = vmatpush1.bf16.msra.mxu0 %v2482
      %2841 = vmatprep.subr.bf16.mxu0 0
      %2842 = vmatpush1.bf16.msra.mxu0 %v2483
      %2843 = vmatprep.subr.bf16.mxu0 0
      %2844 = vmatpush1.bf16.msra.mxu0 0
      %2845 = vmatprep.subr.bf16.mxu0 0
      %2846 = vmatpush1.bf16.msra.mxu0 0
      %2847 = vmatprep.subr.bf16.mxu0 0
      %2848 = vmatpush1.bf16.msra.mxu0 0
      %2849 = vmatprep.subr.bf16.mxu0 0
      %2850 = vmatpush1.bf16.msra.mxu0 0
      %2851 = vmatprep.subr.bf16.mxu0 0
      %2852 = vmatpush1.bf16.msra.mxu0 0
      %2853 = vmatprep.subr.bf16.mxu0 0
      %2854 = vmatpush1.bf16.msra.mxu0 0
      %2855 = vmatprep.subr.bf16.mxu0 0
      %2856 = vmatpush1.bf16.msra.mxu0 0
      %2857 = vmatprep.subr.bf16.mxu0 0
      %2858 = vmatpush1.bf16.msra.mxu0 0
      %2859 = vmatprep.subr.bf16.mxu0 0
      %2860 = vmatpush1.bf16.msra.mxu0 0
      %2861 = vmatprep.subr.bf16.mxu0 0
      %2862 = vmatpush1.bf16.msra.mxu0 0
      %2863 = vmatprep.subr.bf16.mxu0 0
      %2864 = vmatpush1.bf16.msra.mxu0 0
      %2865 = vmatprep.subr.bf16.mxu0 0
      %2866 = vmatpush1.bf16.msra.mxu0 0
      %2867 = vmatprep.subr.bf16.mxu0 0
      %2868 = vmatpush1.bf16.msra.mxu0 0
      %2869 = vmatprep.subr.bf16.mxu0 0
      %2870 = vmatpush1.bf16.msra.mxu0 0
      %2871 = vmatprep.mubr.bf16.mxu0 0
      %2872 = vmatmul.mubr.bf16.gmra.mrb[0].mxu0 %v2744
      %v2873 = vpop.f32.mrb[0].mxu0
      %v2874 = vadd.f32 %v2551, %v2873
      %v2875 = vpop.f32.mrb[0].mxu0
      %v2876 = vpop.f32.mrb[0].mxu0
      %v2877 = vadd.f32 %v2553, %v2876
      %v2878 = vpop.f32.mrb[0].mxu0
      %2879 = vmatprep.mubr.bf16.mxu0 0
      %2880 = vmatmul.mubr.bf16.gmra.mrb[0].mxu0 %v2747
      %v2881 = vpop.f32.mrb[0].mxu0
      %v2882 = vadd.f32 %v2555, %v2881
      %v2883 = vpop.f32.mrb[0].mxu0
      %v2884 = vpop.f32.mrb[0].mxu0
      %v2885 = vadd.f32 %v2557, %v2884
      %v2886 = vpop.f32.mrb[0].mxu0
      %2887 = vmatprep.mubr.bf16.mxu0 0
      %2888 = vmatmul.mubr.bf16.gmra.mrb[0].mxu0 %v2750
      %v2889 = vpop.f32.mrb[0].mxu0
      %v2890 = vadd.f32 %v2559, %v2889
      %v2891 = vpop.f32.mrb[0].mxu0
      %v2892 = vpop.f32.mrb[0].mxu0
      %v2893 = vadd.f32 %v2561, %v2892
      %v2894 = vpop.f32.mrb[0].mxu0
      %2895 = vmatprep.mubr.bf16.mxu0 0
      %2896 = vmatmul.mubr.bf16.gmra.mrb[0].mxu0 %v2753
      %v2897 = vpop.f32.mrb[0].mxu0
      %v2898 = vadd.f32 %v2563, %v2897
      %v2899 = vpop.f32.mrb[0].mxu0
      %v2900 = vpop.f32.mrb[0].mxu0
      %v2901 = vadd.f32 %v2565, %v2900
      %v2902 = vpop.f32.mrb[0].mxu0
      %2903 = vmatprep.mubr.bf16.mxu0 0
      %2904 = vmatmul.mubr.bf16.gmra.mrb[0].mxu0 %v2756
      %v2905 = vpop.f32.mrb[0].mxu0
      %v2906 = vadd.f32 %v2567, %v2905
      %v2907 = vpop.f32.mrb[0].mxu0
      %v2908 = vpop.f32.mrb[0].mxu0
      %v2909 = vadd.f32 %v2569, %v2908
      %v2910 = vpop.f32.mrb[0].mxu0
      %2911 = vmatprep.mubr.bf16.mxu0 0
      %2912 = vmatmul.mubr.bf16.gmra.mrb[0].mxu0 %v2759
      %v2913 = vpop.f32.mrb[0].mxu0
      %v2914 = vadd.f32 %v2571, %v2913
      %v2915 = vpop.f32.mrb[0].mxu0
      %v2916 = vpop.f32.mrb[0].mxu0
      %v2917 = vadd.f32 %v2573, %v2916
      %v2918 = vpop.f32.mrb[0].mxu0
      %2919 = vmatprep.mubr.bf16.mxu0 0
      %2920 = vmatmul.mubr.bf16.gmra.mrb[0].mxu0 %v2762
      %v2921 = vpop.f32.mrb[0].mxu0
      %v2922 = vadd.f32 %v2575, %v2921
      %v2923 = vpop.f32.mrb[0].mxu0
      %v2924 = vpop.f32.mrb[0].mxu0
      %v2925 = vadd.f32 %v2577, %v2924
      %v2926 = vpop.f32.mrb[0].mxu0
      %2927 = vmatprep.mubr.bf16.mxu0 0
      %2928 = vmatmul.mubr.bf16.gmra.mrb[0].mxu0 %v2765
      %v2929 = vpop.f32.mrb[0].mxu0
      %v2930 = vadd.f32 %v2579, %v2929
      %v2931 = vpop.f32.mrb[0].mxu0
      %v2932 = vpop.f32.mrb[0].mxu0
      %v2933 = vadd.f32 %v2581, %v2932
      %v2934 = vpop.f32.mrb[0].mxu0
      %2935 = vmatprep.mubr.bf16.mxu0 0
      %2936 = vmatmul.mubr.bf16.gmra.mrb[0].mxu0 %v2768
      %v2937 = vpop.f32.mrb[0].mxu0
      %v2938 = vadd.f32 %v2583, %v2937
      %v2939 = vpop.f32.mrb[0].mxu0
      %v2940 = vpop.f32.mrb[0].mxu0
      %v2941 = vadd.f32 %v2585, %v2940
      %v2942 = vpop.f32.mrb[0].mxu0
      %2943 = vmatprep.mubr.bf16.mxu0 0
      %2944 = vmatmul.mubr.bf16.gmra.mrb[0].mxu0 %v2771
      %v2945 = vpop.f32.mrb[0].mxu0
      %v2946 = vadd.f32 %v2587, %v2945
      %v2947 = vpop.f32.mrb[0].mxu0
      %v2948 = vpop.f32.mrb[0].mxu0
      %v2949 = vadd.f32 %v2589, %v2948
      %v2950 = vpop.f32.mrb[0].mxu0
      %2951 = vmatprep.mubr.bf16.mxu0 0
      %2952 = vmatmul.mubr.bf16.gmra.mrb[0].mxu0 %v2774
      %v2953 = vpop.f32.mrb[0].mxu0
      %v2954 = vadd.f32 %v2591, %v2953
      %v2955 = vpop.f32.mrb[0].mxu0
      %v2956 = vpop.f32.mrb[0].mxu0
      %v2957 = vadd.f32 %v2593, %v2956
      %v2958 = vpop.f32.mrb[0].mxu0
      %2959 = vmatprep.mubr.bf16.mxu0 0
      %2960 = vmatmul.mubr.bf16.gmra.mrb[0].mxu0 %v2777
      %v2961 = vpop.f32.mrb[0].mxu0
      %v2962 = vadd.f32 %v2595, %v2961
      %v2963 = vpop.f32.mrb[0].mxu0
      %v2964 = vpop.f32.mrb[0].mxu0
      %v2965 = vadd.f32 %v2597, %v2964
      %v2966 = vpop.f32.mrb[0].mxu0
      %2967 = vmatprep.mubr.bf16.mxu0 0
      %2968 = vmatmul.mubr.bf16.gmra.mrb[0].mxu0 %v2780
      %v2969 = vpop.f32.mrb[0].mxu0
      %v2970 = vadd.f32 %v2599, %v2969
      %v2971 = vpop.f32.mrb[0].mxu0
      %v2972 = vpop.f32.mrb[0].mxu0
      %v2973 = vadd.f32 %v2601, %v2972
      %v2974 = vpop.f32.mrb[0].mxu0
      %2975 = vmatprep.mubr.bf16.mxu0 0
      %2976 = vmatmul.mubr.bf16.gmra.mrb[0].mxu0 %v2783
      %v2977 = vpop.f32.mrb[0].mxu0
      %v2978 = vadd.f32 %v2603, %v2977
      %v2979 = vpop.f32.mrb[0].mxu0
      %v2980 = vpop.f32.mrb[0].mxu0
      %v2981 = vadd.f32 %v2605, %v2980
      %v2982 = vpop.f32.mrb[0].mxu0
      %2983 = vmatprep.mubr.bf16.mxu0 0
      %2984 = vmatmul.mubr.bf16.gmra.mrb[0].mxu0 %v2786
      %v2985 = vpop.f32.mrb[0].mxu0
      %v2986 = vadd.f32 %v2607, %v2985
      %v2987 = vpop.f32.mrb[0].mxu0
      %v2988 = vpop.f32.mrb[0].mxu0
      %v2989 = vadd.f32 %v2609, %v2988
      %v2990 = vpop.f32.mrb[0].mxu0
      %2991 = vmatprep.mubr.bf16.mxu0 0
      %2992 = vmatmul.mubr.bf16.gmra.mrb[0].mxu0 %v2789
      %v2993 = vpop.f32.mrb[0].mxu0
      %v2994 = vadd.f32 %v2611, %v2993
      %v2995 = vpop.f32.mrb[0].mxu0
      %v2996 = vpop.f32.mrb[0].mxu0
      %v2997 = vadd.f32 %v2613, %v2996
      %v2998 = vpop.f32.mrb[0].mxu0
      %2999 = vmatprep.mubr.bf16.mxu0 0
      %3000 = vmatmul.mubr.bf16.gmra.mrb[0].mxu0 %v2792
      %v3001 = vpop.f32.mrb[0].mxu0
      %v3002 = vadd.f32 %v2615, %v3001
      %v3003 = vpop.f32.mrb[0].mxu0
      %v3004 = vpop.f32.mrb[0].mxu0
      %v3005 = vadd.f32 %v2617, %v3004
      %v3006 = vpop.f32.mrb[0].mxu0
      %3007 = vmatprep.mubr.bf16.mxu0 0
      %3008 = vmatmul.mubr.bf16.gmra.mrb[0].mxu0 %v2795
      %v3009 = vpop.f32.mrb[0].mxu0
      %v3010 = vadd.f32 %v2619, %v3009
      %v3011 = vpop.f32.mrb[0].mxu0
      %v3012 = vpop.f32.mrb[0].mxu0
      %v3013 = vadd.f32 %v2621, %v3012
      %v3014 = vpop.f32.mrb[0].mxu0
      %3015 = vmatprep.mubr.bf16.mxu0 0
      %3016 = vmatmul.mubr.bf16.gmra.mrb[0].mxu0 %v2798
      %v3017 = vpop.f32.mrb[0].mxu0
      %v3018 = vadd.f32 %v2623, %v3017
      %v3019 = vpop.f32.mrb[0].mxu0
      %v3020 = vpop.f32.mrb[0].mxu0
      %v3021 = vadd.f32 %v2625, %v3020
      %v3022 = vpop.f32.mrb[0].mxu0
      %3023 = vmatprep.mubr.bf16.mxu0 0
      %3024 = vmatmul.mubr.bf16.gmra.mrb[0].mxu0 %v2801
      %v3025 = vpop.f32.mrb[0].mxu0
      %v3026 = vadd.f32 %v2627, %v3025
      %v3027 = vpop.f32.mrb[0].mxu0
      %v3028 = vpop.f32.mrb[0].mxu0
      %v3029 = vadd.f32 %v2629, %v3028
      %v3030 = vpop.f32.mrb[0].mxu0
      %3031 = vmatprep.mubr.bf16.mxu0 0
      %3032 = vmatmul.mubr.bf16.gmra.mrb[0].mxu0 %v2804
      %v3033 = vpop.f32.mrb[0].mxu0
      %v3034 = vadd.f32 %v2631, %v3033
      %v3035 = vpop.f32.mrb[0].mxu0
      %v3036 = vpop.f32.mrb[0].mxu0
      %v3037 = vadd.f32 %v2633, %v3036
      %v3038 = vpop.f32.mrb[0].mxu0
      %3039 = vmatprep.mubr.bf16.mxu0 0
      %3040 = vmatmul.mubr.bf16.gmra.mrb[0].mxu0 %v2807
      %v3041 = vpop.f32.mrb[0].mxu0
      %v3042 = vadd.f32 %v2635, %v3041
      %v3043 = vpop.f32.mrb[0].mxu0
      %v3044 = vpop.f32.mrb[0].mxu0
      %v3045 = vadd.f32 %v2637, %v3044
      %v3046 = vpop.f32.mrb[0].mxu0
      %3047 = vmatprep.mubr.bf16.mxu0 0
      %3048 = vmatmul.mubr.bf16.gmra.mrb[0].mxu0 %v2810
      %v3049 = vpop.f32.mrb[0].mxu0
      %v3050 = vadd.f32 %v2639, %v3049
      %v3051 = vpop.f32.mrb[0].mxu0
      %v3052 = vpop.f32.mrb[0].mxu0
      %v3053 = vadd.f32 %v2641, %v3052
      %v3054 = vpop.f32.mrb[0].mxu0
      %3055 = vmatprep.mubr.bf16.mxu0 0
      %3056 = vmatmul.mubr.bf16.gmra.mrb[0].mxu0 %v2813
      %v3057 = vpop.f32.mrb[0].mxu0
      %v3058 = vadd.f32 %v2643, %v3057
      %v3059 = vpop.f32.mrb[0].mxu0
      %v3060 = vpop.f32.mrb[0].mxu0
      %v3061 = vadd.f32 %v2645, %v3060
      %v3062 = vpop.f32.mrb[0].mxu0
      %3063 = vmatprep.mubr.bf16.mxu0 0
      %3064 = vmatmul.mubr.bf16.gmra.mrb[0].mxu0 %v2816
      %v3065 = vpop.f32.mrb[0].mxu0
      %v3066 = vadd.f32 %v2647, %v3065
      %v3067 = vpop.f32.mrb[0].mxu0
      %v3068 = vpop.f32.mrb[0].mxu0
      %v3069 = vadd.f32 %v2649, %v3068
      %v3070 = vpop.f32.mrb[0].mxu0
      %3071 = vmatprep.mubr.bf16.mxu0 0
      %3072 = vmatmul.mubr.bf16.gmra.mrb[0].mxu0 %v2819
      %v3073 = vpop.f32.mrb[0].mxu0
      %v3074 = vadd.f32 %v2651, %v3073
      %v3075 = vpop.f32.mrb[0].mxu0
      %v3076 = vpop.f32.mrb[0].mxu0
      %v3077 = vadd.f32 %v2653, %v3076
      %v3078 = vpop.f32.mrb[0].mxu0
      %3079 = vmatprep.mubr.bf16.mxu0 0
      %3080 = vmatmul.mubr.bf16.gmra.mrb[0].mxu0 %v2822
      %v3081 = vpop.f32.mrb[0].mxu0
      %v3082 = vadd.f32 %v2655, %v3081
      %v3083 = vpop.f32.mrb[0].mxu0
      %v3084 = vpop.f32.mrb[0].mxu0
      %v3085 = vadd.f32 %v2657, %v3084
      %v3086 = vpop.f32.mrb[0].mxu0
      %3087 = vmatprep.mubr.bf16.mxu0 0
      %3088 = vmatmul.mubr.bf16.gmra.mrb[0].mxu0 %v2825
      %v3089 = vpop.f32.mrb[0].mxu0
      %v3090 = vadd.f32 %v2659, %v3089
      %v3091 = vpop.f32.mrb[0].mxu0
      %v3092 = vpop.f32.mrb[0].mxu0
      %v3093 = vadd.f32 %v2661, %v3092
      %v3094 = vpop.f32.mrb[0].mxu0
      %3095 = vmatprep.mubr.bf16.mxu0 0
      %3096 = vmatmul.mubr.bf16.gmra.mrb[0].mxu0 %v2828
      %v3097 = vpop.f32.mrb[0].mxu0
      %v3098 = vadd.f32 %v2663, %v3097
      %v3099 = vpop.f32.mrb[0].mxu0
      %v3100 = vpop.f32.mrb[0].mxu0
      %v3101 = vadd.f32 %v2665, %v3100
      %v3102 = vpop.f32.mrb[0].mxu0
      %3103 = vmatprep.mubr.bf16.mxu0 0
      %3104 = vmatmul.mubr.bf16.gmra.mrb[0].mxu0 %v2831
      %v3105 = vpop.f32.mrb[0].mxu0
      %v3106 = vadd.f32 %v2667, %v3105
      %v3107 = vpop.f32.mrb[0].mxu0
      %v3108 = vpop.f32.mrb[0].mxu0
      %v3109 = vadd.f32 %v2669, %v3108
      %v3110 = vpop.f32.mrb[0].mxu0
      %3111 = vmatprep.mubr.bf16.mxu0 0
      %3112 = vmatmul.mubr.bf16.gmra.mrb[0].mxu0 %v2834
      %v3113 = vpop.f32.mrb[0].mxu0
      %v3114 = vadd.f32 %v2671, %v3113
      %v3115 = vpop.f32.mrb[0].mxu0
      %v3116 = vpop.f32.mrb[0].mxu0
      %v3117 = vadd.f32 %v2673, %v3116
      %v3118 = vpop.f32.mrb[0].mxu0
      %3119 = vmatprep.mubr.bf16.mxu0 0
      %3120 = vmatmul.mubr.bf16.gmra.mrb[0].mxu0 %v2837
      %v3121 = vpop.f32.mrb[0].mxu0
      %v3122 = vadd.f32 %v2675, %v3121
      %v3123 = vpop.f32.mrb[0].mxu0
      %v3124 = vpop.f32.mrb[0].mxu0
      %v3125 = vadd.f32 %v2677, %v3124
      %v3126 = vpop.f32.mrb[0].mxu0
      %3127 = vdwg.mxu0
      %v3128 = vlaneseq
      %v3129 = vshrl.u32 %v3128, 7
      %v3130 = vsub.s32 2, %v3129
      %v3131 = vrot.slane %v239, %v3130
      %v3132 = vmul.f32 %v1928, %v3131
      %v3133 = vmul.f32 %v1935, %v3131
      %v3134 = vmul.f32 %v1942, %v3131
      %v3135 = vmul.f32 %v1949, %v3131
      %v3136 = vmul.f32 %v1956, %v3131
      %v3137 = vmul.f32 %v1963, %v3131
      %v3138 = vmul.f32 %v1970, %v3131
      %v3139 = vmul.f32 %v1977, %v3131
      %v3140 = vmul.f32 %v1984, %v3131
      %v3141 = vmul.f32 %v1991, %v3131
      %v3142 = vmul.f32 %v1998, %v3131
      %v3143 = vmul.f32 %v2005, %v3131
      %v3144 = vmul.f32 %v2012, %v3131
      %v3145 = vmul.f32 %v2019, %v3131
      %v3146 = vmul.f32 %v2026, %v3131
      %v3147 = vmul.f32 %v2033, %v3131
      %v3148 = vmul.f32 %v2040, %v3131
      %v3149 = vmul.f32 %v2047, %v3131
      %v3150 = vmul.f32 %v2054, %v3131
      %v3151 = vmul.f32 %v2061, %v3131
      %v3152 = vmul.f32 %v2068, %v3131
      %v3153 = vmul.f32 %v2075, %v3131
      %v3154 = vmul.f32 %v2082, %v3131
      %v3155 = vmul.f32 %v2089, %v3131
      %v3156 = vmul.f32 %v2096, %v3131
      %v3157 = vmul.f32 %v2103, %v3131
      %v3158 = vmul.f32 %v2110, %v3131
      %v3159 = vmul.f32 %v2117, %v3131
      %v3160 = vmul.f32 %v2124, %v3131
      %v3161 = vmul.f32 %v2131, %v3131
      %v3162 = vmul.f32 %v2138, %v3131
      %v3163 = vmul.f32 %v2145, %v3131
      %v3164 = vmul.f32 %v2152, %v3131
      %v3165 = vmul.f32 %v2159, %v3131
      %v3166 = vmul.f32 %v2166, %v3131
      %v3167 = vmul.f32 %v2173, %v3131
      %v3168 = vmul.f32 %v2180, %v3131
      %v3169 = vmul.f32 %v2187, %v3131
      %v3170 = vmul.f32 %v2194, %v3131
      %v3171 = vmul.f32 %v2201, %v3131
      %v3172 = vmul.f32 %v2208, %v3131
      %v3173 = vmul.f32 %v2215, %v3131
      %v3174 = vmul.f32 %v2222, %v3131
      %v3175 = vmul.f32 %v2229, %v3131
      %v3176 = vmul.f32 %v2236, %v3131
      %v3177 = vmul.f32 %v2243, %v3131
      %v3178 = vmul.f32 %v2250, %v3131
      %v3179 = vmul.f32 %v2257, %v3131
      %v3180 = vmul.f32 %v2264, %v3131
      %v3181 = vmul.f32 %v2271, %v3131
      %v3182 = vmul.f32 %v2278, %v3131
      %v3183 = vmul.f32 %v2285, %v3131
      %v3184 = vmul.f32 %v2292, %v3131
      %v3185 = vmul.f32 %v2299, %v3131
      %v3186 = vmul.f32 %v2306, %v3131
      %v3187 = vmul.f32 %v2313, %v3131
      %v3188 = vmul.f32 %v2320, %v3131
      %v3189 = vmul.f32 %v2327, %v3131
      %v3190 = vmul.f32 %v2334, %v3131
      %v3191 = vmul.f32 %v2341, %v3131
      %v3192 = vmul.f32 %v2348, %v3131
      %v3193 = vmul.f32 %v2355, %v3131
      %v3194 = vmul.f32 %v2362, %v3131
      %v3195 = vmul.f32 %v2369, %v3131
      %v3196 = vadd.f32 %v2874, %v3132
      %v3197 = vadd.f32 %v2877, %v3133
      %v3198 = vadd.f32 %v2882, %v3134
      %v3199 = vadd.f32 %v2885, %v3135
      %v3200 = vadd.f32 %v2890, %v3136
      %v3201 = vadd.f32 %v2893, %v3137
      %v3202 = vadd.f32 %v2898, %v3138
      %v3203 = vadd.f32 %v2901, %v3139
      %v3204 = vadd.f32 %v2906, %v3140
      %v3205 = vadd.f32 %v2909, %v3141
      %v3206 = vadd.f32 %v2914, %v3142
      %v3207 = vadd.f32 %v2917, %v3143
      %v3208 = vadd.f32 %v2922, %v3144
      %v3209 = vadd.f32 %v2925, %v3145
      %v3210 = vadd.f32 %v2930, %v3146
      %v3211 = vadd.f32 %v2933, %v3147
      %v3212 = vadd.f32 %v2938, %v3148
      %v3213 = vadd.f32 %v2941, %v3149
      %v3214 = vadd.f32 %v2946, %v3150
      %v3215 = vadd.f32 %v2949, %v3151
      %v3216 = vadd.f32 %v2954, %v3152
      %v3217 = vadd.f32 %v2957, %v3153
      %v3218 = vadd.f32 %v2962, %v3154
      %v3219 = vadd.f32 %v2965, %v3155
      %v3220 = vadd.f32 %v2970, %v3156
      %v3221 = vadd.f32 %v2973, %v3157
      %v3222 = vadd.f32 %v2978, %v3158
      %v3223 = vadd.f32 %v2981, %v3159
      %v3224 = vadd.f32 %v2986, %v3160
      %v3225 = vadd.f32 %v2989, %v3161
      %v3226 = vadd.f32 %v2994, %v3162
      %v3227 = vadd.f32 %v2997, %v3163
      %v3228 = vadd.f32 %v3002, %v3164
      %v3229 = vadd.f32 %v3005, %v3165
      %v3230 = vadd.f32 %v3010, %v3166
      %v3231 = vadd.f32 %v3013, %v3167
      %v3232 = vadd.f32 %v3018, %v3168
      %v3233 = vadd.f32 %v3021, %v3169
      %v3234 = vadd.f32 %v3026, %v3170
      %v3235 = vadd.f32 %v3029, %v3171
      %v3236 = vadd.f32 %v3034, %v3172
      %v3237 = vadd.f32 %v3037, %v3173
      %v3238 = vadd.f32 %v3042, %v3174
      %v3239 = vadd.f32 %v3045, %v3175
      %v3240 = vadd.f32 %v3050, %v3176
      %v3241 = vadd.f32 %v3053, %v3177
      %v3242 = vadd.f32 %v3058, %v3178
      %v3243 = vadd.f32 %v3061, %v3179
      %v3244 = vadd.f32 %v3066, %v3180
      %v3245 = vadd.f32 %v3069, %v3181
      %v3246 = vadd.f32 %v3074, %v3182
      %v3247 = vadd.f32 %v3077, %v3183
      %v3248 = vadd.f32 %v3082, %v3184
      %v3249 = vadd.f32 %v3085, %v3185
      %v3250 = vadd.f32 %v3090, %v3186
      %v3251 = vadd.f32 %v3093, %v3187
      %v3252 = vadd.f32 %v3098, %v3188
      %v3253 = vadd.f32 %v3101, %v3189
      %v3254 = vadd.f32 %v3106, %v3190
      %v3255 = vadd.f32 %v3109, %v3191
      %v3256 = vadd.f32 %v3114, %v3192
      %v3257 = vadd.f32 %v3117, %v3193
      %v3258 = vadd.f32 %v3122, %v3194
      %v3259 = vadd.f32 %v3125, %v3195
      %v3260 = vlaneseq
      %v3261 = vshrl.u32 %v3260, 7
      %v3262 = vsub.s32 3, %v3261
      %v3263 = vrot.slane %v239, %v3262
      %v3264 = vadd.f32 %v3196, %v3263
      %v3265 = vadd.f32 %v3197, %v3263
      %v3266 = vadd.f32 %v3198, %v3263
      %v3267 = vadd.f32 %v3199, %v3263
      %v3268 = vadd.f32 %v3200, %v3263
      %v3269 = vadd.f32 %v3201, %v3263
      %v3270 = vadd.f32 %v3202, %v3263
      %v3271 = vadd.f32 %v3203, %v3263
      %v3272 = vadd.f32 %v3204, %v3263
      %v3273 = vadd.f32 %v3205, %v3263
      %v3274 = vadd.f32 %v3206, %v3263
      %v3275 = vadd.f32 %v3207, %v3263
      %v3276 = vadd.f32 %v3208, %v3263
      %v3277 = vadd.f32 %v3209, %v3263
      %v3278 = vadd.f32 %v3210, %v3263
      %v3279 = vadd.f32 %v3211, %v3263
      %v3280 = vadd.f32 %v3212, %v3263
      %v3281 = vadd.f32 %v3213, %v3263
      %v3282 = vadd.f32 %v3214, %v3263
      %v3283 = vadd.f32 %v3215, %v3263
      %v3284 = vadd.f32 %v3216, %v3263
      %v3285 = vadd.f32 %v3217, %v3263
      %v3286 = vadd.f32 %v3218, %v3263
      %v3287 = vadd.f32 %v3219, %v3263
      %v3288 = vadd.f32 %v3220, %v3263
      %v3289 = vadd.f32 %v3221, %v3263
      %v3290 = vadd.f32 %v3222, %v3263
      %v3291 = vadd.f32 %v3223, %v3263
      %v3292 = vadd.f32 %v3224, %v3263
      %v3293 = vadd.f32 %v3225, %v3263
      %v3294 = vadd.f32 %v3226, %v3263
      %v3295 = vadd.f32 %v3227, %v3263
      %v3296 = vadd.f32 %v3228, %v3263
      %v3297 = vadd.f32 %v3229, %v3263
      %v3298 = vadd.f32 %v3230, %v3263
      %v3299 = vadd.f32 %v3231, %v3263
      %v3300 = vadd.f32 %v3232, %v3263
      %v3301 = vadd.f32 %v3233, %v3263
      %v3302 = vadd.f32 %v3234, %v3263
      %v3303 = vadd.f32 %v3235, %v3263
      %v3304 = vadd.f32 %v3236, %v3263
      %v3305 = vadd.f32 %v3237, %v3263
      %v3306 = vadd.f32 %v3238, %v3263
      %v3307 = vadd.f32 %v3239, %v3263
      %v3308 = vadd.f32 %v3240, %v3263
      %v3309 = vadd.f32 %v3241, %v3263
      %v3310 = vadd.f32 %v3242, %v3263
      %v3311 = vadd.f32 %v3243, %v3263
      %v3312 = vadd.f32 %v3244, %v3263
      %v3313 = vadd.f32 %v3245, %v3263
      %v3314 = vadd.f32 %v3246, %v3263
      %v3315 = vadd.f32 %v3247, %v3263
      %v3316 = vadd.f32 %v3248, %v3263
      %v3317 = vadd.f32 %v3249, %v3263
      %v3318 = vadd.f32 %v3250, %v3263
      %v3319 = vadd.f32 %v3251, %v3263
      %v3320 = vadd.f32 %v3252, %v3263
      %v3321 = vadd.f32 %v3253, %v3263
      %v3322 = vadd.f32 %v3254, %v3263
      %v3323 = vadd.f32 %v3255, %v3263
      %v3324 = vadd.f32 %v3256, %v3263
      %v3325 = vadd.f32 %v3257, %v3263
      %v3326 = vadd.f32 %v3258, %v3263
      %v3327 = vadd.f32 %v3259, %v3263
      %v3328 = vtanh.pop %v3264
      %v3329 = vtanh.pop %v3265
      %v3330 = vtanh.pop %v3266
      %v3331 = vtanh.pop %v3267
      %v3332 = vtanh.pop %v3268
      %v3333 = vtanh.pop %v3269
      %v3334 = vtanh.pop %v3270
      %v3335 = vtanh.pop %v3271
      %v3336 = vtanh.pop %v3272
      %v3337 = vtanh.pop %v3273
      %v3338 = vtanh.pop %v3274
      %v3339 = vtanh.pop %v3275
      %v3340 = vtanh.pop %v3276
      %v3341 = vtanh.pop %v3277
      %v3342 = vtanh.pop %v3278
      %v3343 = vtanh.pop %v3279
      %v3344 = vtanh.pop %v3280
      %v3345 = vtanh.pop %v3281
      %v3346 = vtanh.pop %v3282
      %v3347 = vtanh.pop %v3283
      %v3348 = vtanh.pop %v3284
      %v3349 = vtanh.pop %v3285
      %v3350 = vtanh.pop %v3286
      %v3351 = vtanh.pop %v3287
      %v3352 = vtanh.pop %v3288
      %v3353 = vtanh.pop %v3289
      %v3354 = vtanh.pop %v3290
      %v3355 = vtanh.pop %v3291
      %v3356 = vtanh.pop %v3292
      %v3357 = vtanh.pop %v3293
      %v3358 = vtanh.pop %v3294
      %v3359 = vtanh.pop %v3295
      %v3360 = vtanh.pop %v3296
      %v3361 = vtanh.pop %v3297
      %v3362 = vtanh.pop %v3298
      %v3363 = vtanh.pop %v3299
      %v3364 = vtanh.pop %v3300
      %v3365 = vtanh.pop %v3301
      %v3366 = vtanh.pop %v3302
      %v3367 = vtanh.pop %v3303
      %v3368 = vtanh.pop %v3304
      %v3369 = vtanh.pop %v3305
      %v3370 = vtanh.pop %v3306
      %v3371 = vtanh.pop %v3307
      %v3372 = vtanh.pop %v3308
      %v3373 = vtanh.pop %v3309
      %v3374 = vtanh.pop %v3310
      %v3375 = vtanh.pop %v3311
      %v3376 = vtanh.pop %v3312
      %v3377 = vtanh.pop %v3313
      %v3378 = vtanh.pop %v3314
      %v3379 = vtanh.pop %v3315
      %v3380 = vtanh.pop %v3316
      %v3381 = vtanh.pop %v3317
      %v3382 = vtanh.pop %v3318
      %v3383 = vtanh.pop %v3319
      %v3384 = vtanh.pop %v3320
      %v3385 = vtanh.pop %v3321
      %v3386 = vtanh.pop %v3322
      %v3387 = vtanh.pop %v3323
      %v3388 = vtanh.pop %v3324
      %v3389 = vtanh.pop %v3325
      %v3390 = vtanh.pop %v3326
      %v3391 = vtanh.pop %v3327
      %v3392 = vpack.c.bf16 %v3329, %v3328
      %v3393 = vpack.c.bf16 %v3331, %v3330
      %v3394 = vpack.c.bf16 %v3333, %v3332
      %v3395 = vpack.c.bf16 %v3335, %v3334
      %v3396 = vpack.c.bf16 %v3337, %v3336
      %v3397 = vpack.c.bf16 %v3339, %v3338
      %v3398 = vpack.c.bf16 %v3341, %v3340
      %v3399 = vpack.c.bf16 %v3343, %v3342
      %v3400 = vpack.c.bf16 %v3345, %v3344
      %v3401 = vpack.c.bf16 %v3347, %v3346
      %v3402 = vpack.c.bf16 %v3349, %v3348
      %v3403 = vpack.c.bf16 %v3351, %v3350
      %v3404 = vpack.c.bf16 %v3353, %v3352
      %v3405 = vpack.c.bf16 %v3355, %v3354
      %v3406 = vpack.c.bf16 %v3357, %v3356
      %v3407 = vpack.c.bf16 %v3359, %v3358
      %v3408 = vpack.c.bf16 %v3361, %v3360
      %v3409 = vpack.c.bf16 %v3363, %v3362
      %v3410 = vpack.c.bf16 %v3365, %v3364
      %v3411 = vpack.c.bf16 %v3367, %v3366
      %v3412 = vpack.c.bf16 %v3369, %v3368
      %v3413 = vpack.c.bf16 %v3371, %v3370
      %v3414 = vpack.c.bf16 %v3373, %v3372
      %v3415 = vpack.c.bf16 %v3375, %v3374
      %v3416 = vpack.c.bf16 %v3377, %v3376
      %v3417 = vpack.c.bf16 %v3379, %v3378
      %v3418 = vpack.c.bf16 %v3381, %v3380
      %v3419 = vpack.c.bf16 %v3383, %v3382
      %v3420 = vpack.c.bf16 %v3385, %v3384
      %v3421 = vpack.c.bf16 %v3387, %v3386
      %v3422 = vpack.c.bf16 %v3389, %v3388
      %v3423 = vpack.c.bf16 %v3391, %v3390
      %v3424 = vlaneseq
      %v3425 = vshrl.u32 %v3424, 7
      %v3426 = vsub.s32 4, %v3425
      %v3427 = vrot.slane %v239, %v3426
      %v3436 = vunpack.c.l.b16 %v276
      %v3437 = vunpack.c.l.b16 %v277
      %v3438 = vunpack.c.l.b16 %v278
      %v3439 = vunpack.c.l.b16 %v279
      %v3440 = vunpack.c.l.b16 %v280
      %v3441 = vunpack.c.l.b16 %v281
      %v3442 = vunpack.c.l.b16 %v282
      %v3443 = vunpack.c.l.b16 %v283
      %v3444 = vpack.c.b16 %v3437, %v3436
      %v3445 = vpack.c.b16 %v3439, %v3438
      %v3446 = vpack.c.b16 %v3441, %v3440
      %v3447 = vpack.c.b16 %v3443, %v3442
      %vm3452 = vcmask 523264
      %v3454 = vsel %vm3452, %v3392, 0
      %v3457 = vsel %vm3452, %v3393, 0
      %v3460 = vsel %vm3452, %v3394, 0
      %v3463 = vsel %vm3452, %v3395, 0
      %v3466 = vsel %vm3452, %v3396, 0
      %v3469 = vsel %vm3452, %v3397, 0
      %v3472 = vsel %vm3452, %v3398, 0
      %v3475 = vsel %vm3452, %v3399, 0
      %v3478 = vsel %vm3452, %v3400, 0
      %v3481 = vsel %vm3452, %v3401, 0
      %v3484 = vsel %vm3452, %v3402, 0
      %v3487 = vsel %vm3452, %v3403, 0
      %v3490 = vsel %vm3452, %v3404, 0
      %v3493 = vsel %vm3452, %v3405, 0
      %v3496 = vsel %vm3452, %v3406, 0
      %v3499 = vsel %vm3452, %v3407, 0
      %v3502 = vsel %vm3452, %v3408, 0
      %v3505 = vsel %vm3452, %v3409, 0
      %v3508 = vsel %vm3452, %v3410, 0
      %v3511 = vsel %vm3452, %v3411, 0
      %v3514 = vsel %vm3452, %v3412, 0
      %v3517 = vsel %vm3452, %v3413, 0
      %v3520 = vsel %vm3452, %v3414, 0
      %v3523 = vsel %vm3452, %v3415, 0
      %v3526 = vsel %vm3452, %v3416, 0
      %v3529 = vsel %vm3452, %v3417, 0
      %v3532 = vsel %vm3452, %v3418, 0
      %v3535 = vsel %vm3452, %v3419, 0
      %v3538 = vsel %vm3452, %v3420, 0
      %v3541 = vsel %vm3452, %v3421, 0
      %v3544 = vsel %vm3452, %v3422, 0
      %v3547 = vsel %vm3452, %v3423, 0
      %3549 = vmatprep.subr.bf16.mxu0 0
      %3550 = vmatpush1.bf16.msra.mxu0 %v3444
      %3551 = vmatprep.subr.bf16.mxu0 0
      %3552 = vmatpush1.bf16.msra.mxu0 %v3445
      %3553 = vmatprep.subr.bf16.mxu0 0
      %3554 = vmatpush1.bf16.msra.mxu0 %v3446
      %3555 = vmatprep.subr.bf16.mxu0 0
      %3556 = vmatpush1.bf16.msra.mxu0 %v3447
      %3557 = vmatprep.subr.bf16.mxu0 0
      %3558 = vmatpush1.bf16.msra.mxu0 0
      %3559 = vmatprep.subr.bf16.mxu0 0
      %3560 = vmatpush1.bf16.msra.mxu0 0
      %3561 = vmatprep.subr.bf16.mxu0 0
      %3562 = vmatpush1.bf16.msra.mxu0 0
      %3563 = vmatprep.subr.bf16.mxu0 0
      %3564 = vmatpush1.bf16.msra.mxu0 0
      %3565 = vmatprep.subr.bf16.mxu0 0
      %3566 = vmatpush1.bf16.msra.mxu0 0
      %3567 = vmatprep.subr.bf16.mxu0 0
      %3568 = vmatpush1.bf16.msra.mxu0 0
      %3569 = vmatprep.subr.bf16.mxu0 0
      %3570 = vmatpush1.bf16.msra.mxu0 0
      %3571 = vmatprep.subr.bf16.mxu0 0
      %3572 = vmatpush1.bf16.msra.mxu0 0
      %3573 = vmatprep.subr.bf16.mxu0 0
      %3574 = vmatpush1.bf16.msra.mxu0 0
      %3575 = vmatprep.subr.bf16.mxu0 0
      %3576 = vmatpush1.bf16.msra.mxu0 0
      %3577 = vmatprep.subr.bf16.mxu0 0
      %3578 = vmatpush1.bf16.msra.mxu0 0
      %3579 = vmatprep.subr.bf16.mxu0 0
      %3580 = vmatpush1.bf16.msra.mxu0 0
      %3581 = vmatprep.mubr.bf16.mxu0 0
      %3582 = vmatmul.mubr.bf16.gmra.mrb[0].mxu0 %v3454
      %v3583 = vpop.f32.mrb[0].mxu0
      %v3584 = vadd.f32 %v3427, %v3583
      %v3585 = vpop.f32.mrb[0].mxu0
      %v3586 = vpop.f32.mrb[0].mxu0
      %v3587 = vadd.f32 %v3427, %v3586
      %v3588 = vpop.f32.mrb[0].mxu0
      %3589 = vmatprep.mubr.bf16.mxu0 0
      %3590 = vmatmul.mubr.bf16.gmra.mrb[0].mxu0 %v3457
      %v3591 = vpop.f32.mrb[0].mxu0
      %v3592 = vadd.f32 %v3427, %v3591
      %v3593 = vpop.f32.mrb[0].mxu0
      %v3594 = vpop.f32.mrb[0].mxu0
      %v3595 = vadd.f32 %v3427, %v3594
      %v3596 = vpop.f32.mrb[0].mxu0
      %3597 = vmatprep.mubr.bf16.mxu0 0
      %3598 = vmatmul.mubr.bf16.gmra.mrb[0].mxu0 %v3460
      %v3599 = vpop.f32.mrb[0].mxu0
      %v3600 = vadd.f32 %v3427, %v3599
      %v3601 = vpop.f32.mrb[0].mxu0
      %v3602 = vpop.f32.mrb[0].mxu0
      %v3603 = vadd.f32 %v3427, %v3602
      %v3604 = vpop.f32.mrb[0].mxu0
      %3605 = vmatprep.mubr.bf16.mxu0 0
      %3606 = vmatmul.mubr.bf16.gmra.mrb[0].mxu0 %v3463
      %v3607 = vpop.f32.mrb[0].mxu0
      %v3608 = vadd.f32 %v3427, %v3607
      %v3609 = vpop.f32.mrb[0].mxu0
      %v3610 = vpop.f32.mrb[0].mxu0
      %v3611 = vadd.f32 %v3427, %v3610
      %v3612 = vpop.f32.mrb[0].mxu0
      %3613 = vmatprep.mubr.bf16.mxu0 0
      %3614 = vmatmul.mubr.bf16.gmra.mrb[0].mxu0 %v3466
      %v3615 = vpop.f32.mrb[0].mxu0
      %v3616 = vadd.f32 %v3427, %v3615
      %v3617 = vpop.f32.mrb[0].mxu0
      %v3618 = vpop.f32.mrb[0].mxu0
      %v3619 = vadd.f32 %v3427, %v3618
      %v3620 = vpop.f32.mrb[0].mxu0
      %3621 = vmatprep.mubr.bf16.mxu0 0
      %3622 = vmatmul.mubr.bf16.gmra.mrb[0].mxu0 %v3469
      %v3623 = vpop.f32.mrb[0].mxu0
      %v3624 = vadd.f32 %v3427, %v3623
      %v3625 = vpop.f32.mrb[0].mxu0
      %v3626 = vpop.f32.mrb[0].mxu0
      %v3627 = vadd.f32 %v3427, %v3626
      %v3628 = vpop.f32.mrb[0].mxu0
      %3629 = vmatprep.mubr.bf16.mxu0 0
      %3630 = vmatmul.mubr.bf16.gmra.mrb[0].mxu0 %v3472
      %v3631 = vpop.f32.mrb[0].mxu0
      %v3632 = vadd.f32 %v3427, %v3631
      %v3633 = vpop.f32.mrb[0].mxu0
      %v3634 = vpop.f32.mrb[0].mxu0
      %v3635 = vadd.f32 %v3427, %v3634
      %v3636 = vpop.f32.mrb[0].mxu0
      %3637 = vmatprep.mubr.bf16.mxu0 0
      %3638 = vmatmul.mubr.bf16.gmra.mrb[0].mxu0 %v3475
      %v3639 = vpop.f32.mrb[0].mxu0
      %v3640 = vadd.f32 %v3427, %v3639
      %v3641 = vpop.f32.mrb[0].mxu0
      %v3642 = vpop.f32.mrb[0].mxu0
      %v3643 = vadd.f32 %v3427, %v3642
      %v3644 = vpop.f32.mrb[0].mxu0
      %3645 = vmatprep.mubr.bf16.mxu0 0
      %3646 = vmatmul.mubr.bf16.gmra.mrb[0].mxu0 %v3478
      %v3647 = vpop.f32.mrb[0].mxu0
      %v3648 = vadd.f32 %v3427, %v3647
      %v3649 = vpop.f32.mrb[0].mxu0
      %v3650 = vpop.f32.mrb[0].mxu0
      %v3651 = vadd.f32 %v3427, %v3650
      %v3652 = vpop.f32.mrb[0].mxu0
      %3653 = vmatprep.mubr.bf16.mxu0 0
      %3654 = vmatmul.mubr.bf16.gmra.mrb[0].mxu0 %v3481
      %v3655 = vpop.f32.mrb[0].mxu0
      %v3656 = vadd.f32 %v3427, %v3655
      %v3657 = vpop.f32.mrb[0].mxu0
      %v3658 = vpop.f32.mrb[0].mxu0
      %v3659 = vadd.f32 %v3427, %v3658
      %v3660 = vpop.f32.mrb[0].mxu0
      %3661 = vmatprep.mubr.bf16.mxu0 0
      %3662 = vmatmul.mubr.bf16.gmra.mrb[0].mxu0 %v3484
      %v3663 = vpop.f32.mrb[0].mxu0
      %v3664 = vadd.f32 %v3427, %v3663
      %v3665 = vpop.f32.mrb[0].mxu0
      %v3666 = vpop.f32.mrb[0].mxu0
      %v3667 = vadd.f32 %v3427, %v3666
      %v3668 = vpop.f32.mrb[0].mxu0
      %3669 = vmatprep.mubr.bf16.mxu0 0
      %3670 = vmatmul.mubr.bf16.gmra.mrb[0].mxu0 %v3487
      %v3671 = vpop.f32.mrb[0].mxu0
      %v3672 = vadd.f32 %v3427, %v3671
      %v3673 = vpop.f32.mrb[0].mxu0
      %v3674 = vpop.f32.mrb[0].mxu0
      %v3675 = vadd.f32 %v3427, %v3674
      %v3676 = vpop.f32.mrb[0].mxu0
      %3677 = vmatprep.mubr.bf16.mxu0 0
      %3678 = vmatmul.mubr.bf16.gmra.mrb[0].mxu0 %v3490
      %v3679 = vpop.f32.mrb[0].mxu0
      %v3680 = vadd.f32 %v3427, %v3679
      %v3681 = vpop.f32.mrb[0].mxu0
      %v3682 = vpop.f32.mrb[0].mxu0
      %v3683 = vadd.f32 %v3427, %v3682
      %v3684 = vpop.f32.mrb[0].mxu0
      %3685 = vmatprep.mubr.bf16.mxu0 0
      %3686 = vmatmul.mubr.bf16.gmra.mrb[0].mxu0 %v3493
      %v3687 = vpop.f32.mrb[0].mxu0
      %v3688 = vadd.f32 %v3427, %v3687
      %v3689 = vpop.f32.mrb[0].mxu0
      %v3690 = vpop.f32.mrb[0].mxu0
      %v3691 = vadd.f32 %v3427, %v3690
      %v3692 = vpop.f32.mrb[0].mxu0
      %3693 = vmatprep.mubr.bf16.mxu0 0
      %3694 = vmatmul.mubr.bf16.gmra.mrb[0].mxu0 %v3496
      %v3695 = vpop.f32.mrb[0].mxu0
      %v3696 = vadd.f32 %v3427, %v3695
      %v3697 = vpop.f32.mrb[0].mxu0
      %v3698 = vpop.f32.mrb[0].mxu0
      %v3699 = vadd.f32 %v3427, %v3698
      %v3700 = vpop.f32.mrb[0].mxu0
      %3701 = vmatprep.mubr.bf16.mxu0 0
      %3702 = vmatmul.mubr.bf16.gmra.mrb[0].mxu0 %v3499
      %v3703 = vpop.f32.mrb[0].mxu0
      %v3704 = vadd.f32 %v3427, %v3703
      %v3705 = vpop.f32.mrb[0].mxu0
      %v3706 = vpop.f32.mrb[0].mxu0
      %v3707 = vadd.f32 %v3427, %v3706
      %v3708 = vpop.f32.mrb[0].mxu0
      %3709 = vmatprep.mubr.bf16.mxu0 0
      %3710 = vmatmul.mubr.bf16.gmra.mrb[0].mxu0 %v3502
      %v3711 = vpop.f32.mrb[0].mxu0
      %v3712 = vadd.f32 %v3427, %v3711
      %v3713 = vpop.f32.mrb[0].mxu0
      %v3714 = vpop.f32.mrb[0].mxu0
      %v3715 = vadd.f32 %v3427, %v3714
      %v3716 = vpop.f32.mrb[0].mxu0
      %3717 = vmatprep.mubr.bf16.mxu0 0
      %3718 = vmatmul.mubr.bf16.gmra.mrb[0].mxu0 %v3505
      %v3719 = vpop.f32.mrb[0].mxu0
      %v3720 = vadd.f32 %v3427, %v3719
      %v3721 = vpop.f32.mrb[0].mxu0
      %v3722 = vpop.f32.mrb[0].mxu0
      %v3723 = vadd.f32 %v3427, %v3722
      %v3724 = vpop.f32.mrb[0].mxu0
      %3725 = vmatprep.mubr.bf16.mxu0 0
      %3726 = vmatmul.mubr.bf16.gmra.mrb[0].mxu0 %v3508
      %v3727 = vpop.f32.mrb[0].mxu0
      %v3728 = vadd.f32 %v3427, %v3727
      %v3729 = vpop.f32.mrb[0].mxu0
      %v3730 = vpop.f32.mrb[0].mxu0
      %v3731 = vadd.f32 %v3427, %v3730
      %v3732 = vpop.f32.mrb[0].mxu0
      %3733 = vmatprep.mubr.bf16.mxu0 0
      %3734 = vmatmul.mubr.bf16.gmra.mrb[0].mxu0 %v3511
      %v3735 = vpop.f32.mrb[0].mxu0
      %v3736 = vadd.f32 %v3427, %v3735
      %v3737 = vpop.f32.mrb[0].mxu0
      %v3738 = vpop.f32.mrb[0].mxu0
      %v3739 = vadd.f32 %v3427, %v3738
      %v3740 = vpop.f32.mrb[0].mxu0
      %3741 = vmatprep.mubr.bf16.mxu0 0
      %3742 = vmatmul.mubr.bf16.gmra.mrb[0].mxu0 %v3514
      %v3743 = vpop.f32.mrb[0].mxu0
      %v3744 = vadd.f32 %v3427, %v3743
      %v3745 = vpop.f32.mrb[0].mxu0
      %v3746 = vpop.f32.mrb[0].mxu0
      %v3747 = vadd.f32 %v3427, %v3746
      %v3748 = vpop.f32.mrb[0].mxu0
      %3749 = vmatprep.mubr.bf16.mxu0 0
      %3750 = vmatmul.mubr.bf16.gmra.mrb[0].mxu0 %v3517
      %v3751 = vpop.f32.mrb[0].mxu0
      %v3752 = vadd.f32 %v3427, %v3751
      %v3753 = vpop.f32.mrb[0].mxu0
      %v3754 = vpop.f32.mrb[0].mxu0
      %v3755 = vadd.f32 %v3427, %v3754
      %v3756 = vpop.f32.mrb[0].mxu0
      %3757 = vmatprep.mubr.bf16.mxu0 0
      %3758 = vmatmul.mubr.bf16.gmra.mrb[0].mxu0 %v3520
      %v3759 = vpop.f32.mrb[0].mxu0
      %v3760 = vadd.f32 %v3427, %v3759
      %v3761 = vpop.f32.mrb[0].mxu0
      %v3762 = vpop.f32.mrb[0].mxu0
      %v3763 = vadd.f32 %v3427, %v3762
      %v3764 = vpop.f32.mrb[0].mxu0
      %3765 = vmatprep.mubr.bf16.mxu0 0
      %3766 = vmatmul.mubr.bf16.gmra.mrb[0].mxu0 %v3523
      %v3767 = vpop.f32.mrb[0].mxu0
      %v3768 = vadd.f32 %v3427, %v3767
      %v3769 = vpop.f32.mrb[0].mxu0
      %v3770 = vpop.f32.mrb[0].mxu0
      %v3771 = vadd.f32 %v3427, %v3770
      %v3772 = vpop.f32.mrb[0].mxu0
      %3773 = vmatprep.mubr.bf16.mxu0 0
      %3774 = vmatmul.mubr.bf16.gmra.mrb[0].mxu0 %v3526
      %v3775 = vpop.f32.mrb[0].mxu0
      %v3776 = vadd.f32 %v3427, %v3775
      %v3777 = vpop.f32.mrb[0].mxu0
      %v3778 = vpop.f32.mrb[0].mxu0
      %v3779 = vadd.f32 %v3427, %v3778
      %v3780 = vpop.f32.mrb[0].mxu0
      %3781 = vmatprep.mubr.bf16.mxu0 0
      %3782 = vmatmul.mubr.bf16.gmra.mrb[0].mxu0 %v3529
      %v3783 = vpop.f32.mrb[0].mxu0
      %v3784 = vadd.f32 %v3427, %v3783
      %v3785 = vpop.f32.mrb[0].mxu0
      %v3786 = vpop.f32.mrb[0].mxu0
      %v3787 = vadd.f32 %v3427, %v3786
      %v3788 = vpop.f32.mrb[0].mxu0
      %3789 = vmatprep.mubr.bf16.mxu0 0
      %3790 = vmatmul.mubr.bf16.gmra.mrb[0].mxu0 %v3532
      %v3791 = vpop.f32.mrb[0].mxu0
      %v3792 = vadd.f32 %v3427, %v3791
      %v3793 = vpop.f32.mrb[0].mxu0
      %v3794 = vpop.f32.mrb[0].mxu0
      %v3795 = vadd.f32 %v3427, %v3794
      %v3796 = vpop.f32.mrb[0].mxu0
      %3797 = vmatprep.mubr.bf16.mxu0 0
      %3798 = vmatmul.mubr.bf16.gmra.mrb[0].mxu0 %v3535
      %v3799 = vpop.f32.mrb[0].mxu0
      %v3800 = vadd.f32 %v3427, %v3799
      %v3801 = vpop.f32.mrb[0].mxu0
      %v3802 = vpop.f32.mrb[0].mxu0
      %v3803 = vadd.f32 %v3427, %v3802
      %v3804 = vpop.f32.mrb[0].mxu0
      %3805 = vmatprep.mubr.bf16.mxu0 0
      %3806 = vmatmul.mubr.bf16.gmra.mrb[0].mxu0 %v3538
      %v3807 = vpop.f32.mrb[0].mxu0
      %v3808 = vadd.f32 %v3427, %v3807
      %v3809 = vpop.f32.mrb[0].mxu0
      %v3810 = vpop.f32.mrb[0].mxu0
      %v3811 = vadd.f32 %v3427, %v3810
      %v3812 = vpop.f32.mrb[0].mxu0
      %3813 = vmatprep.mubr.bf16.mxu0 0
      %3814 = vmatmul.mubr.bf16.gmra.mrb[0].mxu0 %v3541
      %v3815 = vpop.f32.mrb[0].mxu0
      %v3816 = vadd.f32 %v3427, %v3815
      %v3817 = vpop.f32.mrb[0].mxu0
      %v3818 = vpop.f32.mrb[0].mxu0
      %v3819 = vadd.f32 %v3427, %v3818
      %v3820 = vpop.f32.mrb[0].mxu0
      %3821 = vmatprep.mubr.bf16.mxu0 0
      %3822 = vmatmul.mubr.bf16.gmra.mrb[0].mxu0 %v3544
      %v3823 = vpop.f32.mrb[0].mxu0
      %v3824 = vadd.f32 %v3427, %v3823
      %v3825 = vpop.f32.mrb[0].mxu0
      %v3826 = vpop.f32.mrb[0].mxu0
      %v3827 = vadd.f32 %v3427, %v3826
      %v3828 = vpop.f32.mrb[0].mxu0
      %3829 = vmatprep.mubr.bf16.mxu0 0
      %3830 = vmatmul.mubr.bf16.gmra.mrb[0].mxu0 %v3547
      %v3831 = vpop.f32.mrb[0].mxu0
      %v3832 = vadd.f32 %v3427, %v3831
      %v3833 = vpop.f32.mrb[0].mxu0
      %v3834 = vpop.f32.mrb[0].mxu0
      %v3835 = vadd.f32 %v3427, %v3834
      %v3836 = vpop.f32.mrb[0].mxu0
      %3837 = vdwg.mxu0
      %v3838 = vtanh.pop %v3584
      %v3839 = vtanh.pop %v3587
      %v3840 = vtanh.pop %v3592
      %v3841 = vtanh.pop %v3595
      %v3842 = vtanh.pop %v3600
      %v3843 = vtanh.pop %v3603
      %v3844 = vtanh.pop %v3608
      %v3845 = vtanh.pop %v3611
      %v3846 = vtanh.pop %v3616
      %v3847 = vtanh.pop %v3619
      %v3848 = vtanh.pop %v3624
      %v3849 = vtanh.pop %v3627
      %v3850 = vtanh.pop %v3632
      %v3851 = vtanh.pop %v3635
      %v3852 = vtanh.pop %v3640
      %v3853 = vtanh.pop %v3643
      %v3854 = vtanh.pop %v3648
      %v3855 = vtanh.pop %v3651
      %v3856 = vtanh.pop %v3656
      %v3857 = vtanh.pop %v3659
      %v3858 = vtanh.pop %v3664
      %v3859 = vtanh.pop %v3667
      %v3860 = vtanh.pop %v3672
      %v3861 = vtanh.pop %v3675
      %v3862 = vtanh.pop %v3680
      %v3863 = vtanh.pop %v3683
      %v3864 = vtanh.pop %v3688
      %v3865 = vtanh.pop %v3691
      %v3866 = vtanh.pop %v3696
      %v3867 = vtanh.pop %v3699
      %v3868 = vtanh.pop %v3704
      %v3869 = vtanh.pop %v3707
      %v3870 = vtanh.pop %v3712
      %v3871 = vtanh.pop %v3715
      %v3872 = vtanh.pop %v3720
      %v3873 = vtanh.pop %v3723
      %v3874 = vtanh.pop %v3728
      %v3875 = vtanh.pop %v3731
      %v3876 = vtanh.pop %v3736
      %v3877 = vtanh.pop %v3739
      %v3878 = vtanh.pop %v3744
      %v3879 = vtanh.pop %v3747
      %v3880 = vtanh.pop %v3752
      %v3881 = vtanh.pop %v3755
      %v3882 = vtanh.pop %v3760
      %v3883 = vtanh.pop %v3763
      %v3884 = vtanh.pop %v3768
      %v3885 = vtanh.pop %v3771
      %v3886 = vtanh.pop %v3776
      %v3887 = vtanh.pop %v3779
      %v3888 = vtanh.pop %v3784
      %v3889 = vtanh.pop %v3787
      %v3890 = vtanh.pop %v3792
      %v3891 = vtanh.pop %v3795
      %v3892 = vtanh.pop %v3800
      %v3893 = vtanh.pop %v3803
      %v3894 = vtanh.pop %v3808
      %v3895 = vtanh.pop %v3811
      %v3896 = vtanh.pop %v3816
      %v3897 = vtanh.pop %v3819
      %v3898 = vtanh.pop %v3824
      %v3899 = vtanh.pop %v3827
      %v3900 = vtanh.pop %v3832
      %v3901 = vtanh.pop %v3835
      %3902 = vst [vmem:[%s172] sm:$0xff] %v3838
      %3903 = vst [vmem:[%s172 + $0x8] sm:$0xff] %v3839
      %3904 = vst [vmem:[%s172 + $0x10] sm:$0xff] %v3840
      %3905 = vst [vmem:[%s172 + $0x18] sm:$0xff] %v3841
      %3906 = vst [vmem:[%s172 + $0x20] sm:$0xff] %v3842
      %3907 = vst [vmem:[%s172 + $0x28] sm:$0xff] %v3843
      %3908 = vst [vmem:[%s172 + $0x30] sm:$0xff] %v3844
      %3909 = vst [vmem:[%s172 + $0x38] sm:$0xff] %v3845
      %3910 = vst [vmem:[%s172 + $0x40] sm:$0xff] %v3846
      %3911 = vst [vmem:[%s172 + $0x48] sm:$0xff] %v3847
      %3912 = vst [vmem:[%s172 + $0x50] sm:$0xff] %v3848
      %3913 = vst [vmem:[%s172 + $0x58] sm:$0xff] %v3849
      %3914 = vst [vmem:[%s172 + $0x60] sm:$0xff] %v3850
      %3915 = vst [vmem:[%s172 + $0x68] sm:$0xff] %v3851
      %3916 = vst [vmem:[%s172 + $0x70] sm:$0xff] %v3852
      %3917 = vst [vmem:[%s172 + $0x78] sm:$0xff] %v3853
      %3918 = vst [vmem:[%s172 + $0x80] sm:$0xff] %v3854
      %3919 = vst [vmem:[%s172 + $0x88] sm:$0xff] %v3855
      %3920 = vst [vmem:[%s172 + $0x90] sm:$0xff] %v3856
      %3921 = vst [vmem:[%s172 + $0x98] sm:$0xff] %v3857
      %3922 = vst [vmem:[%s172 + $0xa0] sm:$0xff] %v3858
      %3923 = vst [vmem:[%s172 + $0xa8] sm:$0xff] %v3859
      %3924 = vst [vmem:[%s172 + $0xb0] sm:$0xff] %v3860
      %3925 = vst [vmem:[%s172 + $0xb8] sm:$0xff] %v3861
      %3926 = vst [vmem:[%s172 + $0xc0] sm:$0xff] %v3862
      %3927 = vst [vmem:[%s172 + $0xc8] sm:$0xff] %v3863
      %3928 = vst [vmem:[%s172 + $0xd0] sm:$0xff] %v3864
      %3929 = vst [vmem:[%s172 + $0xd8] sm:$0xff] %v3865
      %3930 = vst [vmem:[%s172 + $0xe0] sm:$0xff] %v3866
      %3931 = vst [vmem:[%s172 + $0xe8] sm:$0xff] %v3867
      %3932 = vst [vmem:[%s172 + $0xf0] sm:$0xff] %v3868
      %3933 = vst [vmem:[%s172 + $0xf8] sm:$0xff] %v3869
      %3934 = vst [vmem:[%s172 + $0x100] sm:$0xff] %v3870
      %3935 = vst [vmem:[%s172 + $0x108] sm:$0xff] %v3871
      %3936 = vst [vmem:[%s172 + $0x110] sm:$0xff] %v3872
      %3937 = vst [vmem:[%s172 + $0x118] sm:$0xff] %v3873
      %3938 = vst [vmem:[%s172 + $0x120] sm:$0xff] %v3874
      %3939 = vst [vmem:[%s172 + $0x128] sm:$0xff] %v3875
      %3940 = vst [vmem:[%s172 + $0x130] sm:$0xff] %v3876
      %3941 = vst [vmem:[%s172 + $0x138] sm:$0xff] %v3877
      %3942 = vst [vmem:[%s172 + $0x140] sm:$0xff] %v3878
      %3943 = vst [vmem:[%s172 + $0x148] sm:$0xff] %v3879
      %3944 = vst [vmem:[%s172 + $0x150] sm:$0xff] %v3880
      %3945 = vst [vmem:[%s172 + $0x158] sm:$0xff] %v3881
      %3946 = vst [vmem:[%s172 + $0x160] sm:$0xff] %v3882
      %3947 = vst [vmem:[%s172 + $0x168] sm:$0xff] %v3883
      %3948 = vst [vmem:[%s172 + $0x170] sm:$0xff] %v3884
      %3949 = vst [vmem:[%s172 + $0x178] sm:$0xff] %v3885
      %3950 = vst [vmem:[%s172 + $0x180] sm:$0xff] %v3886
      %3951 = vst [vmem:[%s172 + $0x188] sm:$0xff] %v3887
      %3952 = vst [vmem:[%s172 + $0x190] sm:$0xff] %v3888
      %3953 = vst [vmem:[%s172 + $0x198] sm:$0xff] %v3889
      %3954 = vst [vmem:[%s172 + $0x1a0] sm:$0xff] %v3890
      %3955 = vst [vmem:[%s172 + $0x1a8] sm:$0xff] %v3891
      %3956 = vst [vmem:[%s172 + $0x1b0] sm:$0xff] %v3892
      %3957 = vst [vmem:[%s172 + $0x1b8] sm:$0xff] %v3893
      %3958 = vst [vmem:[%s172 + $0x1c0] sm:$0xff] %v3894
      %3959 = vst [vmem:[%s172 + $0x1c8] sm:$0xff] %v3895
      %3960 = vst [vmem:[%s172 + $0x1d0] sm:$0xff] %v3896
      %3961 = vst [vmem:[%s172 + $0x1d8] sm:$0xff] %v3897
      %3962 = vst [vmem:[%s172 + $0x1e0] sm:$0xff] %v3898
      %3963 = vst [vmem:[%s172 + $0x1e8] sm:$0xff] %v3899
      %3964 = vst [vmem:[%s172 + $0x1f0] sm:$0xff] %v3900
      %3965 = vst [vmem:[%s172 + $0x1f8] sm:$0xff] %v3901
      %s3966 = smul.u32 64, %s14
      %p3967 = scmp.lt.s32.totalorder %s3966, 127
      %s3968 = scalar_select %p3967, %s3966, 127
      %s3969 = smul.addr %s3968, 8
      %s3970 = scalar_lea.vmem %s3, %s3969
      // Predicated region
      $region33: #{streaming_streamvc_forward.1} parent=31 // pred_check
        %p3971 = pneg %p100
      $region34: #{streaming_streamvc_forward.1} parent=31 // pred_check_branch
        %3973 = sbr.rel (%p3971) target = $region36
      $region35: #{streaming_streamvc_forward.1} parent=31 // pred_region
        %s3974 = smul.u32 64, %s14
      $region36: #{streaming_streamvc_forward.1} parent=31 // pred_fallthru
        _
    $region32: #{streaming_streamvc_forward.1} parent=5 // pred_fallthru
      _
    %p3975 = scmp.le.s32.totalorder 2, %s9
    // Predicated region
    $region37: #{streaming_streamvc_forward.1} parent=5 // pred_check
      %p3976 = pneg %p3975
    $region38: #{streaming_streamvc_forward.1} parent=5 // pred_check_branch
      %3978 = sbr.rel (%p3976) target = $region40
    $region39: #{streaming_streamvc_forward.1} parent=5 // pred_region
      %s3979 = ssub.s32 %s9, 2
      // Predicated region
      $region41: #{streaming_streamvc_forward.1} parent=39 // pred_check
        %p3980 = pneg %p106
      $region42: #{streaming_streamvc_forward.1} parent=39 // pred_check_branch
        %3982 = sbr.rel (%p3980) target = $region44
      $region43: #{streaming_streamvc_forward.1} parent=39 // pred_region
        %s3983 = smul.u32 64, %s15
        %p3984 = scmp.lt.s32.totalorder %s3983, 127
        %s3985 = scalar_select %p3984, %s3983, 127
        %s3986 = smul.addr %s3985, 8
        %s3987 = scalar_lea.vmem %s3, %s3986
      $region44: #{streaming_streamvc_forward.1} parent=39 // pred_fallthru
        _
    $region40: #{streaming_streamvc_forward.1} parent=5 // pred_fallthru
      _
  $region6: #{streaming_streamvc_forward.1} parent=0 // loop_footer
    %s13 = sadd.s32 1, %s9
  $region7: #{streaming_streamvc_forward.1} parent=0 // loop_footer_branch
    %8 = sbr.rel target = $region3
  $region8: #{streaming_streamvc_forward.1} parent=0 // loop_exit
    _

</llo_original>
